<compile_context>
chip_gen: v7x
topology: tpu7x:2x2x1
jax: 0.10.0
libtpu: 0.0.40
codegen_flags: <defaults>
</compile_context>

<pallas_src>
import math
import functools

import jax
import jax.numpy as jnp
from jax.experimental import pallas as pl
from jax.experimental.pallas import tpu as pltpu

# ----------------------- model hyper-parameters (small stand-in) -------------
BATCH = 2
IN_CH = 3
IMG = 32          # small stand-in for edge_size=224
PATCH = 16        # patch_size=16 as in the module
DEPTH = 2         # small stand-in for layer=12
DIM = 32          # hidden size
HEADS = 2
MLP_DIM = 4 * DIM
NUM_CLASSES = 10  # num_classes=10 as in the module
LN_EPS = 1e-6     # timm-ViT LayerNorm eps (PyTorch nn.LayerNorm default is 1e-5)


def _round_up(x, m):
    return (x + m - 1) // m * m


# ------------------------------ in-kernel helpers -----------------------------
def _ln(x, g, b):
    x = x.astype(jnp.float32)
    mean = jnp.mean(x, axis=-1, keepdims=True)
    xc = x - mean
    var = jnp.mean(xc * xc, axis=-1, keepdims=True)
    return xc * jax.lax.rsqrt(var + LN_EPS) * g + b


def _gelu(x):
    # TODO(synk): PyTorch nn.GELU() default is the exact erf form; tanh-approx is
    # used here for guaranteed Mosaic lowering (max per-element diff ~1e-3).
    return 0.5 * x * (1.0 + jnp.tanh(0.7978845608028654 * (x + 0.044715 * x * x * x)))


# --------------------------- kernel 1: patch embedding ------------------------
def _patch_embed_kernel(patches_ref, pw_ref, pb_ref, cls_ref, pos_ref, tok0_ref,
                        *, S, S_pad, D):
    # One grid step per image. conv(kernel=stride=patch) == matmul over flattened
    # patches; bf16 MXU operands, f32 accumulation. One-time prologue, so the
    # unaligned 1/S-row stores here are irrelevant for steady-state perf.
    emb = jnp.dot(patches_ref[...], pw_ref[...],
                  preferred_element_type=jnp.float32) + pb_ref[...]      # [NP, D]
    tok0_ref[0:1, :] = cls_ref[...] + pos_ref[0:1, :]
    tok0_ref[1:S, :] = emb + pos_ref[1:S, :]
    if S_pad > S:   # zero the sequence-padding rows so later LN/attention stay finite
        tok0_ref[S:S_pad, :] = jnp.zeros((S_pad - S, D), jnp.float32)


# ----------------------- kernel 2: fused transformer stack --------------------
def _vit_layers_kernel(
        tok0_ref, wq_ref, wk_ref, wv_ref, qkvb_ref, wp_ref,
        fc1w_ref, fc1b_ref, fc2w_ref, small_ref,
        lnf_g_ref, lnf_b_ref, head_w_ref, head_b_ref,
        logits_ref,
        tok_ref,
        *, Bblk, S, S_pad, H, DH, D):
    d = pl.program_id(1)
    N = Bblk * S_pad
    HB = H * Bblk
    f32 = jnp.float32
    bf16 = jnp.bfloat16

    # depth step 0: pull this batch-block's initial tokens into the resident scratch.
    @pl.when(d == 0)
    def _():
        tok_ref[...] = tok0_ref[...]

    tok = tok_ref[...]                       # [Bblk, S_pad, D] f32, VMEM-resident
    x2 = tok.reshape(N, D)

    # ---------------- multi-head self-attention (head-batched) ----------------
    hn = _ln(x2, small_ref[0:1, :], small_ref[1:2, :]).astype(bf16)
    hn_h = jnp.broadcast_to(hn[None], (H, N, D))   # hoisted once; reused by q/k/v

    def qkv_proj(w_ref, bias):               # [H,N,D] x [H,D,DH] -> [H,N,DH] f32
        y = jnp.einsum('hnd,hde->hne', hn_h, w_ref[...],
                       preferred_element_type=f32)
        return y + bias

    bq = qkvb_ref[0:H]                        # [H, 1, DH]
    bk = qkvb_ref[H:2 * H]
    bv = qkvb_ref[2 * H:3 * H]
    scale = 1.0 / math.sqrt(DH)
    # head index stays on the leading (untiled) dim; S_pad is a multiple of 8 so
    # the [H, Bblk*S_pad, DH] -> [H*Bblk, S_pad, DH] reshape is tile-preserving.
    q = (qkv_proj(wq_ref, bq) * scale).reshape(HB, S_pad, DH).astype(bf16)
    k = qkv_proj(wk_ref, bk).reshape(HB, S_pad, DH).astype(bf16)
    v = qkv_proj(wv_ref, bv).reshape(HB, S_pad, DH).astype(bf16)

    # bf16 MXU operands, f32 accumulation; softmax math stays f32.
    s = jnp.einsum('bqd,bkd->bqk', q, k, preferred_element_type=f32)   # [HB,Sp,Sp]
    kmask = jax.lax.broadcasted_iota(jnp.int32, (1, S_pad, S_pad), 2) < S
    s = jnp.where(kmask, s, -1e30)            # mask padded key columns
    s = s - jnp.max(s, axis=-1, keepdims=True)
    p = jnp.exp(s)
    p = p * pl.reciprocal(jnp.sum(p, axis=-1, keepdims=True), approx=True)
    ctx = jnp.einsum('bqk,bkd->bqd', p.astype(bf16), v,
                     preferred_element_type=f32)                       # [HB,Sp,DH]

    # Output projection with head-major weights + reduce over the leading head dim
    # (avoids any [*,S,H,DH] <-> [*,H,S,DH] relayout).
    ctx_h = ctx.reshape(H, N, DH).astype(bf16)
    po = jnp.einsum('hnc,hcd->hnd', ctx_h, wp_ref[...],
                    preferred_element_type=f32)                        # [H, N, D]
    x2 = x2 + jnp.sum(po, axis=0) + small_ref[4:5, :]

    # ---------------------------------- MLP -----------------------------------
    hm = _ln(x2, small_ref[2:3, :], small_ref[3:4, :]).astype(bf16)
    h1 = _gelu(jnp.dot(hm, fc1w_ref[...], preferred_element_type=f32)
               + fc1b_ref[...])
    x2 = x2 + (jnp.dot(h1.astype(bf16), fc2w_ref[...],
                       preferred_element_type=f32) + small_ref[5:6, :])
    tok_ref[...] = x2.reshape(Bblk, S_pad, D)

    # ------------- last depth step: final LayerNorm + classification head ------
    @pl.when(d == pl.num_programs(1) - 1)
    def _():
        cls = tok_ref[:, 0:1, :]                                       # [Bblk,1,D]
        cls_n = _ln(cls, lnf_g_ref[...], lnf_b_ref[...]).astype(bf16)
        hw = jnp.broadcast_to(head_w_ref[...][None],
                              (Bblk, D, head_w_ref.shape[1]))
        lg = jnp.einsum('bsd,bdc->bsc', cls_n, hw, preferred_element_type=f32)
        logits_ref[...] = (lg + head_b_ref[...]).astype(logits_ref.dtype)


# ------------------------------ parameter init --------------------------------
def init_params(key):
    def dense(k, fan_in, fan_out):
        bound = 1.0 / math.sqrt(fan_in)
        kw, kb = jax.random.split(k)
        w = jax.random.uniform(kw, (fan_in, fan_out), jnp.float32, -bound, bound)
        b = jax.random.uniform(kb, (fan_out,), jnp.float32, -bound, bound)
        return w, b

    NP = (IMG // PATCH) ** 2
    S = NP + 1
    DH = DIM // HEADS
    keys = jax.random.split(key, 4 + DEPTH)
    p = {}

    w, b = dense(keys[0], IN_CH * PATCH * PATCH, DIM)
    p["patch_w"] = w.astype(jnp.bfloat16)           # stored/streamed bf16
    p["patch_b"] = b.reshape(1, DIM)
    p["cls"] = 0.02 * jax.random.normal(keys[1], (1, DIM), jnp.float32)
    p["pos"] = 0.02 * jax.random.normal(keys[2], (S, DIM), jnp.float32)
    p["lnf_g"] = jnp.ones((1, DIM), jnp.float32)
    p["lnf_b"] = jnp.zeros((1, DIM), jnp.float32)
    w, b = dense(keys[3], DIM, NUM_CLASSES)
    p["head_w"] = w.astype(jnp.bfloat16)
    p["head_b"] = b.reshape(1, NUM_CLASSES)

    wq, wk, wv, qb, wp = [], [], [], [], []
    f1w, f1b, f2w, small = [], [], [], []
    for d in range(DEPTH):
        bk = jax.random.split(keys[4 + d], 4)
        w, b = dense(bk[0], DIM, 3 * DIM)           # fused qkv projection
        w3 = w.reshape(DIM, 3, HEADS, DH)
        wq.append(jnp.transpose(w3[:, 0], (1, 0, 2)))   # [H, D, DH] head-major
        wk.append(jnp.transpose(w3[:, 1], (1, 0, 2)))
        wv.append(jnp.transpose(w3[:, 2], (1, 0, 2)))
        qb.append(b.reshape(3 * HEADS, 1, DH))           # head-major qkv bias
        w, b = dense(bk[1], DIM, DIM)               # attention output projection
        wp.append(w.reshape(HEADS, DH, DIM))        # head-major on the input side
        proj_b = b
        w, b = dense(bk[2], DIM, MLP_DIM)
        f1w.append(w); f1b.append(b.reshape(1, MLP_DIM))
        w, b = dense(bk[3], MLP_DIM, DIM)
        f2w.append(w); fc2_b = b
        small.append(jnp.stack([                    # packed [8, D] per-layer params
            jnp.ones((DIM,), jnp.float32),          # 0: ln1 gamma
            jnp.zeros((DIM,), jnp.float32),         # 1: ln1 beta
            jnp.ones((DIM,), jnp.float32),          # 2: ln2 gamma
            jnp.zeros((DIM,), jnp.float32),         # 3: ln2 beta
            proj_b,                                 # 4: attn proj bias
            fc2_b,                                  # 5: fc2 bias
            jnp.zeros((DIM,), jnp.float32),         # 6: pad
            jnp.zeros((DIM,), jnp.float32),         # 7: pad
        ], axis=0))

    # Large per-layer weights stacked over depth, pre-cast bf16: halves the per-step
    # HBM->VMEM stream (the critical path at real ViT sizes) and the VMEM footprint.
    p["wq"] = jnp.stack(wq).astype(jnp.bfloat16)    # [DEPTH, H, D, DH]
    p["wk"] = jnp.stack(wk).astype(jnp.bfloat16)
    p["wv"] = jnp.stack(wv).astype(jnp.bfloat16)
    p["qkv_b"] = jnp.stack(qb)                      # [DEPTH, 3H, 1, DH] f32
    p["wp"] = jnp.stack(wp).astype(jnp.bfloat16)    # [DEPTH, H, DH, D]
    p["fc1_w"] = jnp.stack(f1w).astype(jnp.bfloat16)
    p["fc1_b"] = jnp.stack(f1b)
    p["fc2_w"] = jnp.stack(f2w).astype(jnp.bfloat16)
    p["small"] = jnp.stack(small)                   # [DEPTH, 8, D] f32
    return p


# --------------------------------- forward ------------------------------------
def foundationmodel_forward(x, params):
    """x: NCHW [B, C, H, W] -> logits [B, NUM_CLASSES]."""
    B, C, Himg, Wimg = x.shape
    P = PATCH
    nH, nW = Himg // P, Wimg // P
    NP = nH * nW
    S = NP + 1
    S_pad = _round_up(S, 8)     # TODO(synk): at real S=197 pad to a 128-multiple and tile softmax flash-style
    DH = DIM // HEADS
    CPP = C * P * P
    BB = 2 if B % 2 == 0 else 1  # batch blocks -> leading "parallel" grid axis (v7x dual-TC)
    Bblk = B // BB

    # patch-embed conv(kernel=stride=P) == patch extraction (glue) + in-kernel matmul
    patches = (x.reshape(B, C, nH, P, nW, P)
                 .transpose(0, 2, 4, 1, 3, 5)
                 .reshape(B, NP, CPP)
                 .astype(jnp.bfloat16))

    # ---- kernel 1: patch embed + cls + pos -> padded initial tokens ----------
    tok0 = pl.pallas_call(
        functools.partial(_patch_embed_kernel, S=S, S_pad=S_pad, D=DIM),
        grid=(B,),
        out_shape=jax.ShapeDtypeStruct((B, S_pad, DIM), jnp.float32),
        in_specs=[
            pl.BlockSpec((None, NP, CPP), lambda b: (b, 0, 0)),
            pl.BlockSpec((CPP, DIM), lambda b: (0, 0)),
            pl.BlockSpec((1, DIM), lambda b: (0, 0)),
            pl.BlockSpec((1, DIM), lambda b: (0, 0)),
            pl.BlockSpec((S, DIM), lambda b: (0, 0)),
        ],
        out_specs=pl.BlockSpec((None, S_pad, DIM), lambda b: (b, 0, 0)),
        compiler_params=pltpu.CompilerParams(dimension_semantics=("parallel",)),
    )(patches, params["patch_w"], params["patch_b"], params["cls"], params["pos"])

    # ---- kernel 2: entire transformer stack in ONE pallas_call ---------------
    def per_layer(*shape):
        n = len(shape)
        # NOTE: on v5e, add pipeline_mode=pl.Buffered(3) to the big weight specs to
        # deepen the (bf16) per-layer weight pipeline.
        return pl.BlockSpec((None,) + shape, lambda b, d, n=n: (d,) + (0,) * n)

    def resident(*shape):
        n = len(shape)
        return pl.BlockSpec(shape, lambda b, d, n=n: (0,) * n)

    kernel = functools.partial(_vit_layers_kernel, Bblk=Bblk, S=S, S_pad=S_pad,
                               H=HEADS, DH=DH, D=DIM)
    logits3 = pl.pallas_call(
        kernel,
        grid=(BB, DEPTH),
        out_shape=jax.ShapeDtypeStruct((B, 1, NUM_CLASSES), jnp.float32),
        in_specs=[
            pl.BlockSpec((Bblk, S_pad, DIM), lambda b, d: (b, 0, 0)),  # tok0
            per_layer(HEADS, DIM, DH),       # wq   (bf16, head-major)
            per_layer(HEADS, DIM, DH),       # wk   (bf16)
            per_layer(HEADS, DIM, DH),       # wv   (bf16)
            per_layer(3 * HEADS, 1, DH),     # qkv bias (head-major, f32)
            per_layer(HEADS, DH, DIM),       # proj weight (bf16, head-major input)
            per_layer(DIM, MLP_DIM),         # fc1 weight (bf16)
            per_layer(1, MLP_DIM),           # fc1 bias
            per_layer(MLP_DIM, DIM),         # fc2 weight (bf16)
            per_layer(8, DIM),               # packed ln1/ln2/proj_b/fc2_b
            resident(1, DIM),                # final LN gamma
            resident(1, DIM),                # final LN beta
            resident(DIM, NUM_CLASSES),      # head weight (bf16)
            resident(1, NUM_CLASSES),        # head bias
        ],
        out_specs=pl.BlockSpec((Bblk, 1, NUM_CLASSES), lambda b, d: (b, 0, 0)),
        scratch_shapes=[pltpu.VMEM((Bblk, S_pad, DIM), jnp.float32)],  # resident tokens
        compiler_params=pltpu.CompilerParams(
            # batch-block axis is parallel (megacore / v7x dual-TC); depth axis MUST
            # stay "arbitrary" — the token scratch carries state across it.
            dimension_semantics=("parallel", "arbitrary"),
            # budget for bf16 double-buffered per-layer weights at ViT-Base scale;
            # fits v7x's 64 MiB physical VMEM with headroom.
            vmem_limit_bytes=48 * 1024 * 1024),
    )(tok0, params["wq"], params["wk"], params["wv"], params["qkv_b"],
      params["wp"], params["fc1_w"], params["fc1_b"], params["fc2_w"],
      params["small"], params["lnf_g"], params["lnf_b"],
      params["head_w"], params["head_b"])
    return logits3[:, 0, :]


# TODO(synk): the 'GPT-Neo' / LoRA (peft) branch loads pretrained HF weights and
# has no clean self-contained Pallas equivalent; only the build_llm_model (ViT)
# branch is implemented here with deterministic synthetic weights.

if __name__ == "__main__":
    key = jax.random.PRNGKey(0)
    pkey, xkey = jax.random.split(key)
    params = init_params(pkey)
    x = jax.random.normal(xkey, (BATCH, IN_CH, IMG, IMG), jnp.float32)

    fwd = jax.jit(foundationmodel_forward)
    logits = fwd(x, params)
    jax.block_until_ready(logits)
    assert logits.shape == (BATCH, NUM_CLASSES)
    assert bool(jnp.all(jnp.isfinite(logits)))
    print("KERNEL_OK")
</pallas_src>

<mosaic_0001>
module attributes {stable_mosaic.version = 11 : i64} {
  func.func @_patch_embed_kernel(%arg0: i32, %arg1: memref<1x4x768xbf16, #tpu.memory_space<vmem>>, %arg2: memref<768x32xbf16, #tpu.memory_space<vmem>>, %arg3: memref<1x32xf32, #tpu.memory_space<vmem>>, %arg4: memref<1x32xf32, #tpu.memory_space<vmem>>, %arg5: memref<5x32xf32, #tpu.memory_space<vmem>>, %arg6: memref<1x8x32xf32, #tpu.memory_space<vmem>>) attributes {dimension_semantics = [#tpu.dimension_semantics<parallel>], iteration_bounds = array<i64: 2>, scalar_prefetch = 0 : i64, scratch_operands = 0 : i64, tpu.core_type = #tpu.core_type<tc>, window_params = [{transform_indices = @transform_0, window_bounds = array<i64: 1, 4, 768>}, {pipeline_mode = #tpu.pipeline_mode<synchronous>, transform_indices = @transform_1, window_bounds = array<i64: 768, 32>}, {pipeline_mode = #tpu.pipeline_mode<synchronous>, transform_indices = @transform_2, window_bounds = array<i64: 1, 32>}, {pipeline_mode = #tpu.pipeline_mode<synchronous>, transform_indices = @transform_3, window_bounds = array<i64: 1, 32>}, {pipeline_mode = #tpu.pipeline_mode<synchronous>, transform_indices = @transform_4, window_bounds = array<i64: 5, 32>}, {transform_indices = @transform_5, window_bounds = array<i64: 1, 8, 32>}]} {
    %c0 = arith.constant 0 : index
    %c0_0 = arith.constant 0 : index
    %c0_1 = arith.constant 0 : index
    %0 = vector.load %arg1[%c0, %c0_0, %c0_1] : memref<1x4x768xbf16, #tpu.memory_space<vmem>>, vector<1x4x768xbf16>
    %1 = vector.shape_cast %0 : vector<1x4x768xbf16> to vector<4x768xbf16>
    %c0_2 = arith.constant 0 : index
    %c0_3 = arith.constant 0 : index
    %2 = vector.load %arg2[%c0_2, %c0_3] : memref<768x32xbf16, #tpu.memory_space<vmem>>, vector<768x32xbf16>
    %cst = arith.constant dense<0.000000e+00> : vector<4x32xf32>
    %3 = tpu.matmul %1, %2, %cst {dimension_numbers = #tpu.dot_dimension_numbers<[1], [0], [0], [1], [0, 0, 1, 1], [], []>} : vector<4x768xbf16>, vector<768x32xbf16>, vector<4x32xf32> -> vector<4x32xf32>
    %c0_4 = arith.constant 0 : index
    %c0_5 = arith.constant 0 : index
    %4 = vector.load %arg3[%c0_4, %c0_5] : memref<1x32xf32, #tpu.memory_space<vmem>>, vector<1x32xf32>
    %5 = vector.broadcast %4 : vector<1x32xf32> to vector<4x32xf32>
    %6 = arith.addf %3, %5 : vector<4x32xf32>
    %c0_6 = arith.constant 0 : index
    %c0_7 = arith.constant 0 : index
    %7 = vector.load %arg4[%c0_6, %c0_7] : memref<1x32xf32, #tpu.memory_space<vmem>>, vector<1x32xf32>
    %c0_8 = arith.constant 0 : index
    %c0_9 = arith.constant 0 : index
    %8 = vector.load %arg5[%c0_8, %c0_9] : memref<5x32xf32, #tpu.memory_space<vmem>>, vector<1x32xf32>
    %9 = arith.addf %7, %8 : vector<1x32xf32>
    %c0_10 = arith.constant 0 : index
    %c0_11 = arith.constant 0 : index
    %c0_12 = arith.constant 0 : index
    %10 = vector.load %arg6[%c0_10, %c0_11, %c0_12] : memref<1x8x32xf32, #tpu.memory_space<vmem>>, vector<1x1x32xf32>
    %11 = vector.shape_cast %10 : vector<1x1x32xf32> to vector<1x32xf32>
    %12 = vector.shape_cast %9 : vector<1x32xf32> to vector<1x1x32xf32>
    tpu.vector_store %arg6[%c0_10, %c0_11, %c0_12], %12 {strides = array<i32>} : memref<1x8x32xf32, #tpu.memory_space<vmem>>, vector<1x1x32xf32>,
    %c1 = arith.constant 1 : index
    %c0_13 = arith.constant 0 : index
    %13 = vector.load %arg5[%c1, %c0_13] : memref<5x32xf32, #tpu.memory_space<vmem>>, vector<4x32xf32>
    %14 = arith.addf %6, %13 : vector<4x32xf32>
    %c0_14 = arith.constant 0 : index
    %c1_15 = arith.constant 1 : index
    %c0_16 = arith.constant 0 : index
    %15 = vector.load %arg6[%c0_14, %c1_15, %c0_16] : memref<1x8x32xf32, #tpu.memory_space<vmem>>, vector<1x4x32xf32>
    %16 = vector.shape_cast %15 : vector<1x4x32xf32> to vector<4x32xf32>
    %17 = vector.shape_cast %14 : vector<4x32xf32> to vector<1x4x32xf32>
    tpu.vector_store %arg6[%c0_14, %c1_15, %c0_16], %17 {strides = array<i32>} : memref<1x8x32xf32, #tpu.memory_space<vmem>>, vector<1x4x32xf32>,
    %cst_17 = arith.constant 0.000000e+00 : f32
    %18 = vector.broadcast %cst_17 : f32 to vector<3x32xf32>
    %c0_18 = arith.constant 0 : index
    %c5 = arith.constant 5 : index
    %c0_19 = arith.constant 0 : index
    %19 = vector.load %arg6[%c0_18, %c5, %c0_19] : memref<1x8x32xf32, #tpu.memory_space<vmem>>, vector<1x3x32xf32>
    %20 = vector.shape_cast %19 : vector<1x3x32xf32> to vector<3x32xf32>
    %21 = vector.shape_cast %18 : vector<3x32xf32> to vector<1x3x32xf32>
    tpu.vector_store %arg6[%c0_18, %c5, %c0_19], %21 {strides = array<i32>} : memref<1x8x32xf32, #tpu.memory_space<vmem>>, vector<1x3x32xf32>,
    return
  }
  func.func @transform_0(%arg0: i32) -> (i32, i32, i32) {
    %c0_i32 = arith.constant 0 : i32
    %c0_i32_0 = arith.constant 0 : i32
    %c0_i32_1 = arith.constant 0 : i32
    return %arg0, %c0_i32, %c0_i32_0 : i32, i32, i32
  }
  func.func @transform_1(%arg0: i32) -> (i32, i32) {
    %c0_i32 = arith.constant 0 : i32
    %c0_i32_0 = arith.constant 0 : i32
    %c0_i32_1 = arith.constant 0 : i32
    return %c0_i32, %c0_i32_0 : i32, i32
  }
  func.func @transform_2(%arg0: i32) -> (i32, i32) {
    %c0_i32 = arith.constant 0 : i32
    %c0_i32_0 = arith.constant 0 : i32
    %c0_i32_1 = arith.constant 0 : i32
    return %c0_i32, %c0_i32_0 : i32, i32
  }
  func.func @transform_3(%arg0: i32) -> (i32, i32) {
    %c0_i32 = arith.constant 0 : i32
    %c0_i32_0 = arith.constant 0 : i32
    %c0_i32_1 = arith.constant 0 : i32
    return %c0_i32, %c0_i32_0 : i32, i32
  }
  func.func @transform_4(%arg0: i32) -> (i32, i32) {
    %c0_i32 = arith.constant 0 : i32
    %c0_i32_0 = arith.constant 0 : i32
    %c0_i32_1 = arith.constant 0 : i32
    return %c0_i32, %c0_i32_0 : i32, i32
  }
  func.func @transform_5(%arg0: i32) -> (i32, i32, i32) {
    %c0_i32 = arith.constant 0 : i32
    %c0_i32_0 = arith.constant 0 : i32
    %c0_i32_1 = arith.constant 0 : i32
    return %arg0, %c0_i32, %c0_i32_0 : i32, i32, i32
  }
}

module attributes {stable_mosaic.version = 11 : i64} {
  func.func @_vit_layers_kernel(%arg0: i32, %arg1: i32, %arg2: memref<1x8x32xf32, #tpu.memory_space<vmem>>, %arg3: memref<1x2x32x16xbf16, #tpu.memory_space<vmem>>, %arg4: memref<1x2x32x16xbf16, #tpu.memory_space<vmem>>, %arg5: memref<1x2x32x16xbf16, #tpu.memory_space<vmem>>, %arg6: memref<1x6x1x16xf32, #tpu.memory_space<vmem>>, %arg7: memref<1x2x16x32xbf16, #tpu.memory_space<vmem>>, %arg8: memref<1x32x128xbf16, #tpu.memory_space<vmem>>, %arg9: memref<1x1x128xf32, #tpu.memory_space<vmem>>, %arg10: memref<1x128x32xbf16, #tpu.memory_space<vmem>>, %arg11: memref<1x8x32xf32, #tpu.memory_space<vmem>>, %arg12: memref<1x32xf32, #tpu.memory_space<vmem>>, %arg13: memref<1x32xf32, #tpu.memory_space<vmem>>, %arg14: memref<32x10xbf16, #tpu.memory_space<vmem>>, %arg15: memref<1x10xf32, #tpu.memory_space<vmem>>, %arg16: memref<1x1x10xf32, #tpu.memory_space<vmem>>, %arg17: memref<1x8x32xf32, #tpu.memory_space<vmem>>) attributes {dimension_semantics = [#tpu.dimension_semantics<parallel>, #tpu.dimension_semantics<arbitrary>], iteration_bounds = array<i64: 2, 2>, scalar_prefetch = 0 : i64, scratch_operands = 1 : i64, tpu.core_type = #tpu.core_type<tc>, window_params = [{transform_indices = @transform_0, window_bounds = array<i64: 1, 8, 32>}, {transform_indices = @transform_1, window_bounds = array<i64: 1, 2, 32, 16>}, {transform_indices = @transform_2, window_bounds = array<i64: 1, 2, 32, 16>}, {transform_indices = @transform_3, window_bounds = array<i64: 1, 2, 32, 16>}, {transform_indices = @transform_4, window_bounds = array<i64: 1, 6, 1, 16>}, {transform_indices = @transform_5, window_bounds = array<i64: 1, 2, 16, 32>}, {transform_indices = @transform_6, window_bounds = array<i64: 1, 32, 128>}, {transform_indices = @transform_7, window_bounds = array<i64: 1, 1, 128>}, {transform_indices = @transform_8, window_bounds = array<i64: 1, 128, 32>}, {transform_indices = @transform_9, window_bounds = array<i64: 1, 8, 32>}, {pipeline_mode = #tpu.pipeline_mode<synchronous>, transform_indices = @transform_10, window_bounds = array<i64: 1, 32>}, {pipeline_mode = #tpu.pipeline_mode<synchronous>, transform_indices = @transform_11, window_bounds = array<i64: 1, 32>}, {pipeline_mode = #tpu.pipeline_mode<synchronous>, transform_indices = @transform_12, window_bounds = array<i64: 32, 10>}, {pipeline_mode = #tpu.pipeline_mode<synchronous>, transform_indices = @transform_13, window_bounds = array<i64: 1, 10>}, {transform_indices = @transform_14, window_bounds = array<i64: 1, 1, 10>}]} {
    %c0_i32 = arith.constant 0 : i32
    %0 = arith.cmpi eq, %arg1, %c0_i32 : i32
    %1 = arith.extui %0 : i1 to i32
    %c0_i32_0 = arith.constant 0 : i32
    %2 = arith.cmpi ne, %1, %c0_i32_0 : i32
    scf.if %2 {
      %c0_83 = arith.constant 0 : index
      %c0_84 = arith.constant 0 : index
      %c0_85 = arith.constant 0 : index
      %148 = vector.load %arg2[%c0_83, %c0_84, %c0_85] : memref<1x8x32xf32, #tpu.memory_space<vmem>>, vector<1x8x32xf32>
      %c0_86 = arith.constant 0 : index
      %c0_87 = arith.constant 0 : index
      %c0_88 = arith.constant 0 : index
      %149 = vector.load %arg17[%c0_86, %c0_87, %c0_88] : memref<1x8x32xf32, #tpu.memory_space<vmem>>, vector<1x8x32xf32>
      tpu.vector_store %arg17[%c0_86, %c0_87, %c0_88], %148 {strides = array<i32>} : memref<1x8x32xf32, #tpu.memory_space<vmem>>, vector<1x8x32xf32>,
    } else {
    }
    %c0 = arith.constant 0 : index
    %c0_1 = arith.constant 0 : index
    %c0_2 = arith.constant 0 : index
    %3 = vector.load %arg17[%c0, %c0_1, %c0_2] : memref<1x8x32xf32, #tpu.memory_space<vmem>>, vector<1x8x32xf32>
    %4 = vector.shape_cast %3 : vector<1x8x32xf32> to vector<8x32xf32>
    %c0_3 = arith.constant 0 : index
    %c0_4 = arith.constant 0 : index
    %c0_5 = arith.constant 0 : index
    %5 = vector.load %arg11[%c0_3, %c0_4, %c0_5] : memref<1x8x32xf32, #tpu.memory_space<vmem>>, vector<1x1x32xf32>
    %6 = vector.shape_cast %5 : vector<1x1x32xf32> to vector<1x32xf32>
    %c0_6 = arith.constant 0 : index
    %c1 = arith.constant 1 : index
    %c0_7 = arith.constant 0 : index
    %7 = vector.load %arg11[%c0_6, %c1, %c0_7] : memref<1x8x32xf32, #tpu.memory_space<vmem>>, vector<1x1x32xf32>
    %8 = vector.shape_cast %7 : vector<1x1x32xf32> to vector<1x32xf32>
    %cst = arith.constant dense<0.000000e+00> : vector<8xf32>
    %9 = vector.multi_reduction <add>, %4, %cst [1] : vector<8x32xf32> to vector<8xf32>
    %10 = vector.shape_cast %9 : vector<8xf32> to vector<8x1xf32>
    %cst_8 = arith.constant 3.200000e+01 : f32
    %11 = vector.broadcast %cst_8 : f32 to vector<8x1xf32>
    %12 = arith.divf %10, %11 : vector<8x1xf32>
    %13 = vector.broadcast %12 : vector<8x1xf32> to vector<8x32xf32>
    %14 = arith.subf %4, %13 : vector<8x32xf32>
    %15 = arith.mulf %14, %14 : vector<8x32xf32>
    %cst_9 = arith.constant dense<0.000000e+00> : vector<8xf32>
    %16 = vector.multi_reduction <add>, %15, %cst_9 [1] : vector<8x32xf32> to vector<8xf32>
    %17 = vector.shape_cast %16 : vector<8xf32> to vector<8x1xf32>
    %cst_10 = arith.constant 3.200000e+01 : f32
    %18 = vector.broadcast %cst_10 : f32 to vector<8x1xf32>
    %19 = arith.divf %17, %18 : vector<8x1xf32>
    %cst_11 = arith.constant 9.99999997E-7 : f32
    %20 = vector.broadcast %cst_11 : f32 to vector<8x1xf32>
    %21 = arith.addf %19, %20 : vector<8x1xf32>
    %22 = math.rsqrt %21 : vector<8x1xf32>
    %23 = vector.broadcast %22 : vector<8x1xf32> to vector<8x32xf32>
    %24 = arith.mulf %14, %23 : vector<8x32xf32>
    %25 = vector.broadcast %6 : vector<1x32xf32> to vector<8x32xf32>
    %26 = arith.mulf %24, %25 : vector<8x32xf32>
    %27 = vector.broadcast %8 : vector<1x32xf32> to vector<8x32xf32>
    %28 = arith.addf %26, %27 : vector<8x32xf32>
    %29 = arith.truncf %28 : vector<8x32xf32> to vector<8x32xbf16>
    %30 = vector.shape_cast %29 : vector<8x32xbf16> to vector<1x8x32xbf16>
    %31 = vector.shape_cast %30 : vector<1x8x32xbf16> to vector<1x8x32xbf16>
    %32 = vector.broadcast %31 : vector<1x8x32xbf16> to vector<2x8x32xbf16>
    %c0_12 = arith.constant 0 : index
    %c0_13 = arith.constant 0 : index
    %c0_14 = arith.constant 0 : index
    %c0_15 = arith.constant 0 : index
    %33 = vector.load %arg6[%c0_12, %c0_13, %c0_14, %c0_15] : memref<1x6x1x16xf32, #tpu.memory_space<vmem>>, vector<1x2x1x16xf32>
    %34 = vector.shape_cast %33 : vector<1x2x1x16xf32> to vector<2x1x16xf32>
    %c0_16 = arith.constant 0 : index
    %c2 = arith.constant 2 : index
    %c0_17 = arith.constant 0 : index
    %c0_18 = arith.constant 0 : index
    %35 = vector.load %arg6[%c0_16, %c2, %c0_17, %c0_18] : memref<1x6x1x16xf32, #tpu.memory_space<vmem>>, vector<1x2x1x16xf32>
    %36 = vector.shape_cast %35 : vector<1x2x1x16xf32> to vector<2x1x16xf32>
    %c0_19 = arith.constant 0 : index
    %c4 = arith.constant 4 : index
    %c0_20 = arith.constant 0 : index
    %c0_21 = arith.constant 0 : index
    %37 = vector.load %arg6[%c0_19, %c4, %c0_20, %c0_21] : memref<1x6x1x16xf32, #tpu.memory_space<vmem>>, vector<1x2x1x16xf32>
    %38 = vector.shape_cast %37 : vector<1x2x1x16xf32> to vector<2x1x16xf32>
    %c0_22 = arith.constant 0 : index
    %c0_23 = arith.constant 0 : index
    %c0_24 = arith.constant 0 : index
    %c0_25 = arith.constant 0 : index
    %39 = vector.load %arg3[%c0_22, %c0_23, %c0_24, %c0_25] : memref<1x2x32x16xbf16, #tpu.memory_space<vmem>>, vector<1x2x32x16xbf16>
    %40 = vector.shape_cast %39 : vector<1x2x32x16xbf16> to vector<2x32x16xbf16>
    "tpu.trace_start"() <{level = 10 : i32, message = "hnd,hde->hne"}> : () -> ()
    %cst_26 = arith.constant dense<0.000000e+00> : vector<2x8x16xf32>
    %41 = tpu.matmul %32, %40, %cst_26 {dimension_numbers = #tpu.dot_dimension_numbers<[2], [1], [1], [2], [0, 0, 0, 1, 1, 2], [0], [0]>} : vector<2x8x32xbf16>, vector<2x32x16xbf16>, vector<2x8x16xf32> -> vector<2x8x16xf32>
    "tpu.trace_stop"() : () -> ()
    %42 = vector.broadcast %34 : vector<2x1x16xf32> to vector<2x8x16xf32>
    %43 = arith.addf %41, %42 : vector<2x8x16xf32>
    %cst_27 = arith.constant 2.500000e-01 : f32
    %44 = vector.broadcast %cst_27 : f32 to vector<2x8x16xf32>
    %45 = arith.mulf %43, %44 : vector<2x8x16xf32>
    %46 = arith.truncf %45 : vector<2x8x16xf32> to vector<2x8x16xbf16>
    %c0_28 = arith.constant 0 : index
    %c0_29 = arith.constant 0 : index
    %c0_30 = arith.constant 0 : index
    %c0_31 = arith.constant 0 : index
    %47 = vector.load %arg4[%c0_28, %c0_29, %c0_30, %c0_31] : memref<1x2x32x16xbf16, #tpu.memory_space<vmem>>, vector<1x2x32x16xbf16>
    %48 = vector.shape_cast %47 : vector<1x2x32x16xbf16> to vector<2x32x16xbf16>
    "tpu.trace_start"() <{level = 10 : i32, message = "hnd,hde->hne"}> : () -> ()
    %cst_32 = arith.constant dense<0.000000e+00> : vector<2x8x16xf32>
    %49 = tpu.matmul %32, %48, %cst_32 {dimension_numbers = #tpu.dot_dimension_numbers<[2], [1], [1], [2], [0, 0, 0, 1, 1, 2], [0], [0]>} : vector<2x8x32xbf16>, vector<2x32x16xbf16>, vector<2x8x16xf32> -> vector<2x8x16xf32>
    "tpu.trace_stop"() : () -> ()
    %50 = vector.broadcast %36 : vector<2x1x16xf32> to vector<2x8x16xf32>
    %51 = arith.addf %49, %50 : vector<2x8x16xf32>
    %52 = arith.truncf %51 : vector<2x8x16xf32> to vector<2x8x16xbf16>
    %c0_33 = arith.constant 0 : index
    %c0_34 = arith.constant 0 : index
    %c0_35 = arith.constant 0 : index
    %c0_36 = arith.constant 0 : index
    %53 = vector.load %arg5[%c0_33, %c0_34, %c0_35, %c0_36] : memref<1x2x32x16xbf16, #tpu.memory_space<vmem>>, vector<1x2x32x16xbf16>
    %54 = vector.shape_cast %53 : vector<1x2x32x16xbf16> to vector<2x32x16xbf16>
    "tpu.trace_start"() <{level = 10 : i32, message = "hnd,hde->hne"}> : () -> ()
    %cst_37 = arith.constant dense<0.000000e+00> : vector<2x8x16xf32>
    %55 = tpu.matmul %32, %54, %cst_37 {dimension_numbers = #tpu.dot_dimension_numbers<[2], [1], [1], [2], [0, 0, 0, 1, 1, 2], [0], [0]>} : vector<2x8x32xbf16>, vector<2x32x16xbf16>, vector<2x8x16xf32> -> vector<2x8x16xf32>
    "tpu.trace_stop"() : () -> ()
    %56 = vector.broadcast %38 : vector<2x1x16xf32> to vector<2x8x16xf32>
    %57 = arith.addf %55, %56 : vector<2x8x16xf32>
    %58 = arith.truncf %57 : vector<2x8x16xf32> to vector<2x8x16xbf16>
    "tpu.trace_start"() <{level = 10 : i32, message = "bqd,bkd->bqk"}> : () -> ()
    %cst_38 = arith.constant dense<0.000000e+00> : vector<2x8x8xf32>
    %59 = tpu.matmul %46, %52, %cst_38 {dimension_numbers = #tpu.dot_dimension_numbers<[2], [2], [1], [1], [0, 0, 0, 1, 1, 1], [0], [0]>} : vector<2x8x16xbf16>, vector<2x8x16xbf16>, vector<2x8x8xf32> -> vector<2x8x8xf32>
    "tpu.trace_stop"() : () -> ()
    %60 = tpu.iota {dimensions = array<i32: 2>} : vector<1x8x8xi32>
    %c5_i32 = arith.constant 5 : i32
    %61 = vector.broadcast %c5_i32 : i32 to vector<1x8x8xi32>
    %62 = arith.cmpi slt, %60, %61 : vector<1x8x8xi32>
    %cst_39 = arith.constant -1.000000e+30 : f32
    %63 = vector.shape_cast %62 : vector<1x8x8xi1> to vector<1x8x8xi1>
    %64 = vector.broadcast %63 : vector<1x8x8xi1> to vector<2x8x8xi1>
    %65 = vector.broadcast %cst_39 : f32 to vector<2x8x8xf32>
    %66 = arith.select %64, %59, %65 : vector<2x8x8xi1>, vector<2x8x8xf32>
    %cst_40 = arith.constant dense<0xFF800000> : vector<2x8xf32>
    %67 = vector.multi_reduction <maximumf>, %66, %cst_40 [2] : vector<2x8x8xf32> to vector<2x8xf32>
    %68 = vector.shape_cast %67 : vector<2x8xf32> to vector<2x8x1xf32>
    %69 = vector.broadcast %68 : vector<2x8x1xf32> to vector<2x8x8xf32>
    %70 = arith.subf %66, %69 : vector<2x8x8xf32>
    %71 = math.exp %70 : vector<2x8x8xf32>
    %cst_41 = arith.constant dense<0.000000e+00> : vector<2x8xf32>
    %72 = vector.multi_reduction <add>, %71, %cst_41 [2] : vector<2x8x8xf32> to vector<2x8xf32>
    %73 = vector.shape_cast %72 : vector<2x8xf32> to vector<2x8x1xf32>
    %74 = tpu.reciprocal %73 {approx = true} : vector<2x8x1xf32> -> vector<2x8x1xf32>
    %75 = vector.broadcast %74 : vector<2x8x1xf32> to vector<2x8x8xf32>
    %76 = arith.mulf %71, %75 : vector<2x8x8xf32>
    %77 = arith.truncf %76 : vector<2x8x8xf32> to vector<2x8x8xbf16>
    "tpu.trace_start"() <{level = 10 : i32, message = "bqk,bkd->bqd"}> : () -> ()
    %cst_42 = arith.constant dense<0.000000e+00> : vector<2x8x16xf32>
    %78 = tpu.matmul %77, %58, %cst_42 {dimension_numbers = #tpu.dot_dimension_numbers<[2], [1], [1], [2], [0, 0, 0, 1, 1, 2], [0], [0]>} : vector<2x8x8xbf16>, vector<2x8x16xbf16>, vector<2x8x16xf32> -> vector<2x8x16xf32>
    "tpu.trace_stop"() : () -> ()
    %79 = arith.truncf %78 : vector<2x8x16xf32> to vector<2x8x16xbf16>
    %c0_43 = arith.constant 0 : index
    %c0_44 = arith.constant 0 : index
    %c0_45 = arith.constant 0 : index
    %c0_46 = arith.constant 0 : index
    %80 = vector.load %arg7[%c0_43, %c0_44, %c0_45, %c0_46] : memref<1x2x16x32xbf16, #tpu.memory_space<vmem>>, vector<1x2x16x32xbf16>
    %81 = vector.shape_cast %80 : vector<1x2x16x32xbf16> to vector<2x16x32xbf16>
    "tpu.trace_start"() <{level = 10 : i32, message = "hnc,hcd->hnd"}> : () -> ()
    %cst_47 = arith.constant dense<0.000000e+00> : vector<2x8x32xf32>
    %82 = tpu.matmul %79, %81, %cst_47 {dimension_numbers = #tpu.dot_dimension_numbers<[2], [1], [1], [2], [0, 0, 0, 1, 1, 2], [0], [0]>} : vector<2x8x16xbf16>, vector<2x16x32xbf16>, vector<2x8x32xf32> -> vector<2x8x32xf32>
    "tpu.trace_stop"() : () -> ()
    %cst_48 = arith.constant dense<0.000000e+00> : vector<8x32xf32>
    %83 = vector.multi_reduction <add>, %82, %cst_48 [0] : vector<2x8x32xf32> to vector<8x32xf32>
    %84 = arith.addf %4, %83 : vector<8x32xf32>
    %c0_49 = arith.constant 0 : index
    %c4_50 = arith.constant 4 : index
    %c0_51 = arith.constant 0 : index
    %85 = vector.load %arg11[%c0_49, %c4_50, %c0_51] : memref<1x8x32xf32, #tpu.memory_space<vmem>>, vector<1x1x32xf32>
    %86 = vector.shape_cast %85 : vector<1x1x32xf32> to vector<1x32xf32>
    %87 = vector.broadcast %86 : vector<1x32xf32> to vector<8x32xf32>
    %88 = arith.addf %84, %87 : vector<8x32xf32>
    %c0_52 = arith.constant 0 : index
    %c2_53 = arith.constant 2 : index
    %c0_54 = arith.constant 0 : index
    %89 = vector.load %arg11[%c0_52, %c2_53, %c0_54] : memref<1x8x32xf32, #tpu.memory_space<vmem>>, vector<1x1x32xf32>
    %90 = vector.shape_cast %89 : vector<1x1x32xf32> to vector<1x32xf32>
    %c0_55 = arith.constant 0 : index
    %c3 = arith.constant 3 : index
    %c0_56 = arith.constant 0 : index
    %91 = vector.load %arg11[%c0_55, %c3, %c0_56] : memref<1x8x32xf32, #tpu.memory_space<vmem>>, vector<1x1x32xf32>
    %92 = vector.shape_cast %91 : vector<1x1x32xf32> to vector<1x32xf32>
    %cst_57 = arith.constant dense<0.000000e+00> : vector<8xf32>
    %93 = vector.multi_reduction <add>, %88, %cst_57 [1] : vector<8x32xf32> to vector<8xf32>
    %94 = vector.shape_cast %93 : vector<8xf32> to vector<8x1xf32>
    %cst_58 = arith.constant 3.200000e+01 : f32
    %95 = vector.broadcast %cst_58 : f32 to vector<8x1xf32>
    %96 = arith.divf %94, %95 : vector<8x1xf32>
    %97 = vector.broadcast %96 : vector<8x1xf32> to vector<8x32xf32>
    %98 = arith.subf %88, %97 : vector<8x32xf32>
    %99 = arith.mulf %98, %98 : vector<8x32xf32>
    %cst_59 = arith.constant dense<0.000000e+00> : vector<8xf32>
    %100 = vector.multi_reduction <add>, %99, %cst_59 [1] : vector<8x32xf32> to vector<8xf32>
    %101 = vector.shape_cast %100 : vector<8xf32> to vector<8x1xf32>
    %cst_60 = arith.constant 3.200000e+01 : f32
    %102 = vector.broadcast %cst_60 : f32 to vector<8x1xf32>
    %103 = arith.divf %101, %102 : vector<8x1xf32>
    %cst_61 = arith.constant 9.99999997E-7 : f32
    %104 = vector.broadcast %cst_61 : f32 to vector<8x1xf32>
    %105 = arith.addf %103, %104 : vector<8x1xf32>
    %106 = math.rsqrt %105 : vector<8x1xf32>
    %107 = vector.broadcast %106 : vector<8x1xf32> to vector<8x32xf32>
    %108 = arith.mulf %98, %107 : vector<8x32xf32>
    %109 = vector.broadcast %90 : vector<1x32xf32> to vector<8x32xf32>
    %110 = arith.mulf %108, %109 : vector<8x32xf32>
    %111 = vector.broadcast %92 : vector<1x32xf32> to vector<8x32xf32>
    %112 = arith.addf %110, %111 : vector<8x32xf32>
    %113 = arith.truncf %112 : vector<8x32xf32> to vector<8x32xbf16>
    %c0_62 = arith.constant 0 : index
    %c0_63 = arith.constant 0 : index
    %c0_64 = arith.constant 0 : index
    %114 = vector.load %arg8[%c0_62, %c0_63, %c0_64] : memref<1x32x128xbf16, #tpu.memory_space<vmem>>, vector<1x32x128xbf16>
    %115 = vector.shape_cast %114 : vector<1x32x128xbf16> to vector<32x128xbf16>
    %cst_65 = arith.constant dense<0.000000e+00> : vector<8x128xf32>
    %116 = tpu.matmul %113, %115, %cst_65 {dimension_numbers = #tpu.dot_dimension_numbers<[1], [0], [0], [1], [0, 0, 1, 1], [], []>} : vector<8x32xbf16>, vector<32x128xbf16>, vector<8x128xf32> -> vector<8x128xf32>
    %c0_66 = arith.constant 0 : index
    %c0_67 = arith.constant 0 : index
    %c0_68 = arith.constant 0 : index
    %117 = vector.load %arg9[%c0_66, %c0_67, %c0_68] : memref<1x1x128xf32, #tpu.memory_space<vmem>>, vector<1x1x128xf32>
    %118 = vector.shape_cast %117 : vector<1x1x128xf32> to vector<1x128xf32>
    %119 = vector.broadcast %118 : vector<1x128xf32> to vector<8x128xf32>
    %120 = arith.addf %116, %119 : vector<8x128xf32>
    %cst_69 = arith.constant 5.000000e-01 : f32
    %121 = vector.broadcast %cst_69 : f32 to vector<8x128xf32>
    %122 = arith.mulf %121, %120 : vector<8x128xf32>
    %cst_70 = arith.constant 4.471500e-02 : f32
    %123 = vector.broadcast %cst_70 : f32 to vector<8x128xf32>
    %124 = arith.mulf %123, %120 : vector<8x128xf32>
    %125 = arith.mulf %124, %120 : vector<8x128xf32>
    %126 = arith.mulf %125, %120 : vector<8x128xf32>
    %127 = arith.addf %120, %126 : vector<8x128xf32>
    %cst_71 = arith.constant 0.797884583 : f32
    %128 = vector.broadcast %cst_71 : f32 to vector<8x128xf32>
    %129 = arith.mulf %128, %127 : vector<8x128xf32>
    %130 = math.tanh %129 : vector<8x128xf32>
    %cst_72 = arith.constant 1.000000e+00 : f32
    %131 = vector.broadcast %cst_72 : f32 to vector<8x128xf32>
    %132 = arith.addf %131, %130 : vector<8x128xf32>
    %133 = arith.mulf %122, %132 : vector<8x128xf32>
    %134 = arith.truncf %133 : vector<8x128xf32> to vector<8x128xbf16>
    %c0_73 = arith.constant 0 : index
    %c0_74 = arith.constant 0 : index
    %c0_75 = arith.constant 0 : index
    %135 = vector.load %arg10[%c0_73, %c0_74, %c0_75] : memref<1x128x32xbf16, #tpu.memory_space<vmem>>, vector<1x128x32xbf16>
    %136 = vector.shape_cast %135 : vector<1x128x32xbf16> to vector<128x32xbf16>
    %cst_76 = arith.constant dense<0.000000e+00> : vector<8x32xf32>
    %137 = tpu.matmul %134, %136, %cst_76 {dimension_numbers = #tpu.dot_dimension_numbers<[1], [0], [0], [1], [0, 0, 1, 1], [], []>} : vector<8x128xbf16>, vector<128x32xbf16>, vector<8x32xf32> -> vector<8x32xf32>
    %c0_77 = arith.constant 0 : index
    %c5 = arith.constant 5 : index
    %c0_78 = arith.constant 0 : index
    %138 = vector.load %arg11[%c0_77, %c5, %c0_78] : memref<1x8x32xf32, #tpu.memory_space<vmem>>, vector<1x1x32xf32>
    %139 = vector.shape_cast %138 : vector<1x1x32xf32> to vector<1x32xf32>
    %140 = vector.broadcast %139 : vector<1x32xf32> to vector<8x32xf32>
    %141 = arith.addf %137, %140 : vector<8x32xf32>
    %142 = arith.addf %88, %141 : vector<8x32xf32>
    %143 = vector.shape_cast %142 : vector<8x32xf32> to vector<1x8x32xf32>
    %c0_79 = arith.constant 0 : index
    %c0_80 = arith.constant 0 : index
    %c0_81 = arith.constant 0 : index
    %144 = vector.load %arg17[%c0_79, %c0_80, %c0_81] : memref<1x8x32xf32, #tpu.memory_space<vmem>>, vector<1x8x32xf32>
    tpu.vector_store %arg17[%c0_79, %c0_80, %c0_81], %143 {strides = array<i32>} : memref<1x8x32xf32, #tpu.memory_space<vmem>>, vector<1x8x32xf32>,
    %c1_i32 = arith.constant 1 : i32
    %145 = arith.cmpi eq, %arg1, %c1_i32 : i32
    %146 = arith.extui %145 : i1 to i32
    %c0_i32_82 = arith.constant 0 : i32
    %147 = arith.cmpi ne, %146, %c0_i32_82 : i32
    scf.if %147 {
      %c0_83 = arith.constant 0 : index
      %c0_84 = arith.constant 0 : index
      %c0_85 = arith.constant 0 : index
      %148 = vector.load %arg17[%c0_83, %c0_84, %c0_85] : memref<1x8x32xf32, #tpu.memory_space<vmem>>, vector<1x1x32xf32>
      %c0_86 = arith.constant 0 : index
      %c0_87 = arith.constant 0 : index
      %149 = vector.load %arg12[%c0_86, %c0_87] : memref<1x32xf32, #tpu.memory_space<vmem>>, vector<1x32xf32>
      %c0_88 = arith.constant 0 : index
      %c0_89 = arith.constant 0 : index
      %150 = vector.load %arg13[%c0_88, %c0_89] : memref<1x32xf32, #tpu.memory_space<vmem>>, vector<1x32xf32>
      %cst_90 = arith.constant dense<0.000000e+00> : vector<1x1xf32>
      %151 = vector.multi_reduction <add>, %148, %cst_90 [2] : vector<1x1x32xf32> to vector<1x1xf32>
      %152 = vector.shape_cast %151 : vector<1x1xf32> to vector<1x1x1xf32>
      %cst_91 = arith.constant 3.200000e+01 : f32
      %153 = vector.broadcast %cst_91 : f32 to vector<1x1x1xf32>
      %154 = arith.divf %152, %153 : vector<1x1x1xf32>
      %155 = vector.broadcast %154 : vector<1x1x1xf32> to vector<1x1x32xf32>
      %156 = arith.subf %148, %155 : vector<1x1x32xf32>
      %157 = arith.mulf %156, %156 : vector<1x1x32xf32>
      %cst_92 = arith.constant dense<0.000000e+00> : vector<1x1xf32>
      %158 = vector.multi_reduction <add>, %157, %cst_92 [2] : vector<1x1x32xf32> to vector<1x1xf32>
      %159 = vector.shape_cast %158 : vector<1x1xf32> to vector<1x1x1xf32>
      %cst_93 = arith.constant 3.200000e+01 : f32
      %160 = vector.broadcast %cst_93 : f32 to vector<1x1x1xf32>
      %161 = arith.divf %159, %160 : vector<1x1x1xf32>
      %cst_94 = arith.constant 9.99999997E-7 : f32
      %162 = vector.broadcast %cst_94 : f32 to vector<1x1x1xf32>
      %163 = arith.addf %161, %162 : vector<1x1x1xf32>
      %164 = math.rsqrt %163 : vector<1x1x1xf32>
      %165 = vector.broadcast %164 : vector<1x1x1xf32> to vector<1x1x32xf32>
      %166 = arith.mulf %156, %165 : vector<1x1x32xf32>
      %167 = vector.shape_cast %149 : vector<1x32xf32> to vector<1x1x32xf32>
      %168 = arith.mulf %166, %167 : vector<1x1x32xf32>
      %169 = vector.shape_cast %150 : vector<1x32xf32> to vector<1x1x32xf32>
      %170 = arith.addf %168, %169 : vector<1x1x32xf32>
      %171 = arith.truncf %170 : vector<1x1x32xf32> to vector<1x1x32xbf16>
      %c0_95 = arith.constant 0 : index
      %c0_96 = arith.constant 0 : index
      %172 = vector.load %arg14[%c0_95, %c0_96] : memref<32x10xbf16, #tpu.memory_space<vmem>>, vector<32x10xbf16>
      %173 = vector.shape_cast %172 : vector<32x10xbf16> to vector<1x32x10xbf16>
      "tpu.trace_start"() <{level = 10 : i32, message = "bsd,bdc->bsc"}> : () -> ()
      %cst_97 = arith.constant dense<0.000000e+00> : vector<1x1x10xf32>
      %174 = tpu.matmul %171, %173, %cst_97 {dimension_numbers = #tpu.dot_dimension_numbers<[2], [1], [1], [2], [0, 0, 0, 1, 1, 2], [0], [0]>} : vector<1x1x32xbf16>, vector<1x32x10xbf16>, vector<1x1x10xf32> -> vector<1x1x10xf32>
      "tpu.trace_stop"() : () -> ()
      %c0_98 = arith.constant 0 : index
      %c0_99 = arith.constant 0 : index
      %175 = vector.load %arg15[%c0_98, %c0_99] : memref<1x10xf32, #tpu.memory_space<vmem>>, vector<1x10xf32>
      %176 = vector.shape_cast %175 : vector<1x10xf32> to vector<1x1x10xf32>
      %177 = arith.addf %174, %176 : vector<1x1x10xf32>
      %c0_100 = arith.constant 0 : index
      %c0_101 = arith.constant 0 : index
      %c0_102 = arith.constant 0 : index
      %178 = vector.load %arg16[%c0_100, %c0_101, %c0_102] : memref<1x1x10xf32, #tpu.memory_space<vmem>>, vector<1x1x10xf32>
      tpu.vector_store %arg16[%c0_100, %c0_101, %c0_102], %177 {strides = array<i32>} : memref<1x1x10xf32, #tpu.memory_space<vmem>>, vector<1x1x10xf32>,
    } else {
    }
    return
  }
  func.func @transform_0(%arg0: i32, %arg1: i32) -> (i32, i32, i32) {
    %c0_i32 = arith.constant 0 : i32
    %c0_i32_0 = arith.constant 0 : i32
    %c0_i32_1 = arith.constant 0 : i32
    return %arg0, %c0_i32, %c0_i32_0 : i32, i32, i32
  }
  func.func @transform_1(%arg0: i32, %arg1: i32) -> (i32, i32, i32, i32) {
    %c0_i32 = arith.constant 0 : i32
    %c0_i32_0 = arith.constant 0 : i32
    %c0_i32_1 = arith.constant 0 : i32
    %c0_i32_2 = arith.constant 0 : i32
    return %arg1, %c0_i32, %c0_i32_0, %c0_i32_1 : i32, i32, i32, i32
  }
  func.func @transform_2(%arg0: i32, %arg1: i32) -> (i32, i32, i32, i32) {
    %c0_i32 = arith.constant 0 : i32
    %c0_i32_0 = arith.constant 0 : i32
    %c0_i32_1 = arith.constant 0 : i32
    %c0_i32_2 = arith.constant 0 : i32
    return %arg1, %c0_i32, %c0_i32_0, %c0_i32_1 : i32, i32, i32, i32
  }
  func.func @transform_3(%arg0: i32, %arg1: i32) -> (i32, i32, i32, i32) {
    %c0_i32 = arith.constant 0 : i32
    %c0_i32_0 = arith.constant 0 : i32
    %c0_i32_1 = arith.constant 0 : i32
    %c0_i32_2 = arith.constant 0 : i32
    return %arg1, %c0_i32, %c0_i32_0, %c0_i32_1 : i32, i32, i32, i32
  }
  func.func @transform_4(%arg0: i32, %arg1: i32) -> (i32, i32, i32, i32) {
    %c0_i32 = arith.constant 0 : i32
    %c0_i32_0 = arith.constant 0 : i32
    %c0_i32_1 = arith.constant 0 : i32
    %c0_i32_2 = arith.constant 0 : i32
    return %arg1, %c0_i32, %c0_i32_0, %c0_i32_1 : i32, i32, i32, i32
  }
  func.func @transform_5(%arg0: i32, %arg1: i32) -> (i32, i32, i32, i32) {
    %c0_i32 = arith.constant 0 : i32
    %c0_i32_0 = arith.constant 0 : i32
    %c0_i32_1 = arith.constant 0 : i32
    %c0_i32_2 = arith.constant 0 : i32
    return %arg1, %c0_i32, %c0_i32_0, %c0_i32_1 : i32, i32, i32, i32
  }
  func.func @transform_6(%arg0: i32, %arg1: i32) -> (i32, i32, i32) {
    %c0_i32 = arith.constant 0 : i32
    %c0_i32_0 = arith.constant 0 : i32
    %c0_i32_1 = arith.constant 0 : i32
    return %arg1, %c0_i32, %c0_i32_0 : i32, i32, i32
  }
  func.func @transform_7(%arg0: i32, %arg1: i32) -> (i32, i32, i32) {
    %c0_i32 = arith.constant 0 : i32
    %c0_i32_0 = arith.constant 0 : i32
    %c0_i32_1 = arith.constant 0 : i32
    return %arg1, %c0_i32, %c0_i32_0 : i32, i32, i32
  }
  func.func @transform_8(%arg0: i32, %arg1: i32) -> (i32, i32, i32) {
    %c0_i32 = arith.constant 0 : i32
    %c0_i32_0 = arith.constant 0 : i32
    %c0_i32_1 = arith.constant 0 : i32
    return %arg1, %c0_i32, %c0_i32_0 : i32, i32, i32
  }
  func.func @transform_9(%arg0: i32, %arg1: i32) -> (i32, i32, i32) {
    %c0_i32 = arith.constant 0 : i32
    %c0_i32_0 = arith.constant 0 : i32
    %c0_i32_1 = arith.constant 0 : i32
    return %arg1, %c0_i32, %c0_i32_0 : i32, i32, i32
  }
  func.func @transform_10(%arg0: i32, %arg1: i32) -> (i32, i32) {
    %c0_i32 = arith.constant 0 : i32
    %c0_i32_0 = arith.constant 0 : i32
    %c0_i32_1 = arith.constant 0 : i32
    return %c0_i32, %c0_i32_0 : i32, i32
  }
  func.func @transform_11(%arg0: i32, %arg1: i32) -> (i32, i32) {
    %c0_i32 = arith.constant 0 : i32
    %c0_i32_0 = arith.constant 0 : i32
    %c0_i32_1 = arith.constant 0 : i32
    return %c0_i32, %c0_i32_0 : i32, i32
  }
  func.func @transform_12(%arg0: i32, %arg1: i32) -> (i32, i32) {
    %c0_i32 = arith.constant 0 : i32
    %c0_i32_0 = arith.constant 0 : i32
    %c0_i32_1 = arith.constant 0 : i32
    return %c0_i32, %c0_i32_0 : i32, i32
  }
  func.func @transform_13(%arg0: i32, %arg1: i32) -> (i32, i32) {
    %c0_i32 = arith.constant 0 : i32
    %c0_i32_0 = arith.constant 0 : i32
    %c0_i32_1 = arith.constant 0 : i32
    return %c0_i32, %c0_i32_0 : i32, i32
  }
  func.func @transform_14(%arg0: i32, %arg1: i32) -> (i32, i32, i32) {
    %c0_i32 = arith.constant 0 : i32
    %c0_i32_0 = arith.constant 0 : i32
    %c0_i32_1 = arith.constant 0 : i32
    return %arg0, %c0_i32, %c0_i32_0 : i32, i32, i32
  }
}

</mosaic_0001>

<llo_original>
// kernel: foundationmodel_forward.2
$region0: #{foundationmodel_forward.2}
  #allocation0 [shape = 'u32[]', space=smem, size = 0x4, offset = 0x4, fixed_abs, tag = 'smem constant byte address 0x4 - core index']
  #allocation1 [shape = 'u32[144,128]{1,0:T(1,128)}', space=vmem, size = 0x12000, scoped, tag = 'internal scratch']
  %s0 = inlined_call_operand.vmem [shape: bf16[2,4,768], index: 0, kind: input, shape index: {}]
  %s1 = inlined_call_operand.vmem [shape: bf16[768,32], index: 1, kind: input, shape index: {}]
  %s2 = inlined_call_operand.vmem [shape: f32[1,32], index: 2, kind: input, shape index: {}]
  %s3 = inlined_call_operand.vmem [shape: f32[1,32], index: 3, kind: input, shape index: {}]
  %s4 = inlined_call_operand.vmem [shape: f32[5,32], index: 4, kind: input, shape index: {}]
  %s5 = inlined_call_operand.vmem [shape: f32[2,8,32], index: 5, kind: output, shape index: {}]
  %s6 = sld [smem:[#allocation0]]
  $region53: #{foundationmodel_forward.2} parent=0
    _
  %s8 = ssub.s32 1, %s6
  %s9 = scalar_select 0, %s8, %s6
  loop: start=0, step=1, limit=4
  $region2: #{foundationmodel_forward.2} parent=0 // loop_pre_header
    _
  $region3: #{foundationmodel_forward.2} parent=0 // loop_header
    %s11 = sphi 0, %s15
    %p12 = scmp.ge.s32.totalorder %s11, 4
    %s21 = sphi 0, %s23
    %s24 = sphi 0, %s21
    %s25 = sphi 0, %s24
    %s41 = sphi 0, %s25
    %s45 = sphi 0, %s45
    %s47 = sphi 0, %s45
    %s48 = sphi 0, %s47
    %s62 = sphi 0, %s48
    %s66 = sphi 0, %s66
    %s68 = sphi 0, %s66
    %s69 = sphi 0, %s68
    %s83 = sphi 0, %s69
    %s87 = sphi 0, %s87
    %s89 = sphi 0, %s87
    %s90 = sphi 0, %s89
    %s104 = sphi 0, %s90
    %s108 = sphi 0, %s108
    %s110 = sphi 0, %s108
    %s111 = sphi 0, %s110
    %s125 = sphi 0, %s111
    %s131 = sphi 0, %s133
    %s134 = sphi 0, %s131
    %s135 = sphi 0, %s134
    %s151 = sphi 0, %s135
  $region4: #{foundationmodel_forward.2} parent=0 // loop_header_branch
    %14 = sbr.rel (%p12) target = $region8
  $region5: #{foundationmodel_forward.2} parent=0 // loop_body
    %s16 = ssub.s32 %s11, 1
    %s17 = ssub.s32 %s11, 2
    %s18 = sadd.s32 %s11, 1
    %s19 = ssub.s32 %s11, %s18
    %p20 = scmp.eq.s32.totalorder %s19, 0
    %s22 = sadd.s32 %s21, 1
    %s23 = scalar_select %p20, %s21, %s22
    %p26 = pneg %p20
    %p27 = scmp.eq.s32.totalorder %s11, 1
    %p28 = por %p26, %p27
    %p29 = scmp.ne.s32.totalorder %s21, %s24
    %p30 = scmp.eq.s32.totalorder %s11, 0
    %p31 = por %p29, %p30
    %p32 = scmp.ne.s32.totalorder %s21, %s24
    %p33 = scmp.eq.s32.totalorder %s16, 1
    %p34 = por %p32, %p33
    %p35 = scmp.ne.s32.totalorder %s24, %s25
    %p36 = scmp.eq.s32.totalorder %s16, 0
    %p37 = por %p35, %p36
    %p38 = scmp.ne.s32.totalorder %s24, %s25
    %p39 = scmp.eq.s32.totalorder %s17, 1
    %p40 = por %p38, %p39
    %p42 = scmp.ne.s32.totalorder %s25, %s41
    %p43 = scmp.eq.s32.totalorder %s17, 0
    %p44 = por %p42, %p43
    %s46 = sadd.s32 %s45, 1
    %p49 = scmp.eq.s32.totalorder %s11, 1
    %p50 = scmp.ne.s32.totalorder %s45, %s47
    %p51 = scmp.eq.s32.totalorder %s11, 0
    %p52 = por %p50, %p51
    %p53 = scmp.ne.s32.totalorder %s45, %s47
    %p54 = scmp.eq.s32.totalorder %s16, 1
    %p55 = por %p53, %p54
    %p56 = scmp.ne.s32.totalorder %s47, %s48
    %p57 = scmp.eq.s32.totalorder %s16, 0
    %p58 = por %p56, %p57
    %p59 = scmp.ne.s32.totalorder %s47, %s48
    %p60 = scmp.eq.s32.totalorder %s17, 1
    %p61 = por %p59, %p60
    %p63 = scmp.ne.s32.totalorder %s48, %s62
    %p64 = scmp.eq.s32.totalorder %s17, 0
    %p65 = por %p63, %p64
    %s67 = sadd.s32 %s66, 1
    %p70 = scmp.eq.s32.totalorder %s11, 1
    %p71 = scmp.ne.s32.totalorder %s66, %s68
    %p72 = scmp.eq.s32.totalorder %s11, 0
    %p73 = por %p71, %p72
    %p74 = scmp.ne.s32.totalorder %s66, %s68
    %p75 = scmp.eq.s32.totalorder %s16, 1
    %p76 = por %p74, %p75
    %p77 = scmp.ne.s32.totalorder %s68, %s69
    %p78 = scmp.eq.s32.totalorder %s16, 0
    %p79 = por %p77, %p78
    %p80 = scmp.ne.s32.totalorder %s68, %s69
    %p81 = scmp.eq.s32.totalorder %s17, 1
    %p82 = por %p80, %p81
    %p84 = scmp.ne.s32.totalorder %s69, %s83
    %p85 = scmp.eq.s32.totalorder %s17, 0
    %p86 = por %p84, %p85
    %s88 = sadd.s32 %s87, 1
    %p91 = scmp.eq.s32.totalorder %s11, 1
    %p92 = scmp.ne.s32.totalorder %s87, %s89
    %p93 = scmp.eq.s32.totalorder %s11, 0
    %p94 = por %p92, %p93
    %p95 = scmp.ne.s32.totalorder %s87, %s89
    %p96 = scmp.eq.s32.totalorder %s16, 1
    %p97 = por %p95, %p96
    %p98 = scmp.ne.s32.totalorder %s89, %s90
    %p99 = scmp.eq.s32.totalorder %s16, 0
    %p100 = por %p98, %p99
    %p101 = scmp.ne.s32.totalorder %s89, %s90
    %p102 = scmp.eq.s32.totalorder %s17, 1
    %p103 = por %p101, %p102
    %p105 = scmp.ne.s32.totalorder %s90, %s104
    %p106 = scmp.eq.s32.totalorder %s17, 0
    %p107 = por %p105, %p106
    %s109 = sadd.s32 %s108, 1
    %p112 = scmp.eq.s32.totalorder %s11, 1
    %p113 = scmp.ne.s32.totalorder %s108, %s110
    %p114 = scmp.eq.s32.totalorder %s11, 0
    %p115 = por %p113, %p114
    %p116 = scmp.ne.s32.totalorder %s108, %s110
    %p117 = scmp.eq.s32.totalorder %s16, 1
    %p118 = por %p116, %p117
    %p119 = scmp.ne.s32.totalorder %s110, %s111
    %p120 = scmp.eq.s32.totalorder %s16, 0
    %p121 = por %p119, %p120
    %p122 = scmp.ne.s32.totalorder %s110, %s111
    %p123 = scmp.eq.s32.totalorder %s17, 1
    %p124 = por %p122, %p123
    %p126 = scmp.ne.s32.totalorder %s111, %s125
    %p127 = scmp.eq.s32.totalorder %s17, 0
    %p128 = por %p126, %p127
    %s129 = ssub.s32 %s11, %s18
    %p130 = scmp.eq.s32.totalorder %s129, 0
    %s132 = sadd.s32 %s131, 1
    %s133 = scalar_select %p130, %s131, %s132
    %p136 = pneg %p130
    %p137 = scmp.eq.s32.totalorder %s11, 1
    %p138 = por %p136, %p137
    %p139 = scmp.ne.s32.totalorder %s131, %s134
    %p140 = scmp.eq.s32.totalorder %s11, 0
    %p141 = por %p139, %p140
    %p142 = scmp.ne.s32.totalorder %s131, %s134
    %p143 = scmp.eq.s32.totalorder %s16, 1
    %p144 = por %p142, %p143
    %p145 = scmp.ne.s32.totalorder %s134, %s135
    %p146 = scmp.eq.s32.totalorder %s16, 0
    %p147 = por %p145, %p146
    %p148 = scmp.ne.s32.totalorder %s134, %s135
    %p149 = scmp.eq.s32.totalorder %s17, 1
    %p150 = por %p148, %p149
    %p152 = scmp.ne.s32.totalorder %s135, %s151
    %p153 = scmp.eq.s32.totalorder %s17, 0
    %p154 = por %p152, %p153
    %p155 = scmp.le.s32.totalorder 1, %s11
    %p156 = scmp.lt.s32.totalorder %s11, 3
    %p157 = pnand %p155, %p156
    %p158 = pneg %p157
    // Predicated region
    $region9: #{foundationmodel_forward.2} parent=5 // pred_check
      _
    $region10: #{foundationmodel_forward.2} parent=5 // pred_check_branch
      %160 = sbr.rel (%p157) target = $region12
    $region11: #{foundationmodel_forward.2} parent=5 // pred_region
      %s161 = ssub.s32 %s11, 1
      // Predicated region
      $region13: #{foundationmodel_forward.2} parent=11 // pred_check
        %p162 = pneg %p58
      $region14: #{foundationmodel_forward.2} parent=11 // pred_check_branch
        %164 = sbr.rel (%p162) target = $region16
      $region15: #{foundationmodel_forward.2} parent=11 // pred_region
        _
      $region16: #{foundationmodel_forward.2} parent=11 // pred_fallthru
        _
      // Predicated region
      $region17: #{foundationmodel_forward.2} parent=11 // pred_check
        %p165 = pneg %p79
      $region18: #{foundationmodel_forward.2} parent=11 // pred_check_branch
        %167 = sbr.rel (%p165) target = $region20
      $region19: #{foundationmodel_forward.2} parent=11 // pred_region
        _
      $region20: #{foundationmodel_forward.2} parent=11 // pred_fallthru
        _
      // Predicated region
      $region21: #{foundationmodel_forward.2} parent=11 // pred_check
        %p168 = pneg %p100
      $region22: #{foundationmodel_forward.2} parent=11 // pred_check_branch
        %170 = sbr.rel (%p168) target = $region24
      $region23: #{foundationmodel_forward.2} parent=11 // pred_region
        _
      $region24: #{foundationmodel_forward.2} parent=11 // pred_fallthru
        _
      // Predicated region
      $region25: #{foundationmodel_forward.2} parent=11 // pred_check
        %p171 = pneg %p121
      $region26: #{foundationmodel_forward.2} parent=11 // pred_check_branch
        %173 = sbr.rel (%p171) target = $region28
      $region27: #{foundationmodel_forward.2} parent=11 // pred_region
        _
      $region28: #{foundationmodel_forward.2} parent=11 // pred_fallthru
        _
    $region12: #{foundationmodel_forward.2} parent=5 // pred_fallthru
      _
    %p174 = scmp.lt.s32.totalorder %s11, 2
    // Predicated region
    $region29: #{foundationmodel_forward.2} parent=5 // pred_check
      %p175 = pneg %p174
    $region30: #{foundationmodel_forward.2} parent=5 // pred_check_branch
      %177 = sbr.rel (%p175) target = $region32
    $region31: #{foundationmodel_forward.2} parent=5 // pred_region
      // Predicated region
      $region33: #{foundationmodel_forward.2} parent=31 // pred_check
        %p178 = pneg %p31
      $region34: #{foundationmodel_forward.2} parent=31 // pred_check_branch
        %180 = sbr.rel (%p178) target = $region36
      $region35: #{foundationmodel_forward.2} parent=31 // pred_region
        %p181 = scmp.lt.s32.totalorder %s11, 1
        %s182 = scalar_select %p181, %s11, 1
        %s183 = smul.addr %s182, 6
        %s184 = smul.addr %s183, 2
        %s185 = scalar_lea.vmem %s0, %s184
      $region36: #{foundationmodel_forward.2} parent=31 // pred_fallthru
        _
    $region32: #{foundationmodel_forward.2} parent=5 // pred_fallthru
      _
    %p186 = scmp.le.s32.totalorder 1, %s11
    %p187 = scmp.lt.s32.totalorder %s11, 3
    %p188 = pnand %p186, %p187
    %p189 = pneg %p188
    // Predicated region
    $region37: #{foundationmodel_forward.2} parent=5 // pred_check
      _
    $region38: #{foundationmodel_forward.2} parent=5 // pred_check_branch
      %191 = sbr.rel (%p188) target = $region40
    $region39: #{foundationmodel_forward.2} parent=5 // pred_region
      %s192 = ssub.s32 %s11, 1
      %p193 = scmp.lt.s32.totalorder %s16, 1
      %s194 = scalar_select %p193, %s16, 1
      %s195 = smul.addr %s194, 6
      %s196 = smul.addr %s195, 2
      %s197 = scalar_lea.vmem %s0, %s196
      %p198 = pneg %p37
      %p199 = pneg %p34
      %p200 = pneg %p58
      %p201 = pneg %p55
      %p202 = pneg %p79
      %p203 = pneg %p76
      %p204 = pneg %p100
      %p205 = pneg %p97
      %p206 = pneg %p121
      %p207 = pneg %p118
      %p208 = pneg %p147
      %p209 = pneg %p144
      %p210 = scmp.lt.s32.totalorder %s16, 1
      %s211 = scalar_select %p210, %s16, 1
      %s212 = smul.addr %s211, 8
      %s213 = scalar_lea.vmem %s5, %s212
      %p214 = scmp.lt.s32.totalorder %s16, 1
      %s215 = scalar_select %p214, %s16, 1
      %s216 = smul.addr %s215, 6
      %s217 = smul.addr %s216, 2
      %s218 = scalar_lea.vmem %s0, %s217
      %p219 = scmp.lt.s32.totalorder %s16, 1
      %s220 = scalar_select %p219, %s16, 1
      %s221 = smul.addr %s220, 8
      %s222 = scalar_lea.vmem %s5, %s221
      %v224 = vld [vmem:[%s218] sm:$0xff]
      %v225 = vld [vmem:[%s218 + $0x8] sm:$0xf]
      %v226 = vld [vmem:[%s1] sm:$0xf]
      %v227 = vld [vmem:[%s1 + $0x4] sm:$0xf]
      %v228 = vld [vmem:[%s1 + $0x8] sm:$0xf]
      %v229 = vld [vmem:[%s1 + $0xc] sm:$0xf]
      %v230 = vld [vmem:[%s1 + $0x10] sm:$0xf]
      %v231 = vld [vmem:[%s1 + $0x14] sm:$0xf]
      %v232 = vld [vmem:[%s1 + $0x18] sm:$0xf]
      %v233 = vld [vmem:[%s1 + $0x1c] sm:$0xf]
      %v234 = vld [vmem:[%s1 + $0x20] sm:$0xf]
      %v235 = vld [vmem:[%s1 + $0x24] sm:$0xf]
      %v236 = vld [vmem:[%s1 + $0x28] sm:$0xf]
      %v237 = vld [vmem:[%s1 + $0x2c] sm:$0xf]
      %v238 = vld [vmem:[%s1 + $0x30] sm:$0xf]
      %v239 = vld [vmem:[%s1 + $0x34] sm:$0xf]
      %v240 = vld [vmem:[%s1 + $0x38] sm:$0xf]
      %v241 = vld [vmem:[%s1 + $0x3c] sm:$0xf]
      %v242 = vld [vmem:[%s1 + $0x40] sm:$0xf]
      %v243 = vld [vmem:[%s1 + $0x44] sm:$0xf]
      %v244 = vld [vmem:[%s1 + $0x48] sm:$0xf]
      %v245 = vld [vmem:[%s1 + $0x4c] sm:$0xf]
      %v246 = vld [vmem:[%s1 + $0x50] sm:$0xf]
      %v247 = vld [vmem:[%s1 + $0x54] sm:$0xf]
      %v248 = vld [vmem:[%s1 + $0x58] sm:$0xf]
      %v249 = vld [vmem:[%s1 + $0x5c] sm:$0xf]
      %v250 = vld [vmem:[%s1 + $0x60] sm:$0xf]
      %v251 = vld [vmem:[%s1 + $0x64] sm:$0xf]
      %v252 = vld [vmem:[%s1 + $0x68] sm:$0xf]
      %v253 = vld [vmem:[%s1 + $0x6c] sm:$0xf]
      %v254 = vld [vmem:[%s1 + $0x70] sm:$0xf]
      %v255 = vld [vmem:[%s1 + $0x74] sm:$0xf]
      %v256 = vld [vmem:[%s1 + $0x78] sm:$0xf]
      %v257 = vld [vmem:[%s1 + $0x7c] sm:$0xf]
      %v258 = vld [vmem:[%s1 + $0x80] sm:$0xf]
      %v259 = vld [vmem:[%s1 + $0x84] sm:$0xf]
      %v260 = vld [vmem:[%s1 + $0x88] sm:$0xf]
      %v261 = vld [vmem:[%s1 + $0x8c] sm:$0xf]
      %v262 = vld [vmem:[%s1 + $0x90] sm:$0xf]
      %v263 = vld [vmem:[%s1 + $0x94] sm:$0xf]
      %v264 = vld [vmem:[%s1 + $0x98] sm:$0xf]
      %v265 = vld [vmem:[%s1 + $0x9c] sm:$0xf]
      %v266 = vld [vmem:[%s1 + $0xa0] sm:$0xf]
      %v267 = vld [vmem:[%s1 + $0xa4] sm:$0xf]
      %v268 = vld [vmem:[%s1 + $0xa8] sm:$0xf]
      %v269 = vld [vmem:[%s1 + $0xac] sm:$0xf]
      %v270 = vld [vmem:[%s1 + $0xb0] sm:$0xf]
      %v271 = vld [vmem:[%s1 + $0xb4] sm:$0xf]
      %v272 = vld [vmem:[%s1 + $0xb8] sm:$0xf]
      %v273 = vld [vmem:[%s1 + $0xbc] sm:$0xf]
      %v274 = vld [vmem:[%s1 + $0xc0] sm:$0xf]
      %v275 = vld [vmem:[%s1 + $0xc4] sm:$0xf]
      %v276 = vld [vmem:[%s1 + $0xc8] sm:$0xf]
      %v277 = vld [vmem:[%s1 + $0xcc] sm:$0xf]
      %v278 = vld [vmem:[%s1 + $0xd0] sm:$0xf]
      %v279 = vld [vmem:[%s1 + $0xd4] sm:$0xf]
      %v280 = vld [vmem:[%s1 + $0xd8] sm:$0xf]
      %v281 = vld [vmem:[%s1 + $0xdc] sm:$0xf]
      %v282 = vld [vmem:[%s1 + $0xe0] sm:$0xf]
      %v283 = vld [vmem:[%s1 + $0xe4] sm:$0xf]
      %v284 = vld [vmem:[%s1 + $0xe8] sm:$0xf]
      %v285 = vld [vmem:[%s1 + $0xec] sm:$0xf]
      %v286 = vld [vmem:[%s1 + $0xf0] sm:$0xf]
      %v287 = vld [vmem:[%s1 + $0xf4] sm:$0xf]
      %v288 = vld [vmem:[%s1 + $0xf8] sm:$0xf]
      %v289 = vld [vmem:[%s1 + $0xfc] sm:$0xf]
      %v290 = vld [vmem:[%s1 + $0x100] sm:$0xf]
      %v291 = vld [vmem:[%s1 + $0x104] sm:$0xf]
      %v292 = vld [vmem:[%s1 + $0x108] sm:$0xf]
      %v293 = vld [vmem:[%s1 + $0x10c] sm:$0xf]
      %v294 = vld [vmem:[%s1 + $0x110] sm:$0xf]
      %v295 = vld [vmem:[%s1 + $0x114] sm:$0xf]
      %v296 = vld [vmem:[%s1 + $0x118] sm:$0xf]
      %v297 = vld [vmem:[%s1 + $0x11c] sm:$0xf]
      %v298 = vld [vmem:[%s1 + $0x120] sm:$0xf]
      %v299 = vld [vmem:[%s1 + $0x124] sm:$0xf]
      %v300 = vld [vmem:[%s1 + $0x128] sm:$0xf]
      %v301 = vld [vmem:[%s1 + $0x12c] sm:$0xf]
      %v302 = vld [vmem:[%s1 + $0x130] sm:$0xf]
      %v303 = vld [vmem:[%s1 + $0x134] sm:$0xf]
      %v304 = vld [vmem:[%s1 + $0x138] sm:$0xf]
      %v305 = vld [vmem:[%s1 + $0x13c] sm:$0xf]
      %v306 = vld [vmem:[%s1 + $0x140] sm:$0xf]
      %v307 = vld [vmem:[%s1 + $0x144] sm:$0xf]
      %v308 = vld [vmem:[%s1 + $0x148] sm:$0xf]
      %v309 = vld [vmem:[%s1 + $0x14c] sm:$0xf]
      %v310 = vld [vmem:[%s1 + $0x150] sm:$0xf]
      %v311 = vld [vmem:[%s1 + $0x154] sm:$0xf]
      %v312 = vld [vmem:[%s1 + $0x158] sm:$0xf]
      %v313 = vld [vmem:[%s1 + $0x15c] sm:$0xf]
      %v314 = vld [vmem:[%s1 + $0x160] sm:$0xf]
      %v315 = vld [vmem:[%s1 + $0x164] sm:$0xf]
      %v316 = vld [vmem:[%s1 + $0x168] sm:$0xf]
      %v317 = vld [vmem:[%s1 + $0x16c] sm:$0xf]
      %v318 = vld [vmem:[%s1 + $0x170] sm:$0xf]
      %v319 = vld [vmem:[%s1 + $0x174] sm:$0xf]
      %v320 = vld [vmem:[%s1 + $0x178] sm:$0xf]
      %v321 = vld [vmem:[%s1 + $0x17c] sm:$0xf]
      %v322 = vld [vmem:[%s2] sm:$0x1]
      %v324 = vlaneseq
      %v325 = vshrl.u32 %v324, 7
      %v326 = vsub.s32 0, %v325
      %v327 = vrot.slane %v322, %v326
      %v331 = vcombine.high %v224, %v224
      %v333 = vunpack.c.l.s4 1983009808
      %v334 = vunpack.c.0.s8 %v333
      %v335 = vlaneseq
      %v336 = vshrl.u32 %v335, 7
      %v337 = vsub.s32 %v334, %v336
      %v338 = vrot.slane %v224, %v337
      %v340 = vunpack.c.l.s4 1983009808
      %v341 = vunpack.c.0.s8 %v340
      %v342 = vlaneseq
      %v343 = vshrl.u32 %v342, 7
      %v344 = vsub.s32 %v341, %v343
      %v345 = vrot.slane %v331, %v344
      %v346 = vcombine.high %v338, %v338
      %v347 = vcombine.high %v345, %v345
      %v349 = vunpack.c.l.s4 1983009808
      %v350 = vunpack.c.0.s8 %v349
      %v351 = vlaneseq
      %v352 = vshrl.u32 %v351, 7
      %v353 = vsub.s32 %v350, %v352
      %v354 = vrot.slane %v225, %v353
      %v355 = vcombine.high %v354, %v354
      %v458 = vunpack.c.l.b16 %v226
      %v459 = vunpack.c.l.b16 %v227
      %v460 = vunpack.c.l.b16 %v228
      %v461 = vunpack.c.l.b16 %v229
      %v462 = vunpack.c.l.b16 %v230
      %v463 = vunpack.c.l.b16 %v231
      %v464 = vunpack.c.l.b16 %v232
      %v465 = vunpack.c.l.b16 %v233
      %v466 = vunpack.c.l.b16 %v234
      %v467 = vunpack.c.l.b16 %v235
      %v468 = vunpack.c.l.b16 %v236
      %v469 = vunpack.c.l.b16 %v237
      %v470 = vunpack.c.l.b16 %v238
      %v471 = vunpack.c.l.b16 %v239
      %v472 = vunpack.c.l.b16 %v240
      %v473 = vunpack.c.l.b16 %v241
      %v474 = vunpack.c.l.b16 %v242
      %v475 = vunpack.c.l.b16 %v243
      %v476 = vunpack.c.l.b16 %v244
      %v477 = vunpack.c.l.b16 %v245
      %v478 = vunpack.c.l.b16 %v246
      %v479 = vunpack.c.l.b16 %v247
      %v480 = vunpack.c.l.b16 %v248
      %v481 = vunpack.c.l.b16 %v249
      %v482 = vunpack.c.l.b16 %v250
      %v483 = vunpack.c.l.b16 %v251
      %v484 = vunpack.c.l.b16 %v252
      %v485 = vunpack.c.l.b16 %v253
      %v486 = vunpack.c.l.b16 %v254
      %v487 = vunpack.c.l.b16 %v255
      %v488 = vunpack.c.l.b16 %v256
      %v489 = vunpack.c.l.b16 %v257
      %v490 = vunpack.c.l.b16 %v258
      %v491 = vunpack.c.l.b16 %v259
      %v492 = vunpack.c.l.b16 %v260
      %v493 = vunpack.c.l.b16 %v261
      %v494 = vunpack.c.l.b16 %v262
      %v495 = vunpack.c.l.b16 %v263
      %v496 = vunpack.c.l.b16 %v264
      %v497 = vunpack.c.l.b16 %v265
      %v498 = vunpack.c.l.b16 %v266
      %v499 = vunpack.c.l.b16 %v267
      %v500 = vunpack.c.l.b16 %v268
      %v501 = vunpack.c.l.b16 %v269
      %v502 = vunpack.c.l.b16 %v270
      %v503 = vunpack.c.l.b16 %v271
      %v504 = vunpack.c.l.b16 %v272
      %v505 = vunpack.c.l.b16 %v273
      %v506 = vunpack.c.l.b16 %v274
      %v507 = vunpack.c.l.b16 %v275
      %v508 = vunpack.c.l.b16 %v276
      %v509 = vunpack.c.l.b16 %v277
      %v510 = vunpack.c.l.b16 %v278
      %v511 = vunpack.c.l.b16 %v279
      %v512 = vunpack.c.l.b16 %v280
      %v513 = vunpack.c.l.b16 %v281
      %v514 = vunpack.c.l.b16 %v282
      %v515 = vunpack.c.l.b16 %v283
      %v516 = vunpack.c.l.b16 %v284
      %v517 = vunpack.c.l.b16 %v285
      %v518 = vunpack.c.l.b16 %v286
      %v519 = vunpack.c.l.b16 %v287
      %v520 = vunpack.c.l.b16 %v288
      %v521 = vunpack.c.l.b16 %v289
      %v522 = vunpack.c.l.b16 %v290
      %v523 = vunpack.c.l.b16 %v291
      %v524 = vunpack.c.l.b16 %v292
      %v525 = vunpack.c.l.b16 %v293
      %v526 = vunpack.c.l.b16 %v294
      %v527 = vunpack.c.l.b16 %v295
      %v528 = vunpack.c.l.b16 %v296
      %v529 = vunpack.c.l.b16 %v297
      %v530 = vunpack.c.l.b16 %v298
      %v531 = vunpack.c.l.b16 %v299
      %v532 = vunpack.c.l.b16 %v300
      %v533 = vunpack.c.l.b16 %v301
      %v534 = vunpack.c.l.b16 %v302
      %v535 = vunpack.c.l.b16 %v303
      %v536 = vunpack.c.l.b16 %v304
      %v537 = vunpack.c.l.b16 %v305
      %v538 = vunpack.c.l.b16 %v306
      %v539 = vunpack.c.l.b16 %v307
      %v540 = vunpack.c.l.b16 %v308
      %v541 = vunpack.c.l.b16 %v309
      %v542 = vunpack.c.l.b16 %v310
      %v543 = vunpack.c.l.b16 %v311
      %v544 = vunpack.c.l.b16 %v312
      %v545 = vunpack.c.l.b16 %v313
      %v546 = vunpack.c.l.b16 %v314
      %v547 = vunpack.c.l.b16 %v315
      %v548 = vunpack.c.l.b16 %v316
      %v549 = vunpack.c.l.b16 %v317
      %v550 = vunpack.c.l.b16 %v318
      %v551 = vunpack.c.l.b16 %v319
      %v552 = vunpack.c.l.b16 %v320
      %v553 = vunpack.c.l.b16 %v321
      %v554 = vpack.c.b16 %v459, %v458
      %v555 = vpack.c.b16 %v461, %v460
      %v556 = vpack.c.b16 %v463, %v462
      %v557 = vpack.c.b16 %v465, %v464
      %v558 = vpack.c.b16 %v467, %v466
      %v559 = vpack.c.b16 %v469, %v468
      %v560 = vpack.c.b16 %v471, %v470
      %v561 = vpack.c.b16 %v473, %v472
      %v562 = vpack.c.b16 %v475, %v474
      %v563 = vpack.c.b16 %v477, %v476
      %v564 = vpack.c.b16 %v479, %v478
      %v565 = vpack.c.b16 %v481, %v480
      %v566 = vpack.c.b16 %v483, %v482
      %v567 = vpack.c.b16 %v485, %v484
      %v568 = vpack.c.b16 %v487, %v486
      %v569 = vpack.c.b16 %v489, %v488
      %v570 = vpack.c.b16 %v491, %v490
      %v571 = vpack.c.b16 %v493, %v492
      %v572 = vpack.c.b16 %v495, %v494
      %v573 = vpack.c.b16 %v497, %v496
      %v574 = vpack.c.b16 %v499, %v498
      %v575 = vpack.c.b16 %v501, %v500
      %v576 = vpack.c.b16 %v503, %v502
      %v577 = vpack.c.b16 %v505, %v504
      %v578 = vpack.c.b16 %v507, %v506
      %v579 = vpack.c.b16 %v509, %v508
      %v580 = vpack.c.b16 %v511, %v510
      %v581 = vpack.c.b16 %v513, %v512
      %v582 = vpack.c.b16 %v515, %v514
      %v583 = vpack.c.b16 %v517, %v516
      %v584 = vpack.c.b16 %v519, %v518
      %v585 = vpack.c.b16 %v521, %v520
      %v586 = vpack.c.b16 %v523, %v522
      %v587 = vpack.c.b16 %v525, %v524
      %v588 = vpack.c.b16 %v527, %v526
      %v589 = vpack.c.b16 %v529, %v528
      %v590 = vpack.c.b16 %v531, %v530
      %v591 = vpack.c.b16 %v533, %v532
      %v592 = vpack.c.b16 %v535, %v534
      %v593 = vpack.c.b16 %v537, %v536
      %v594 = vpack.c.b16 %v539, %v538
      %v595 = vpack.c.b16 %v541, %v540
      %v596 = vpack.c.b16 %v543, %v542
      %v597 = vpack.c.b16 %v545, %v544
      %v598 = vpack.c.b16 %v547, %v546
      %v599 = vpack.c.b16 %v549, %v548
      %v600 = vpack.c.b16 %v551, %v550
      %v601 = vpack.c.b16 %v553, %v552
      %650 = vmatprep.subr.bf16.mxu0 0
      %651 = vmatpush1.bf16.msra.mxu0 %v554
      %652 = vmatprep.subr.bf16.mxu0 0
      %653 = vmatpush1.bf16.msra.mxu0 %v555
      %654 = vmatprep.subr.bf16.mxu0 0
      %655 = vmatpush1.bf16.msra.mxu0 %v556
      %656 = vmatprep.subr.bf16.mxu0 0
      %657 = vmatpush1.bf16.msra.mxu0 %v557
      %658 = vmatprep.subr.bf16.mxu0 0
      %659 = vmatpush1.bf16.msra.mxu0 %v558
      %660 = vmatprep.subr.bf16.mxu0 0
      %661 = vmatpush1.bf16.msra.mxu0 %v559
      %662 = vmatprep.subr.bf16.mxu0 0
      %663 = vmatpush1.bf16.msra.mxu0 %v560
      %664 = vmatprep.subr.bf16.mxu0 0
      %665 = vmatpush1.bf16.msra.mxu0 %v561
      %666 = vmatprep.subr.bf16.mxu0 0
      %667 = vmatpush1.bf16.msra.mxu0 %v562
      %668 = vmatprep.subr.bf16.mxu0 0
      %669 = vmatpush1.bf16.msra.mxu0 %v563
      %670 = vmatprep.subr.bf16.mxu0 0
      %671 = vmatpush1.bf16.msra.mxu0 %v564
      %672 = vmatprep.subr.bf16.mxu0 0
      %673 = vmatpush1.bf16.msra.mxu0 %v565
      %674 = vmatprep.subr.bf16.mxu0 0
      %675 = vmatpush1.bf16.msra.mxu0 %v566
      %676 = vmatprep.subr.bf16.mxu0 0
      %677 = vmatpush1.bf16.msra.mxu0 %v567
      %678 = vmatprep.subr.bf16.mxu0 0
      %679 = vmatpush1.bf16.msra.mxu0 %v568
      %680 = vmatprep.subr.bf16.mxu0 0
      %681 = vmatpush1.bf16.msra.mxu0 %v569
      %682 = vmatprep.mubr.bf16.mxu0 %v346
      %683 = vmatmul.mubr.bf16.gmra.mrb[0].mxu0 %v338
      %v684 = vpop.f32.mrb[0].mxu0
      %v685 = vadd.f32 %v327, %v684
      %v686 = vpop.f32.mrb[0].mxu0
      %v687 = vpop.f32.mrb[0].mxu0
      %v688 = vpop.f32.mrb[0].mxu0
      %689 = vdwg.mxu0
      %690 = vmatprep.subr.bf16.mxu0 0
      %691 = vmatpush1.bf16.msra.mxu0 %v570
      %692 = vmatprep.subr.bf16.mxu0 0
      %693 = vmatpush1.bf16.msra.mxu0 %v571
      %694 = vmatprep.subr.bf16.mxu0 0
      %695 = vmatpush1.bf16.msra.mxu0 %v572
      %696 = vmatprep.subr.bf16.mxu0 0
      %697 = vmatpush1.bf16.msra.mxu0 %v573
      %698 = vmatprep.subr.bf16.mxu0 0
      %699 = vmatpush1.bf16.msra.mxu0 %v574
      %700 = vmatprep.subr.bf16.mxu0 0
      %701 = vmatpush1.bf16.msra.mxu0 %v575
      %702 = vmatprep.subr.bf16.mxu0 0
      %703 = vmatpush1.bf16.msra.mxu0 %v576
      %704 = vmatprep.subr.bf16.mxu0 0
      %705 = vmatpush1.bf16.msra.mxu0 %v577
      %706 = vmatprep.subr.bf16.mxu0 0
      %707 = vmatpush1.bf16.msra.mxu0 %v578
      %708 = vmatprep.subr.bf16.mxu0 0
      %709 = vmatpush1.bf16.msra.mxu0 %v579
      %710 = vmatprep.subr.bf16.mxu0 0
      %711 = vmatpush1.bf16.msra.mxu0 %v580
      %712 = vmatprep.subr.bf16.mxu0 0
      %713 = vmatpush1.bf16.msra.mxu0 %v581
      %714 = vmatprep.subr.bf16.mxu0 0
      %715 = vmatpush1.bf16.msra.mxu0 %v582
      %716 = vmatprep.subr.bf16.mxu0 0
      %717 = vmatpush1.bf16.msra.mxu0 %v583
      %718 = vmatprep.subr.bf16.mxu0 0
      %719 = vmatpush1.bf16.msra.mxu0 %v584
      %720 = vmatprep.subr.bf16.mxu0 0
      %721 = vmatpush1.bf16.msra.mxu0 %v585
      %722 = vmatprep.mubr.bf16.mxu0 %v347
      %723 = vmatmul.mubr.bf16.gmra.mrb[0].mxu0 %v345
      %v724 = vpop.f32.mrb[0].mxu0
      %v725 = vadd.f32 %v685, %v724
      %v726 = vpop.f32.mrb[0].mxu0
      %v727 = vpop.f32.mrb[0].mxu0
      %v728 = vpop.f32.mrb[0].mxu0
      %729 = vdwg.mxu0
      %730 = vmatprep.subr.bf16.mxu0 0
      %731 = vmatpush1.bf16.msra.mxu0 %v586
      %732 = vmatprep.subr.bf16.mxu0 0
      %733 = vmatpush1.bf16.msra.mxu0 %v587
      %734 = vmatprep.subr.bf16.mxu0 0
      %735 = vmatpush1.bf16.msra.mxu0 %v588
      %736 = vmatprep.subr.bf16.mxu0 0
      %737 = vmatpush1.bf16.msra.mxu0 %v589
      %738 = vmatprep.subr.bf16.mxu0 0
      %739 = vmatpush1.bf16.msra.mxu0 %v590
      %740 = vmatprep.subr.bf16.mxu0 0
      %741 = vmatpush1.bf16.msra.mxu0 %v591
      %742 = vmatprep.subr.bf16.mxu0 0
      %743 = vmatpush1.bf16.msra.mxu0 %v592
      %744 = vmatprep.subr.bf16.mxu0 0
      %745 = vmatpush1.bf16.msra.mxu0 %v593
      %746 = vmatprep.subr.bf16.mxu0 0
      %747 = vmatpush1.bf16.msra.mxu0 %v594
      %748 = vmatprep.subr.bf16.mxu0 0
      %749 = vmatpush1.bf16.msra.mxu0 %v595
      %750 = vmatprep.subr.bf16.mxu0 0
      %751 = vmatpush1.bf16.msra.mxu0 %v596
      %752 = vmatprep.subr.bf16.mxu0 0
      %753 = vmatpush1.bf16.msra.mxu0 %v597
      %754 = vmatprep.subr.bf16.mxu0 0
      %755 = vmatpush1.bf16.msra.mxu0 %v598
      %756 = vmatprep.subr.bf16.mxu0 0
      %757 = vmatpush1.bf16.msra.mxu0 %v599
      %758 = vmatprep.subr.bf16.mxu0 0
      %759 = vmatpush1.bf16.msra.mxu0 %v600
      %760 = vmatprep.subr.bf16.mxu0 0
      %761 = vmatpush1.bf16.msra.mxu0 %v601
      %762 = vmatprep.mubr.bf16.mxu0 %v355
      %763 = vmatmul.mubr.bf16.gmra.mrb[0].mxu0 %v354
      %v764 = vpop.f32.mrb[0].mxu0
      %v765 = vadd.f32 %v725, %v764
      %v766 = vpop.f32.mrb[0].mxu0
      %v767 = vpop.f32.mrb[0].mxu0
      %v768 = vpop.f32.mrb[0].mxu0
      %769 = vdwg.mxu0
      %v770 = vld [vmem:[%s3] sm:$0x1]
      %v771 = vld [vmem:[%s4] sm:$0x1]
      %v772 = vadd.f32 %v770, %v771
      %vm773 = vcmask 253952
      %774 = vst.msk [vmem:[%s222] sm:$0x1] %vm773, %v772
      %v775 = vld [vmem:[%s4 + $0x1] sm:$0xf]
      %v776 = vadd.f32 %v765, %v775
      %vm777 = vcmask 257024
      %778 = vst.msk [vmem:[%s222 + $0x1] sm:$0xf] %vm777, %v776
      %vm779 = vcmask 256000
      %780 = vst.msk [vmem:[%s222 + $0x5] sm:$0x7] %vm779, 0.0
      %p781 = scmp.lt.s32.totalorder %s16, 1
      %s782 = scalar_select %p781, %s16, 1
      %s783 = smul.addr %s782, 8
      %s784 = scalar_lea.vmem %s5, %s783
      // Predicated region
      $region41: #{foundationmodel_forward.2} parent=39 // pred_check
        %p785 = pneg %p144
      $region42: #{foundationmodel_forward.2} parent=39 // pred_check_branch
        %787 = sbr.rel (%p785) target = $region44
      $region43: #{foundationmodel_forward.2} parent=39 // pred_region
        _
      $region44: #{foundationmodel_forward.2} parent=39 // pred_fallthru
        _
    $region40: #{foundationmodel_forward.2} parent=5 // pred_fallthru
      _
    %p788 = scmp.le.s32.totalorder 2, %s11
    // Predicated region
    $region45: #{foundationmodel_forward.2} parent=5 // pred_check
      %p789 = pneg %p788
    $region46: #{foundationmodel_forward.2} parent=5 // pred_check_branch
      %791 = sbr.rel (%p789) target = $region48
    $region47: #{foundationmodel_forward.2} parent=5 // pred_region
      %s792 = ssub.s32 %s11, 2
      // Predicated region
      $region49: #{foundationmodel_forward.2} parent=47 // pred_check
        %p793 = pneg %p150
      $region50: #{foundationmodel_forward.2} parent=47 // pred_check_branch
        %795 = sbr.rel (%p793) target = $region52
      $region51: #{foundationmodel_forward.2} parent=47 // pred_region
        %p796 = scmp.lt.s32.totalorder %s17, 1
        %s797 = scalar_select %p796, %s17, 1
        %s798 = smul.addr %s797, 8
        %s799 = scalar_lea.vmem %s5, %s798
      $region52: #{foundationmodel_forward.2} parent=47 // pred_fallthru
        _
    $region48: #{foundationmodel_forward.2} parent=5 // pred_fallthru
      _
  $region6: #{foundationmodel_forward.2} parent=0 // loop_footer
    %s15 = sadd.s32 1, %s11
  $region7: #{foundationmodel_forward.2} parent=0 // loop_footer_branch
    %10 = sbr.rel target = $region3
  $region8: #{foundationmodel_forward.2} parent=0 // loop_exit
    _

// kernel: foundationmodel_forward.3
$region0: #{foundationmodel_forward.3}
  #allocation0 [shape = 'u32[]', space=smem, size = 0x4, offset = 0x4, fixed_abs, tag = 'smem constant byte address 0x4 - core index']
  #allocation1 [shape = 'u32[144,128]{1,0:T(1,128)}', space=vmem, size = 0x12000, scoped, tag = 'internal scratch']
  #allocation2 [shape = 'f32[1,8,32]{2,1,0:T(8,128)}', space=vmem, size = 0x1000, scoped, tag = 'scratch operand']
  %s0 = inlined_call_operand.vmem [shape: f32[2,8,32], index: 0, kind: input, shape index: {}]
  %s1 = inlined_call_operand.vmem [shape: bf16[2,2,32,16], index: 1, kind: input, shape index: {}]
  %s2 = inlined_call_operand.vmem [shape: bf16[2,2,32,16], index: 2, kind: input, shape index: {}]
  %s3 = inlined_call_operand.vmem [shape: bf16[2,2,32,16], index: 3, kind: input, shape index: {}]
  %s4 = inlined_call_operand.vmem [shape: f32[2,6,1,16], index: 4, kind: input, shape index: {}]
  %s5 = inlined_call_operand.vmem [shape: bf16[2,2,16,32], index: 5, kind: input, shape index: {}]
  %s6 = inlined_call_operand.vmem [shape: bf16[2,32,128], index: 6, kind: input, shape index: {}]
  %s7 = inlined_call_operand.vmem [shape: f32[2,1,128], index: 7, kind: input, shape index: {}]
  %s8 = inlined_call_operand.vmem [shape: bf16[2,128,32], index: 8, kind: input, shape index: {}]
  %s9 = inlined_call_operand.vmem [shape: f32[2,8,32], index: 9, kind: input, shape index: {}]
  %s10 = inlined_call_operand.vmem [shape: f32[1,32], index: 10, kind: input, shape index: {}]
  %s11 = inlined_call_operand.vmem [shape: f32[1,32], index: 11, kind: input, shape index: {}]
  %s12 = inlined_call_operand.vmem [shape: bf16[32,10], index: 12, kind: input, shape index: {}]
  %s13 = inlined_call_operand.vmem [shape: f32[1,10], index: 13, kind: input, shape index: {}]
  %s14 = inlined_call_operand.hbm [shape: f32[2,1,10], index: 14, kind: output, shape index: {}]
  %s15 = sld [smem:[#allocation0]]
  $region97: #{foundationmodel_forward.3} parent=0
    _
  %s17 = ssub.s32 1, %s15
  %s18 = scalar_select 0, %s17, %s15
  $region1: #{foundationmodel_forward.3} parent=0
    #allocation3 [shape = 'u8[1024]{0}', space=vmem, size = 0x400, scoped, tag = 'output window, operand 0']
    #allocation4 [shape = 's32[2]{0}', space=sflag, size = 0x8, scoped, tag = 'scoped memory for foundationmodel_forward.3']
    %19 = vsyncpa [#allocation4], 0
    %s20 = scalar_lea.sflag [#allocation4], 1
    %21 = vsyncpa %s20, 0
    loop: start=0, step=1, limit=6
    $region2: #{foundationmodel_forward.3} parent=1 // loop_pre_header
      _
    $region3: #{foundationmodel_forward.3} parent=1 // loop_header
      %s23 = sphi 0, %s27
      %p24 = scmp.ge.s32.totalorder %s23, 6
      %s30 = sphi 0, %s42
      %s31 = sphi 0, %s38
      %s32 = sphi 0, %s30
      %s33 = sphi 0, %s31
      %s34 = sphi 0, %s32
      %s35 = sphi 0, %s33
      %s45 = sphi 0, %s47
      %s48 = sphi 0, %s45
      %s49 = sphi 0, %s48
      %s65 = sphi 0, %s49
      %s71 = sphi 0, %s73
      %s74 = sphi 0, %s71
      %s75 = sphi 0, %s74
      %s91 = sphi 0, %s75
      %s97 = sphi 0, %s99
      %s100 = sphi 0, %s97
      %s101 = sphi 0, %s100
      %s117 = sphi 0, %s101
      %s123 = sphi 0, %s125
      %s126 = sphi 0, %s123
      %s127 = sphi 0, %s126
      %s143 = sphi 0, %s127
      %s149 = sphi 0, %s151
      %s152 = sphi 0, %s149
      %s153 = sphi 0, %s152
      %s169 = sphi 0, %s153
      %s175 = sphi 0, %s177
      %s178 = sphi 0, %s175
      %s179 = sphi 0, %s178
      %s195 = sphi 0, %s179
      %s201 = sphi 0, %s203
      %s204 = sphi 0, %s201
      %s205 = sphi 0, %s204
      %s221 = sphi 0, %s205
      %s227 = sphi 0, %s229
      %s230 = sphi 0, %s227
      %s231 = sphi 0, %s230
      %s247 = sphi 0, %s231
      %s253 = sphi 0, %s255
      %s256 = sphi 0, %s253
      %s257 = sphi 0, %s256
      %s273 = sphi 0, %s257
      %s279 = sphi 0, %s281
      %s282 = sphi 0, %s279
      %s283 = sphi 0, %s282
      %s299 = sphi 0, %s283
      %s303 = sphi 0, %s303
      %s305 = sphi 0, %s303
      %s306 = sphi 0, %s305
      %s320 = sphi 0, %s306
      %s324 = sphi 0, %s324
      %s326 = sphi 0, %s324
      %s327 = sphi 0, %s326
      %s341 = sphi 0, %s327
      %s345 = sphi 0, %s345
      %s347 = sphi 0, %s345
      %s348 = sphi 0, %s347
      %s362 = sphi 0, %s348
      %s366 = sphi 0, %s366
      %s368 = sphi 0, %s366
      %s369 = sphi 0, %s368
      %s383 = sphi 0, %s369
      %s389 = sphi 0, %s391
      %s392 = sphi 0, %s389
      %s393 = sphi 0, %s392
      %s409 = sphi 0, %s393
    $region4: #{foundationmodel_forward.3} parent=1 // loop_header_branch
      %26 = sbr.rel (%p24) target = $region8
    $region5: #{foundationmodel_forward.3} parent=1 // loop_body
      %s28 = ssub.s32 %s23, 1
      %s29 = ssub.s32 %s23, 2
      %s36 = sadd.s32 1, %s31
      %p37 = scmp.ge.s32.totalorder %s36, 2
      %s38 = scalar_select %p37, 0, %s36
      %s39 = sadd.s32 1, %s30
      %s40 = scalar_select %p37, %s39, %s30
      %p41 = scmp.ge.s32.totalorder %s40, 2
      %s42 = scalar_select %p41, 0, %s40
      %s43 = ssub.s32 %s30, %s42
      %p44 = scmp.eq.s32.totalorder %s43, 0
      %s46 = sadd.s32 %s45, 1
      %s47 = scalar_select %p44, %s45, %s46
      %p50 = pneg %p44
      %p51 = scmp.eq.s32.totalorder %s23, 3
      %p52 = por %p50, %p51
      %p53 = scmp.ne.s32.totalorder %s45, %s48
      %p54 = scmp.eq.s32.totalorder %s23, 0
      %p55 = por %p53, %p54
      %p56 = scmp.ne.s32.totalorder %s45, %s48
      %p57 = scmp.eq.s32.totalorder %s28, 3
      %p58 = por %p56, %p57
      %p59 = scmp.ne.s32.totalorder %s48, %s49
      %p60 = scmp.eq.s32.totalorder %s28, 0
      %p61 = por %p59, %p60
      %p62 = scmp.ne.s32.totalorder %s48, %s49
      %p63 = scmp.eq.s32.totalorder %s29, 3
      %p64 = por %p62, %p63
      %p66 = scmp.ne.s32.totalorder %s49, %s65
      %p67 = scmp.eq.s32.totalorder %s29, 0
      %p68 = por %p66, %p67
      %s69 = ssub.s32 %s31, %s38
      %p70 = scmp.eq.s32.totalorder %s69, 0
      %s72 = sadd.s32 %s71, 1
      %s73 = scalar_select %p70, %s71, %s72
      %p76 = pneg %p70
      %p77 = scmp.eq.s32.totalorder %s23, 3
      %p78 = por %p76, %p77
      %p79 = scmp.ne.s32.totalorder %s71, %s74
      %p80 = scmp.eq.s32.totalorder %s23, 0
      %p81 = por %p79, %p80
      %p82 = scmp.ne.s32.totalorder %s71, %s74
      %p83 = scmp.eq.s32.totalorder %s28, 3
      %p84 = por %p82, %p83
      %p85 = scmp.ne.s32.totalorder %s74, %s75
      %p86 = scmp.eq.s32.totalorder %s28, 0
      %p87 = por %p85, %p86
      %p88 = scmp.ne.s32.totalorder %s74, %s75
      %p89 = scmp.eq.s32.totalorder %s29, 3
      %p90 = por %p88, %p89
      %p92 = scmp.ne.s32.totalorder %s75, %s91
      %p93 = scmp.eq.s32.totalorder %s29, 0
      %p94 = por %p92, %p93
      %s95 = ssub.s32 %s31, %s38
      %p96 = scmp.eq.s32.totalorder %s95, 0
      %s98 = sadd.s32 %s97, 1
      %s99 = scalar_select %p96, %s97, %s98
      %p102 = pneg %p96
      %p103 = scmp.eq.s32.totalorder %s23, 3
      %p104 = por %p102, %p103
      %p105 = scmp.ne.s32.totalorder %s97, %s100
      %p106 = scmp.eq.s32.totalorder %s23, 0
      %p107 = por %p105, %p106
      %p108 = scmp.ne.s32.totalorder %s97, %s100
      %p109 = scmp.eq.s32.totalorder %s28, 3
      %p110 = por %p108, %p109
      %p111 = scmp.ne.s32.totalorder %s100, %s101
      %p112 = scmp.eq.s32.totalorder %s28, 0
      %p113 = por %p111, %p112
      %p114 = scmp.ne.s32.totalorder %s100, %s101
      %p115 = scmp.eq.s32.totalorder %s29, 3
      %p116 = por %p114, %p115
      %p118 = scmp.ne.s32.totalorder %s101, %s117
      %p119 = scmp.eq.s32.totalorder %s29, 0
      %p120 = por %p118, %p119
      %s121 = ssub.s32 %s31, %s38
      %p122 = scmp.eq.s32.totalorder %s121, 0
      %s124 = sadd.s32 %s123, 1
      %s125 = scalar_select %p122, %s123, %s124
      %p128 = pneg %p122
      %p129 = scmp.eq.s32.totalorder %s23, 3
      %p130 = por %p128, %p129
      %p131 = scmp.ne.s32.totalorder %s123, %s126
      %p132 = scmp.eq.s32.totalorder %s23, 0
      %p133 = por %p131, %p132
      %p134 = scmp.ne.s32.totalorder %s123, %s126
      %p135 = scmp.eq.s32.totalorder %s28, 3
      %p136 = por %p134, %p135
      %p137 = scmp.ne.s32.totalorder %s126, %s127
      %p138 = scmp.eq.s32.totalorder %s28, 0
      %p139 = por %p137, %p138
      %p140 = scmp.ne.s32.totalorder %s126, %s127
      %p141 = scmp.eq.s32.totalorder %s29, 3
      %p142 = por %p140, %p141
      %p144 = scmp.ne.s32.totalorder %s127, %s143
      %p145 = scmp.eq.s32.totalorder %s29, 0
      %p146 = por %p144, %p145
      %s147 = ssub.s32 %s31, %s38
      %p148 = scmp.eq.s32.totalorder %s147, 0
      %s150 = sadd.s32 %s149, 1
      %s151 = scalar_select %p148, %s149, %s150
      %p154 = pneg %p148
      %p155 = scmp.eq.s32.totalorder %s23, 3
      %p156 = por %p154, %p155
      %p157 = scmp.ne.s32.totalorder %s149, %s152
      %p158 = scmp.eq.s32.totalorder %s23, 0
      %p159 = por %p157, %p158
      %p160 = scmp.ne.s32.totalorder %s149, %s152
      %p161 = scmp.eq.s32.totalorder %s28, 3
      %p162 = por %p160, %p161
      %p163 = scmp.ne.s32.totalorder %s152, %s153
      %p164 = scmp.eq.s32.totalorder %s28, 0
      %p165 = por %p163, %p164
      %p166 = scmp.ne.s32.totalorder %s152, %s153
      %p167 = scmp.eq.s32.totalorder %s29, 3
      %p168 = por %p166, %p167
      %p170 = scmp.ne.s32.totalorder %s153, %s169
      %p171 = scmp.eq.s32.totalorder %s29, 0
      %p172 = por %p170, %p171
      %s173 = ssub.s32 %s31, %s38
      %p174 = scmp.eq.s32.totalorder %s173, 0
      %s176 = sadd.s32 %s175, 1
      %s177 = scalar_select %p174, %s175, %s176
      %p180 = pneg %p174
      %p181 = scmp.eq.s32.totalorder %s23, 3
      %p182 = por %p180, %p181
      %p183 = scmp.ne.s32.totalorder %s175, %s178
      %p184 = scmp.eq.s32.totalorder %s23, 0
      %p185 = por %p183, %p184
      %p186 = scmp.ne.s32.totalorder %s175, %s178
      %p187 = scmp.eq.s32.totalorder %s28, 3
      %p188 = por %p186, %p187
      %p189 = scmp.ne.s32.totalorder %s178, %s179
      %p190 = scmp.eq.s32.totalorder %s28, 0
      %p191 = por %p189, %p190
      %p192 = scmp.ne.s32.totalorder %s178, %s179
      %p193 = scmp.eq.s32.totalorder %s29, 3
      %p194 = por %p192, %p193
      %p196 = scmp.ne.s32.totalorder %s179, %s195
      %p197 = scmp.eq.s32.totalorder %s29, 0
      %p198 = por %p196, %p197
      %s199 = ssub.s32 %s31, %s38
      %p200 = scmp.eq.s32.totalorder %s199, 0
      %s202 = sadd.s32 %s201, 1
      %s203 = scalar_select %p200, %s201, %s202
      %p206 = pneg %p200
      %p207 = scmp.eq.s32.totalorder %s23, 3
      %p208 = por %p206, %p207
      %p209 = scmp.ne.s32.totalorder %s201, %s204
      %p210 = scmp.eq.s32.totalorder %s23, 0
      %p211 = por %p209, %p210
      %p212 = scmp.ne.s32.totalorder %s201, %s204
      %p213 = scmp.eq.s32.totalorder %s28, 3
      %p214 = por %p212, %p213
      %p215 = scmp.ne.s32.totalorder %s204, %s205
      %p216 = scmp.eq.s32.totalorder %s28, 0
      %p217 = por %p215, %p216
      %p218 = scmp.ne.s32.totalorder %s204, %s205
      %p219 = scmp.eq.s32.totalorder %s29, 3
      %p220 = por %p218, %p219
      %p222 = scmp.ne.s32.totalorder %s205, %s221
      %p223 = scmp.eq.s32.totalorder %s29, 0
      %p224 = por %p222, %p223
      %s225 = ssub.s32 %s31, %s38
      %p226 = scmp.eq.s32.totalorder %s225, 0
      %s228 = sadd.s32 %s227, 1
      %s229 = scalar_select %p226, %s227, %s228
      %p232 = pneg %p226
      %p233 = scmp.eq.s32.totalorder %s23, 3
      %p234 = por %p232, %p233
      %p235 = scmp.ne.s32.totalorder %s227, %s230
      %p236 = scmp.eq.s32.totalorder %s23, 0
      %p237 = por %p235, %p236
      %p238 = scmp.ne.s32.totalorder %s227, %s230
      %p239 = scmp.eq.s32.totalorder %s28, 3
      %p240 = por %p238, %p239
      %p241 = scmp.ne.s32.totalorder %s230, %s231
      %p242 = scmp.eq.s32.totalorder %s28, 0
      %p243 = por %p241, %p242
      %p244 = scmp.ne.s32.totalorder %s230, %s231
      %p245 = scmp.eq.s32.totalorder %s29, 3
      %p246 = por %p244, %p245
      %p248 = scmp.ne.s32.totalorder %s231, %s247
      %p249 = scmp.eq.s32.totalorder %s29, 0
      %p250 = por %p248, %p249
      %s251 = ssub.s32 %s31, %s38
      %p252 = scmp.eq.s32.totalorder %s251, 0
      %s254 = sadd.s32 %s253, 1
      %s255 = scalar_select %p252, %s253, %s254
      %p258 = pneg %p252
      %p259 = scmp.eq.s32.totalorder %s23, 3
      %p260 = por %p258, %p259
      %p261 = scmp.ne.s32.totalorder %s253, %s256
      %p262 = scmp.eq.s32.totalorder %s23, 0
      %p263 = por %p261, %p262
      %p264 = scmp.ne.s32.totalorder %s253, %s256
      %p265 = scmp.eq.s32.totalorder %s28, 3
      %p266 = por %p264, %p265
      %p267 = scmp.ne.s32.totalorder %s256, %s257
      %p268 = scmp.eq.s32.totalorder %s28, 0
      %p269 = por %p267, %p268
      %p270 = scmp.ne.s32.totalorder %s256, %s257
      %p271 = scmp.eq.s32.totalorder %s29, 3
      %p272 = por %p270, %p271
      %p274 = scmp.ne.s32.totalorder %s257, %s273
      %p275 = scmp.eq.s32.totalorder %s29, 0
      %p276 = por %p274, %p275
      %s277 = ssub.s32 %s31, %s38
      %p278 = scmp.eq.s32.totalorder %s277, 0
      %s280 = sadd.s32 %s279, 1
      %s281 = scalar_select %p278, %s279, %s280
      %p284 = pneg %p278
      %p285 = scmp.eq.s32.totalorder %s23, 3
      %p286 = por %p284, %p285
      %p287 = scmp.ne.s32.totalorder %s279, %s282
      %p288 = scmp.eq.s32.totalorder %s23, 0
      %p289 = por %p287, %p288
      %p290 = scmp.ne.s32.totalorder %s279, %s282
      %p291 = scmp.eq.s32.totalorder %s28, 3
      %p292 = por %p290, %p291
      %p293 = scmp.ne.s32.totalorder %s282, %s283
      %p294 = scmp.eq.s32.totalorder %s28, 0
      %p295 = por %p293, %p294
      %p296 = scmp.ne.s32.totalorder %s282, %s283
      %p297 = scmp.eq.s32.totalorder %s29, 3
      %p298 = por %p296, %p297
      %p300 = scmp.ne.s32.totalorder %s283, %s299
      %p301 = scmp.eq.s32.totalorder %s29, 0
      %p302 = por %p300, %p301
      %s304 = sadd.s32 %s303, 1
      %p307 = scmp.eq.s32.totalorder %s23, 3
      %p308 = scmp.ne.s32.totalorder %s303, %s305
      %p309 = scmp.eq.s32.totalorder %s23, 0
      %p310 = por %p308, %p309
      %p311 = scmp.ne.s32.totalorder %s303, %s305
      %p312 = scmp.eq.s32.totalorder %s28, 3
      %p313 = por %p311, %p312
      %p314 = scmp.ne.s32.totalorder %s305, %s306
      %p315 = scmp.eq.s32.totalorder %s28, 0
      %p316 = por %p314, %p315
      %p317 = scmp.ne.s32.totalorder %s305, %s306
      %p318 = scmp.eq.s32.totalorder %s29, 3
      %p319 = por %p317, %p318
      %p321 = scmp.ne.s32.totalorder %s306, %s320
      %p322 = scmp.eq.s32.totalorder %s29, 0
      %p323 = por %p321, %p322
      %s325 = sadd.s32 %s324, 1
      %p328 = scmp.eq.s32.totalorder %s23, 3
      %p329 = scmp.ne.s32.totalorder %s324, %s326
      %p330 = scmp.eq.s32.totalorder %s23, 0
      %p331 = por %p329, %p330
      %p332 = scmp.ne.s32.totalorder %s324, %s326
      %p333 = scmp.eq.s32.totalorder %s28, 3
      %p334 = por %p332, %p333
      %p335 = scmp.ne.s32.totalorder %s326, %s327
      %p336 = scmp.eq.s32.totalorder %s28, 0
      %p337 = por %p335, %p336
      %p338 = scmp.ne.s32.totalorder %s326, %s327
      %p339 = scmp.eq.s32.totalorder %s29, 3
      %p340 = por %p338, %p339
      %p342 = scmp.ne.s32.totalorder %s327, %s341
      %p343 = scmp.eq.s32.totalorder %s29, 0
      %p344 = por %p342, %p343
      %s346 = sadd.s32 %s345, 1
      %p349 = scmp.eq.s32.totalorder %s23, 3
      %p350 = scmp.ne.s32.totalorder %s345, %s347
      %p351 = scmp.eq.s32.totalorder %s23, 0
      %p352 = por %p350, %p351
      %p353 = scmp.ne.s32.totalorder %s345, %s347
      %p354 = scmp.eq.s32.totalorder %s28, 3
      %p355 = por %p353, %p354
      %p356 = scmp.ne.s32.totalorder %s347, %s348
      %p357 = scmp.eq.s32.totalorder %s28, 0
      %p358 = por %p356, %p357
      %p359 = scmp.ne.s32.totalorder %s347, %s348
      %p360 = scmp.eq.s32.totalorder %s29, 3
      %p361 = por %p359, %p360
      %p363 = scmp.ne.s32.totalorder %s348, %s362
      %p364 = scmp.eq.s32.totalorder %s29, 0
      %p365 = por %p363, %p364
      %s367 = sadd.s32 %s366, 1
      %p370 = scmp.eq.s32.totalorder %s23, 3
      %p371 = scmp.ne.s32.totalorder %s366, %s368
      %p372 = scmp.eq.s32.totalorder %s23, 0
      %p373 = por %p371, %p372
      %p374 = scmp.ne.s32.totalorder %s366, %s368
      %p375 = scmp.eq.s32.totalorder %s28, 3
      %p376 = por %p374, %p375
      %p377 = scmp.ne.s32.totalorder %s368, %s369
      %p378 = scmp.eq.s32.totalorder %s28, 0
      %p379 = por %p377, %p378
      %p380 = scmp.ne.s32.totalorder %s368, %s369
      %p381 = scmp.eq.s32.totalorder %s29, 3
      %p382 = por %p380, %p381
      %p384 = scmp.ne.s32.totalorder %s369, %s383
      %p385 = scmp.eq.s32.totalorder %s29, 0
      %p386 = por %p384, %p385
      %s387 = ssub.s32 %s30, %s42
      %p388 = scmp.eq.s32.totalorder %s387, 0
      %s390 = sadd.s32 %s389, 1
      %s391 = scalar_select %p388, %s389, %s390
      %p394 = pneg %p388
      %p395 = scmp.eq.s32.totalorder %s23, 3
      %p396 = por %p394, %p395
      %p397 = scmp.ne.s32.totalorder %s389, %s392
      %p398 = scmp.eq.s32.totalorder %s23, 0
      %p399 = por %p397, %p398
      %p400 = scmp.ne.s32.totalorder %s389, %s392
      %p401 = scmp.eq.s32.totalorder %s28, 3
      %p402 = por %p400, %p401
      %p403 = scmp.ne.s32.totalorder %s392, %s393
      %p404 = scmp.eq.s32.totalorder %s28, 0
      %p405 = por %p403, %p404
      %p406 = scmp.ne.s32.totalorder %s392, %s393
      %p407 = scmp.eq.s32.totalorder %s29, 3
      %p408 = por %p406, %p407
      %p410 = scmp.ne.s32.totalorder %s393, %s409
      %p411 = scmp.eq.s32.totalorder %s29, 0
      %p412 = por %p410, %p411
      %p413 = scmp.le.s32.totalorder 1, %s23
      %p414 = scmp.lt.s32.totalorder %s23, 5
      %p415 = pnand %p413, %p414
      %p416 = pneg %p415
      // Predicated region
      $region9: #{foundationmodel_forward.3} parent=5 // pred_check
        _
      $region10: #{foundationmodel_forward.3} parent=5 // pred_check_branch
        %418 = sbr.rel (%p415) target = $region12
      $region11: #{foundationmodel_forward.3} parent=5 // pred_region
        %s419 = ssub.s32 %s23, 1
        // Predicated region
        $region13: #{foundationmodel_forward.3} parent=11 // pred_check
          %p420 = pneg %p316
        $region14: #{foundationmodel_forward.3} parent=11 // pred_check_branch
          %422 = sbr.rel (%p420) target = $region16
        $region15: #{foundationmodel_forward.3} parent=11 // pred_region
          _
        $region16: #{foundationmodel_forward.3} parent=11 // pred_fallthru
          _
        // Predicated region
        $region17: #{foundationmodel_forward.3} parent=11 // pred_check
          %p423 = pneg %p337
        $region18: #{foundationmodel_forward.3} parent=11 // pred_check_branch
          %425 = sbr.rel (%p423) target = $region20
        $region19: #{foundationmodel_forward.3} parent=11 // pred_region
          _
        $region20: #{foundationmodel_forward.3} parent=11 // pred_fallthru
          _
        // Predicated region
        $region21: #{foundationmodel_forward.3} parent=11 // pred_check
          %p426 = pneg %p358
        $region22: #{foundationmodel_forward.3} parent=11 // pred_check_branch
          %428 = sbr.rel (%p426) target = $region24
        $region23: #{foundationmodel_forward.3} parent=11 // pred_region
          _
        $region24: #{foundationmodel_forward.3} parent=11 // pred_fallthru
          _
        // Predicated region
        $region25: #{foundationmodel_forward.3} parent=11 // pred_check
          %p429 = pneg %p379
        $region26: #{foundationmodel_forward.3} parent=11 // pred_check_branch
          %431 = sbr.rel (%p429) target = $region28
        $region27: #{foundationmodel_forward.3} parent=11 // pred_region
          _
        $region28: #{foundationmodel_forward.3} parent=11 // pred_fallthru
          _
      $region12: #{foundationmodel_forward.3} parent=5 // pred_fallthru
        _
      %p432 = scmp.lt.s32.totalorder %s23, 4
      // Predicated region
      $region29: #{foundationmodel_forward.3} parent=5 // pred_check
        %p433 = pneg %p432
      $region30: #{foundationmodel_forward.3} parent=5 // pred_check_branch
        %435 = sbr.rel (%p433) target = $region32
      $region31: #{foundationmodel_forward.3} parent=5 // pred_region
        // Predicated region
        $region33: #{foundationmodel_forward.3} parent=31 // pred_check
          %p436 = pneg %p55
        $region34: #{foundationmodel_forward.3} parent=31 // pred_check_branch
          %438 = sbr.rel (%p436) target = $region36
        $region35: #{foundationmodel_forward.3} parent=31 // pred_region
          %p439 = scmp.lt.s32.totalorder %s30, 1
          %s440 = scalar_select %p439, %s30, 1
          %s441 = smul.addr %s440, 8
          %s442 = scalar_lea.vmem %s0, %s441
        $region36: #{foundationmodel_forward.3} parent=31 // pred_fallthru
          _
        // Predicated region
        $region37: #{foundationmodel_forward.3} parent=31 // pred_check
          %p443 = pneg %p81
        $region38: #{foundationmodel_forward.3} parent=31 // pred_check_branch
          %445 = sbr.rel (%p443) target = $region40
        $region39: #{foundationmodel_forward.3} parent=31 // pred_region
          %p446 = scmp.lt.s32.totalorder %s31, 1
          %s447 = scalar_select %p446, %s31, 1
          %s448 = smul.addr %s447, 8
          %s449 = smul.addr %s448, 4
          %s450 = scalar_lea.vmem %s1, %s449
        $region40: #{foundationmodel_forward.3} parent=31 // pred_fallthru
          _
        // Predicated region
        $region41: #{foundationmodel_forward.3} parent=31 // pred_check
          %p451 = pneg %p107
        $region42: #{foundationmodel_forward.3} parent=31 // pred_check_branch
          %453 = sbr.rel (%p451) target = $region44
        $region43: #{foundationmodel_forward.3} parent=31 // pred_region
          %p454 = scmp.lt.s32.totalorder %s31, 1
          %s455 = scalar_select %p454, %s31, 1
          %s456 = smul.addr %s455, 8
          %s457 = smul.addr %s456, 4
          %s458 = scalar_lea.vmem %s2, %s457
        $region44: #{foundationmodel_forward.3} parent=31 // pred_fallthru
          _
        // Predicated region
        $region45: #{foundationmodel_forward.3} parent=31 // pred_check
          %p459 = pneg %p133
        $region46: #{foundationmodel_forward.3} parent=31 // pred_check_branch
          %461 = sbr.rel (%p459) target = $region48
        $region47: #{foundationmodel_forward.3} parent=31 // pred_region
          %p462 = scmp.lt.s32.totalorder %s31, 1
          %s463 = scalar_select %p462, %s31, 1
          %s464 = smul.addr %s463, 8
          %s465 = smul.addr %s464, 4
          %s466 = scalar_lea.vmem %s3, %s465
        $region48: #{foundationmodel_forward.3} parent=31 // pred_fallthru
          _
        // Predicated region
        $region49: #{foundationmodel_forward.3} parent=31 // pred_check
          %p467 = pneg %p159
        $region50: #{foundationmodel_forward.3} parent=31 // pred_check_branch
          %469 = sbr.rel (%p467) target = $region52
        $region51: #{foundationmodel_forward.3} parent=31 // pred_region
          %p470 = scmp.lt.s32.totalorder %s31, 1
          %s471 = scalar_select %p470, %s31, 1
          %s472 = smul.addr %s471, 6
          %s473 = scalar_lea.vmem %s4, %s472
        $region52: #{foundationmodel_forward.3} parent=31 // pred_fallthru
          _
        // Predicated region
        $region53: #{foundationmodel_forward.3} parent=31 // pred_check
          %p474 = pneg %p185
        $region54: #{foundationmodel_forward.3} parent=31 // pred_check_branch
          %476 = sbr.rel (%p474) target = $region56
        $region55: #{foundationmodel_forward.3} parent=31 // pred_region
          %p477 = scmp.lt.s32.totalorder %s31, 1
          %s478 = scalar_select %p477, %s31, 1
          %s479 = smul.addr %s478, 4
          %s480 = smul.addr %s479, 4
          %s481 = scalar_lea.vmem %s5, %s480
        $region56: #{foundationmodel_forward.3} parent=31 // pred_fallthru
          _
        // Predicated region
        $region57: #{foundationmodel_forward.3} parent=31 // pred_check
          %p482 = pneg %p211
        $region58: #{foundationmodel_forward.3} parent=31 // pred_check_branch
          %484 = sbr.rel (%p482) target = $region60
        $region59: #{foundationmodel_forward.3} parent=31 // pred_region
          %p485 = scmp.lt.s32.totalorder %s31, 1
          %s486 = scalar_select %p485, %s31, 1
          %s487 = smul.addr %s486, 4
          %s488 = smul.addr %s487, 4
          %s489 = scalar_lea.vmem %s6, %s488
        $region60: #{foundationmodel_forward.3} parent=31 // pred_fallthru
          _
        // Predicated region
        $region61: #{foundationmodel_forward.3} parent=31 // pred_check
          %p490 = pneg %p237
        $region62: #{foundationmodel_forward.3} parent=31 // pred_check_branch
          %492 = sbr.rel (%p490) target = $region64
        $region63: #{foundationmodel_forward.3} parent=31 // pred_region
          %p493 = scmp.lt.s32.totalorder %s31, 1
          %s494 = scalar_select %p493, %s31, 1
          %s495 = scalar_lea.vmem %s7, %s494
        $region64: #{foundationmodel_forward.3} parent=31 // pred_fallthru
          _
        // Predicated region
        $region65: #{foundationmodel_forward.3} parent=31 // pred_check
          %p496 = pneg %p263
        $region66: #{foundationmodel_forward.3} parent=31 // pred_check_branch
          %498 = sbr.rel (%p496) target = $region68
        $region67: #{foundationmodel_forward.3} parent=31 // pred_region
          %p499 = scmp.lt.s32.totalorder %s31, 1
          %s500 = scalar_select %p499, %s31, 1
          %s501 = smul.addr %s500, 16
          %s502 = smul.addr %s501, 4
          %s503 = scalar_lea.vmem %s8, %s502
        $region68: #{foundationmodel_forward.3} parent=31 // pred_fallthru
          _
        // Predicated region
        $region69: #{foundationmodel_forward.3} parent=31 // pred_check
          %p504 = pneg %p289
        $region70: #{foundationmodel_forward.3} parent=31 // pred_check_branch
          %506 = sbr.rel (%p504) target = $region72
        $region71: #{foundationmodel_forward.3} parent=31 // pred_region
          %p507 = scmp.lt.s32.totalorder %s31, 1
          %s508 = scalar_select %p507, %s31, 1
          %s509 = smul.addr %s508, 8
          %s510 = scalar_lea.vmem %s9, %s509
        $region72: #{foundationmodel_forward.3} parent=31 // pred_fallthru
          _
      $region32: #{foundationmodel_forward.3} parent=5 // pred_fallthru
        _
      %p511 = scmp.le.s32.totalorder 1, %s23
      %p512 = scmp.lt.s32.totalorder %s23, 5
      %p513 = pnand %p511, %p512
      %p514 = pneg %p513
      // Predicated region
      $region73: #{foundationmodel_forward.3} parent=5 // pred_check
        _
      $region74: #{foundationmodel_forward.3} parent=5 // pred_check_branch
        %516 = sbr.rel (%p513) target = $region76
      $region75: #{foundationmodel_forward.3} parent=5 // pred_region
        %s517 = ssub.s32 %s23, 1
        %p518 = scmp.lt.s32.totalorder %s32, 1
        %s519 = scalar_select %p518, %s32, 1
        %s520 = smul.addr %s519, 8
        %s521 = scalar_lea.vmem %s0, %s520
        %p522 = pneg %p61
        %p523 = pneg %p58
        %p524 = scmp.lt.s32.totalorder %s33, 1
        %s525 = scalar_select %p524, %s33, 1
        %s526 = smul.addr %s525, 8
        %s527 = smul.addr %s526, 4
        %s528 = scalar_lea.vmem %s1, %s527
        %p529 = pneg %p87
        %p530 = pneg %p84
        %p531 = scmp.lt.s32.totalorder %s33, 1
        %s532 = scalar_select %p531, %s33, 1
        %s533 = smul.addr %s532, 8
        %s534 = smul.addr %s533, 4
        %s535 = scalar_lea.vmem %s2, %s534
        %p536 = pneg %p113
        %p537 = pneg %p110
        %p538 = scmp.lt.s32.totalorder %s33, 1
        %s539 = scalar_select %p538, %s33, 1
        %s540 = smul.addr %s539, 8
        %s541 = smul.addr %s540, 4
        %s542 = scalar_lea.vmem %s3, %s541
        %p543 = pneg %p139
        %p544 = pneg %p136
        %p545 = scmp.lt.s32.totalorder %s33, 1
        %s546 = scalar_select %p545, %s33, 1
        %s547 = smul.addr %s546, 6
        %s548 = scalar_lea.vmem %s4, %s547
        %p549 = pneg %p165
        %p550 = pneg %p162
        %p551 = scmp.lt.s32.totalorder %s33, 1
        %s552 = scalar_select %p551, %s33, 1
        %s553 = smul.addr %s552, 4
        %s554 = smul.addr %s553, 4
        %s555 = scalar_lea.vmem %s5, %s554
        %p556 = pneg %p191
        %p557 = pneg %p188
        %p558 = scmp.lt.s32.totalorder %s33, 1
        %s559 = scalar_select %p558, %s33, 1
        %s560 = smul.addr %s559, 4
        %s561 = smul.addr %s560, 4
        %s562 = scalar_lea.vmem %s6, %s561
        %p563 = pneg %p217
        %p564 = pneg %p214
        %p565 = scmp.lt.s32.totalorder %s33, 1
        %s566 = scalar_select %p565, %s33, 1
        %s567 = scalar_lea.vmem %s7, %s566
        %p568 = pneg %p243
        %p569 = pneg %p240
        %p570 = scmp.lt.s32.totalorder %s33, 1
        %s571 = scalar_select %p570, %s33, 1
        %s572 = smul.addr %s571, 16
        %s573 = smul.addr %s572, 4
        %s574 = scalar_lea.vmem %s8, %s573
        %p575 = pneg %p269
        %p576 = pneg %p266
        %p577 = scmp.lt.s32.totalorder %s33, 1
        %s578 = scalar_select %p577, %s33, 1
        %s579 = smul.addr %s578, 8
        %s580 = scalar_lea.vmem %s9, %s579
        %p581 = pneg %p295
        %p582 = pneg %p292
        %p583 = pneg %p316
        %p584 = pneg %p313
        %p585 = pneg %p337
        %p586 = pneg %p334
        %p587 = pneg %p358
        %p588 = pneg %p355
        %p589 = pneg %p379
        %p590 = pneg %p376
        %p591 = pneg %p405
        %p592 = pneg %p402
        %s593 = sand.u32 %s392, 1
        %s594 = scalar_lea.sflag [#allocation4], %s593
        %s595 = sand.u32 %s392, 1
        %s596 = scalar_lea.vmem [#allocation3], %s595
        %p597 = scmp.lt.s32.totalorder %s32, 1
        %s598 = scalar_select %p597, %s32, 1
        %s599 = smul.addr %s598, 8
        %s600 = scalar_lea.vmem %s0, %s599
        %p601 = scmp.lt.s32.totalorder %s33, 1
        %s602 = scalar_select %p601, %s33, 1
        %s603 = smul.addr %s602, 8
        %s604 = smul.addr %s603, 4
        %s605 = scalar_lea.vmem %s1, %s604
        %p606 = scmp.lt.s32.totalorder %s33, 1
        %s607 = scalar_select %p606, %s33, 1
        %s608 = smul.addr %s607, 8
        %s609 = smul.addr %s608, 4
        %s610 = scalar_lea.vmem %s2, %s609
        %p611 = scmp.lt.s32.totalorder %s33, 1
        %s612 = scalar_select %p611, %s33, 1
        %s613 = smul.addr %s612, 8
        %s614 = smul.addr %s613, 4
        %s615 = scalar_lea.vmem %s3, %s614
        %p616 = scmp.lt.s32.totalorder %s33, 1
        %s617 = scalar_select %p616, %s33, 1
        %s618 = smul.addr %s617, 6
        %s619 = scalar_lea.vmem %s4, %s618
        %p620 = scmp.lt.s32.totalorder %s33, 1
        %s621 = scalar_select %p620, %s33, 1
        %s622 = smul.addr %s621, 4
        %s623 = smul.addr %s622, 4
        %s624 = scalar_lea.vmem %s5, %s623
        %p625 = scmp.lt.s32.totalorder %s33, 1
        %s626 = scalar_select %p625, %s33, 1
        %s627 = smul.addr %s626, 4
        %s628 = smul.addr %s627, 4
        %s629 = scalar_lea.vmem %s6, %s628
        %p630 = scmp.lt.s32.totalorder %s33, 1
        %s631 = scalar_select %p630, %s33, 1
        %s632 = scalar_lea.vmem %s7, %s631
        %p633 = scmp.lt.s32.totalorder %s33, 1
        %s634 = scalar_select %p633, %s33, 1
        %s635 = smul.addr %s634, 16
        %s636 = smul.addr %s635, 4
        %s637 = scalar_lea.vmem %s8, %s636
        %p638 = scmp.lt.s32.totalorder %s33, 1
        %s639 = scalar_select %p638, %s33, 1
        %s640 = smul.addr %s639, 8
        %s641 = scalar_lea.vmem %s9, %s640
        %p643 = scmp.eq.s32.totalorder %s33, 0
        // Predicated region
        $region77: #{foundationmodel_forward.3} parent=75 // pred_check
          %p644 = pneg %p643
        $region78: #{foundationmodel_forward.3} parent=75 // pred_check_branch
          %646 = sbr.rel (%p644) target = $region80
        $region79: #{foundationmodel_forward.3} parent=75 // pred_region
          %v647 = vld [vmem:[%s600] sm:$0xff]
          %vm648 = vcmask 261120
          %649 = vst.msk [vmem:[#allocation2] sm:$0xff] %vm648, %v647
        $region80: #{foundationmodel_forward.3} parent=75 // pred_fallthru
          _
        %v650 = vld [vmem:[#allocation2] sm:$0xff]
        %v651 = vld [vmem:[%s641] sm:$0x1]
        %v652 = vld [vmem:[%s641 + $0x1] sm:$0x1]
        %vm653 = vcmask 261120
        %v654 = vsel %vm653, %v650, 0.0
        %655 = vadd.xlane.f32.xlu0 %v654
        %v656 = vpop.xlane.xlu0 %655
        %v657 = vrcp.pop 32.0
        %v658 = vmul.f32 %v656, %v657
        %v659 = vsub.f32 %v650, %v658
        %v660 = vmul.f32 %v659, %v659
        %v661 = vsel %vm653, %v660, 0.0
        %662 = vadd.xlane.f32.xlu0 %v661
        %v663 = vpop.xlane.xlu0 %662
        %v664 = vmul.f32 %v663, %v657
        %v665 = vadd.f32 %v664, 1e-06
        %v666 = vrsqrt.pop %v665
        %v667 = vmul.f32 %v659, %v666
        %v668 = vlaneseq
        %v669 = vshrl.u32 %v668, 7
        %v670 = vsub.s32 0, %v669
        %v671 = vrot.slane %v651, %v670
        %v672 = vmul.f32 %v667, %v671
        %v673 = vlaneseq
        %v674 = vshrl.u32 %v673, 7
        %v675 = vsub.s32 0, %v674
        %v676 = vrot.slane %v652, %v675
        %v677 = vadd.f32 %v672, %v676
        %v678 = vpack.c.bf16 %v677, %v677
        %v679 = vld [vmem:[%s619] sm:$0x1]
        %v680 = vld [vmem:[%s619 + $0x1] sm:$0x1]
        %s681 = scalar_lea.vmem %s619, 2
        %v682 = vld [vmem:[%s681] sm:$0x1]
        %v683 = vld [vmem:[%s681 + $0x1] sm:$0x1]
        %s684 = scalar_lea.vmem %s619, 4
        %v685 = vld [vmem:[%s684] sm:$0x1]
        %v686 = vld [vmem:[%s684 + $0x1] sm:$0x1]
        %v687 = vld [vmem:[%s605] sm:$0xf]
        %v688 = vld [vmem:[%s605 + $0x4] sm:$0xf]
        %v689 = vld [vmem:[%s605 + $0x8] sm:$0xf]
        %v690 = vld [vmem:[%s605 + $0xc] sm:$0xf]
        %v691 = vld [vmem:[%s605 + $0x10] sm:$0xf]
        %v692 = vld [vmem:[%s605 + $0x14] sm:$0xf]
        %v693 = vld [vmem:[%s605 + $0x18] sm:$0xf]
        %v694 = vld [vmem:[%s605 + $0x1c] sm:$0xf]
        %v697 = vlaneseq
        %v698 = vshrl.u32 %v697, 7
        %v699 = vsub.s32 0, %v698
        %v700 = vrot.slane %v679, %v699
        %v701 = vlaneseq
        %v702 = vshrl.u32 %v701, 7
        %v703 = vsub.s32 0, %v702
        %v704 = vrot.slane %v680, %v703
        %v711 = vunpack.c.l.b16 %v687
        %v712 = vunpack.c.l.b16 %v688
        %v713 = vunpack.c.l.b16 %v689
        %v714 = vunpack.c.l.b16 %v690
        %v715 = vpack.c.b16 %v712, %v711
        %v716 = vpack.c.b16 %v714, %v713
        %v720 = vsel %vm653, %v678, 0
        %722 = vmatprep.subr.bf16.mxu0 0
        %723 = vmatpush1.bf16.msra.mxu0 %v715
        %724 = vmatprep.subr.bf16.mxu0 0
        %725 = vmatpush1.bf16.msra.mxu0 %v716
        %726 = vmatprep.subr.bf16.mxu0 0
        %727 = vmatpush1.bf16.msra.mxu0 0
        %728 = vmatprep.subr.bf16.mxu0 0
        %729 = vmatpush1.bf16.msra.mxu0 0
        %730 = vmatprep.subr.bf16.mxu0 0
        %731 = vmatpush1.bf16.msra.mxu0 0
        %732 = vmatprep.subr.bf16.mxu0 0
        %733 = vmatpush1.bf16.msra.mxu0 0
        %734 = vmatprep.subr.bf16.mxu0 0
        %735 = vmatpush1.bf16.msra.mxu0 0
        %736 = vmatprep.subr.bf16.mxu0 0
        %737 = vmatpush1.bf16.msra.mxu0 0
        %738 = vmatprep.subr.bf16.mxu0 0
        %739 = vmatpush1.bf16.msra.mxu0 0
        %740 = vmatprep.subr.bf16.mxu0 0
        %741 = vmatpush1.bf16.msra.mxu0 0
        %742 = vmatprep.subr.bf16.mxu0 0
        %743 = vmatpush1.bf16.msra.mxu0 0
        %744 = vmatprep.subr.bf16.mxu0 0
        %745 = vmatpush1.bf16.msra.mxu0 0
        %746 = vmatprep.subr.bf16.mxu0 0
        %747 = vmatpush1.bf16.msra.mxu0 0
        %748 = vmatprep.subr.bf16.mxu0 0
        %749 = vmatpush1.bf16.msra.mxu0 0
        %750 = vmatprep.subr.bf16.mxu0 0
        %751 = vmatpush1.bf16.msra.mxu0 0
        %752 = vmatprep.subr.bf16.mxu0 0
        %753 = vmatpush1.bf16.msra.mxu0 0
        %754 = vmatprep.mubr.bf16.mxu0 0
        %755 = vmatmul.mubr.bf16.gmra.mrb[0].mxu0 %v720
        %v756 = vpop.f32.mrb[0].mxu0
        %v757 = vadd.f32 %v700, %v756
        %v758 = vpop.f32.mrb[0].mxu0
        %v759 = vpop.f32.mrb[0].mxu0
        %v760 = vpop.f32.mrb[0].mxu0
        %761 = vdwg.mxu0
        %v766 = vunpack.c.l.b16 %v691
        %v767 = vunpack.c.l.b16 %v692
        %v768 = vunpack.c.l.b16 %v693
        %v769 = vunpack.c.l.b16 %v694
        %v770 = vpack.c.b16 %v767, %v766
        %v771 = vpack.c.b16 %v769, %v768
        %774 = vmatprep.subr.bf16.mxu0 0
        %775 = vmatpush1.bf16.msra.mxu0 %v770
        %776 = vmatprep.subr.bf16.mxu0 0
        %777 = vmatpush1.bf16.msra.mxu0 %v771
        %778 = vmatprep.subr.bf16.mxu0 0
        %779 = vmatpush1.bf16.msra.mxu0 0
        %780 = vmatprep.subr.bf16.mxu0 0
        %781 = vmatpush1.bf16.msra.mxu0 0
        %782 = vmatprep.subr.bf16.mxu0 0
        %783 = vmatpush1.bf16.msra.mxu0 0
        %784 = vmatprep.subr.bf16.mxu0 0
        %785 = vmatpush1.bf16.msra.mxu0 0
        %786 = vmatprep.subr.bf16.mxu0 0
        %787 = vmatpush1.bf16.msra.mxu0 0
        %788 = vmatprep.subr.bf16.mxu0 0
        %789 = vmatpush1.bf16.msra.mxu0 0
        %790 = vmatprep.subr.bf16.mxu0 0
        %791 = vmatpush1.bf16.msra.mxu0 0
        %792 = vmatprep.subr.bf16.mxu0 0
        %793 = vmatpush1.bf16.msra.mxu0 0
        %794 = vmatprep.subr.bf16.mxu0 0
        %795 = vmatpush1.bf16.msra.mxu0 0
        %796 = vmatprep.subr.bf16.mxu0 0
        %797 = vmatpush1.bf16.msra.mxu0 0
        %798 = vmatprep.subr.bf16.mxu0 0
        %799 = vmatpush1.bf16.msra.mxu0 0
        %800 = vmatprep.subr.bf16.mxu0 0
        %801 = vmatpush1.bf16.msra.mxu0 0
        %802 = vmatprep.subr.bf16.mxu0 0
        %803 = vmatpush1.bf16.msra.mxu0 0
        %804 = vmatprep.subr.bf16.mxu0 0
        %805 = vmatpush1.bf16.msra.mxu0 0
        %806 = vmatprep.mubr.bf16.mxu0 0
        %807 = vmatmul.mubr.bf16.gmra.mrb[0].mxu0 %v720
        %v808 = vpop.f32.mrb[0].mxu0
        %v809 = vadd.f32 %v704, %v808
        %v810 = vpop.f32.mrb[0].mxu0
        %v811 = vpop.f32.mrb[0].mxu0
        %v812 = vpop.f32.mrb[0].mxu0
        %813 = vdwg.mxu0
        %v814 = vmul.f32 %v757, 0.25
        %v815 = vmul.f32 %v809, 0.25
        %v816 = vpack.c.bf16 %v814, %v814
        %v817 = vpack.c.bf16 %v815, %v815
        %v818 = vld [vmem:[%s610] sm:$0xf]
        %v819 = vld [vmem:[%s610 + $0x4] sm:$0xf]
        %v820 = vld [vmem:[%s610 + $0x8] sm:$0xf]
        %v821 = vld [vmem:[%s610 + $0xc] sm:$0xf]
        %v822 = vld [vmem:[%s610 + $0x10] sm:$0xf]
        %v823 = vld [vmem:[%s610 + $0x14] sm:$0xf]
        %v824 = vld [vmem:[%s610 + $0x18] sm:$0xf]
        %v825 = vld [vmem:[%s610 + $0x1c] sm:$0xf]
        %v828 = vlaneseq
        %v829 = vshrl.u32 %v828, 7
        %v830 = vsub.s32 0, %v829
        %v831 = vrot.slane %v682, %v830
        %v832 = vlaneseq
        %v833 = vshrl.u32 %v832, 7
        %v834 = vsub.s32 0, %v833
        %v835 = vrot.slane %v683, %v834
        %v842 = vunpack.c.l.b16 %v818
        %v843 = vunpack.c.l.b16 %v819
        %v844 = vunpack.c.l.b16 %v820
        %v845 = vunpack.c.l.b16 %v821
        %v846 = vpack.c.b16 %v843, %v842
        %v847 = vpack.c.b16 %v845, %v844
        %850 = vmatprep.subr.bf16.mxu0 0
        %851 = vmatpush1.bf16.msra.mxu0 %v846
        %852 = vmatprep.subr.bf16.mxu0 0
        %853 = vmatpush1.bf16.msra.mxu0 %v847
        %854 = vmatprep.subr.bf16.mxu0 0
        %855 = vmatpush1.bf16.msra.mxu0 0
        %856 = vmatprep.subr.bf16.mxu0 0
        %857 = vmatpush1.bf16.msra.mxu0 0
        %858 = vmatprep.subr.bf16.mxu0 0
        %859 = vmatpush1.bf16.msra.mxu0 0
        %860 = vmatprep.subr.bf16.mxu0 0
        %861 = vmatpush1.bf16.msra.mxu0 0
        %862 = vmatprep.subr.bf16.mxu0 0
        %863 = vmatpush1.bf16.msra.mxu0 0
        %864 = vmatprep.subr.bf16.mxu0 0
        %865 = vmatpush1.bf16.msra.mxu0 0
        %866 = vmatprep.subr.bf16.mxu0 0
        %867 = vmatpush1.bf16.msra.mxu0 0
        %868 = vmatprep.subr.bf16.mxu0 0
        %869 = vmatpush1.bf16.msra.mxu0 0
        %870 = vmatprep.subr.bf16.mxu0 0
        %871 = vmatpush1.bf16.msra.mxu0 0
        %872 = vmatprep.subr.bf16.mxu0 0
        %873 = vmatpush1.bf16.msra.mxu0 0
        %874 = vmatprep.subr.bf16.mxu0 0
        %875 = vmatpush1.bf16.msra.mxu0 0
        %876 = vmatprep.subr.bf16.mxu0 0
        %877 = vmatpush1.bf16.msra.mxu0 0
        %878 = vmatprep.subr.bf16.mxu0 0
        %879 = vmatpush1.bf16.msra.mxu0 0
        %880 = vmatprep.subr.bf16.mxu0 0
        %881 = vmatpush1.bf16.msra.mxu0 0
        %882 = vmatprep.mubr.bf16.mxu0 0
        %883 = vmatmul.mubr.bf16.gmra.mrb[0].mxu0 %v720
        %v884 = vpop.f32.mrb[0].mxu0
        %v885 = vadd.f32 %v831, %v884
        %v886 = vpop.f32.mrb[0].mxu0
        %v887 = vpop.f32.mrb[0].mxu0
        %v888 = vpop.f32.mrb[0].mxu0
        %889 = vdwg.mxu0
        %v894 = vunpack.c.l.b16 %v822
        %v895 = vunpack.c.l.b16 %v823
        %v896 = vunpack.c.l.b16 %v824
        %v897 = vunpack.c.l.b16 %v825
        %v898 = vpack.c.b16 %v895, %v894
        %v899 = vpack.c.b16 %v897, %v896
        %902 = vmatprep.subr.bf16.mxu0 0
        %903 = vmatpush1.bf16.msra.mxu0 %v898
        %904 = vmatprep.subr.bf16.mxu0 0
        %905 = vmatpush1.bf16.msra.mxu0 %v899
        %906 = vmatprep.subr.bf16.mxu0 0
        %907 = vmatpush1.bf16.msra.mxu0 0
        %908 = vmatprep.subr.bf16.mxu0 0
        %909 = vmatpush1.bf16.msra.mxu0 0
        %910 = vmatprep.subr.bf16.mxu0 0
        %911 = vmatpush1.bf16.msra.mxu0 0
        %912 = vmatprep.subr.bf16.mxu0 0
        %913 = vmatpush1.bf16.msra.mxu0 0
        %914 = vmatprep.subr.bf16.mxu0 0
        %915 = vmatpush1.bf16.msra.mxu0 0
        %916 = vmatprep.subr.bf16.mxu0 0
        %917 = vmatpush1.bf16.msra.mxu0 0
        %918 = vmatprep.subr.bf16.mxu0 0
        %919 = vmatpush1.bf16.msra.mxu0 0
        %920 = vmatprep.subr.bf16.mxu0 0
        %921 = vmatpush1.bf16.msra.mxu0 0
        %922 = vmatprep.subr.bf16.mxu0 0
        %923 = vmatpush1.bf16.msra.mxu0 0
        %924 = vmatprep.subr.bf16.mxu0 0
        %925 = vmatpush1.bf16.msra.mxu0 0
        %926 = vmatprep.subr.bf16.mxu0 0
        %927 = vmatpush1.bf16.msra.mxu0 0
        %928 = vmatprep.subr.bf16.mxu0 0
        %929 = vmatpush1.bf16.msra.mxu0 0
        %930 = vmatprep.subr.bf16.mxu0 0
        %931 = vmatpush1.bf16.msra.mxu0 0
        %932 = vmatprep.subr.bf16.mxu0 0
        %933 = vmatpush1.bf16.msra.mxu0 0
        %934 = vmatprep.mubr.bf16.mxu0 0
        %935 = vmatmul.mubr.bf16.gmra.mrb[0].mxu0 %v720
        %v936 = vpop.f32.mrb[0].mxu0
        %v937 = vadd.f32 %v835, %v936
        %v938 = vpop.f32.mrb[0].mxu0
        %v939 = vpop.f32.mrb[0].mxu0
        %v940 = vpop.f32.mrb[0].mxu0
        %941 = vdwg.mxu0
        %v942 = vpack.c.bf16 %v885, %v885
        %v943 = vpack.c.bf16 %v937, %v937
        %v944 = vld [vmem:[%s615] sm:$0xf]
        %v945 = vld [vmem:[%s615 + $0x4] sm:$0xf]
        %v946 = vld [vmem:[%s615 + $0x8] sm:$0xf]
        %v947 = vld [vmem:[%s615 + $0xc] sm:$0xf]
        %v948 = vld [vmem:[%s615 + $0x10] sm:$0xf]
        %v949 = vld [vmem:[%s615 + $0x14] sm:$0xf]
        %v950 = vld [vmem:[%s615 + $0x18] sm:$0xf]
        %v951 = vld [vmem:[%s615 + $0x1c] sm:$0xf]
        %v954 = vlaneseq
        %v955 = vshrl.u32 %v954, 7
        %v956 = vsub.s32 0, %v955
        %v957 = vrot.slane %v685, %v956
        %v958 = vlaneseq
        %v959 = vshrl.u32 %v958, 7
        %v960 = vsub.s32 0, %v959
        %v961 = vrot.slane %v686, %v960
        %v968 = vunpack.c.l.b16 %v944
        %v969 = vunpack.c.l.b16 %v945
        %v970 = vunpack.c.l.b16 %v946
        %v971 = vunpack.c.l.b16 %v947
        %v972 = vpack.c.b16 %v969, %v968
        %v973 = vpack.c.b16 %v971, %v970
        %976 = vmatprep.subr.bf16.mxu0 0
        %977 = vmatpush1.bf16.msra.mxu0 %v972
        %978 = vmatprep.subr.bf16.mxu0 0
        %979 = vmatpush1.bf16.msra.mxu0 %v973
        %980 = vmatprep.subr.bf16.mxu0 0
        %981 = vmatpush1.bf16.msra.mxu0 0
        %982 = vmatprep.subr.bf16.mxu0 0
        %983 = vmatpush1.bf16.msra.mxu0 0
        %984 = vmatprep.subr.bf16.mxu0 0
        %985 = vmatpush1.bf16.msra.mxu0 0
        %986 = vmatprep.subr.bf16.mxu0 0
        %987 = vmatpush1.bf16.msra.mxu0 0
        %988 = vmatprep.subr.bf16.mxu0 0
        %989 = vmatpush1.bf16.msra.mxu0 0
        %990 = vmatprep.subr.bf16.mxu0 0
        %991 = vmatpush1.bf16.msra.mxu0 0
        %992 = vmatprep.subr.bf16.mxu0 0
        %993 = vmatpush1.bf16.msra.mxu0 0
        %994 = vmatprep.subr.bf16.mxu0 0
        %995 = vmatpush1.bf16.msra.mxu0 0
        %996 = vmatprep.subr.bf16.mxu0 0
        %997 = vmatpush1.bf16.msra.mxu0 0
        %998 = vmatprep.subr.bf16.mxu0 0
        %999 = vmatpush1.bf16.msra.mxu0 0
        %1000 = vmatprep.subr.bf16.mxu0 0
        %1001 = vmatpush1.bf16.msra.mxu0 0
        %1002 = vmatprep.subr.bf16.mxu0 0
        %1003 = vmatpush1.bf16.msra.mxu0 0
        %1004 = vmatprep.subr.bf16.mxu0 0
        %1005 = vmatpush1.bf16.msra.mxu0 0
        %1006 = vmatprep.subr.bf16.mxu0 0
        %1007 = vmatpush1.bf16.msra.mxu0 0
        %1008 = vmatprep.mubr.bf16.mxu0 0
        %1009 = vmatmul.mubr.bf16.gmra.mrb[0].mxu0 %v720
        %v1010 = vpop.f32.mrb[0].mxu0
        %v1011 = vadd.f32 %v957, %v1010
        %v1012 = vpop.f32.mrb[0].mxu0
        %v1013 = vpop.f32.mrb[0].mxu0
        %v1014 = vpop.f32.mrb[0].mxu0
        %1015 = vdwg.mxu0
        %v1020 = vunpack.c.l.b16 %v948
        %v1021 = vunpack.c.l.b16 %v949
        %v1022 = vunpack.c.l.b16 %v950
        %v1023 = vunpack.c.l.b16 %v951
        %v1024 = vpack.c.b16 %v1021, %v1020
        %v1025 = vpack.c.b16 %v1023, %v1022
        %1028 = vmatprep.subr.bf16.mxu0 0
        %1029 = vmatpush1.bf16.msra.mxu0 %v1024
        %1030 = vmatprep.subr.bf16.mxu0 0
        %1031 = vmatpush1.bf16.msra.mxu0 %v1025
        %1032 = vmatprep.subr.bf16.mxu0 0
        %1033 = vmatpush1.bf16.msra.mxu0 0
        %1034 = vmatprep.subr.bf16.mxu0 0
        %1035 = vmatpush1.bf16.msra.mxu0 0
        %1036 = vmatprep.subr.bf16.mxu0 0
        %1037 = vmatpush1.bf16.msra.mxu0 0
        %1038 = vmatprep.subr.bf16.mxu0 0
        %1039 = vmatpush1.bf16.msra.mxu0 0
        %1040 = vmatprep.subr.bf16.mxu0 0
        %1041 = vmatpush1.bf16.msra.mxu0 0
        %1042 = vmatprep.subr.bf16.mxu0 0
        %1043 = vmatpush1.bf16.msra.mxu0 0
        %1044 = vmatprep.subr.bf16.mxu0 0
        %1045 = vmatpush1.bf16.msra.mxu0 0
        %1046 = vmatprep.subr.bf16.mxu0 0
        %1047 = vmatpush1.bf16.msra.mxu0 0
        %1048 = vmatprep.subr.bf16.mxu0 0
        %1049 = vmatpush1.bf16.msra.mxu0 0
        %1050 = vmatprep.subr.bf16.mxu0 0
        %1051 = vmatpush1.bf16.msra.mxu0 0
        %1052 = vmatprep.subr.bf16.mxu0 0
        %1053 = vmatpush1.bf16.msra.mxu0 0
        %1054 = vmatprep.subr.bf16.mxu0 0
        %1055 = vmatpush1.bf16.msra.mxu0 0
        %1056 = vmatprep.subr.bf16.mxu0 0
        %1057 = vmatpush1.bf16.msra.mxu0 0
        %1058 = vmatprep.subr.bf16.mxu0 0
        %1059 = vmatpush1.bf16.msra.mxu0 0
        %1060 = vmatprep.mubr.bf16.mxu0 0
        %1061 = vmatmul.mubr.bf16.gmra.mrb[0].mxu0 %v720
        %v1062 = vpop.f32.mrb[0].mxu0
        %v1063 = vadd.f32 %v961, %v1062
        %v1064 = vpop.f32.mrb[0].mxu0
        %v1065 = vpop.f32.mrb[0].mxu0
        %v1066 = vpop.f32.mrb[0].mxu0
        %1067 = vdwg.mxu0
        %v1068 = vpack.c.bf16 %v1011, %v1011
        %v1069 = vpack.c.bf16 %v1063, %v1063
        %vm1070 = vcmask 130048
        %v1072 = vsel %vm1070, %v816, 0
        %v1075 = vsel %vm1070, %v942, 0
        %1077 = vmatprep.subr.bf16.mxu0 0
        %1078 = vmatpush1.bf16.xpose.msra.mxu0 %v1075
        %1079 = vmatprep.subr.bf16.mxu0 0
        %1080 = vmatpush1.bf16.xpose.msra.mxu0 0
        %1081 = vmatprep.subr.bf16.mxu0 0
        %1082 = vmatpush1.bf16.xpose.msra.mxu0 0
        %1083 = vmatprep.subr.bf16.mxu0 0
        %1084 = vmatpush1.bf16.xpose.msra.mxu0 0
        %1085 = vmatprep.subr.bf16.mxu0 0
        %1086 = vmatpush1.bf16.xpose.msra.mxu0 0
        %1087 = vmatprep.subr.bf16.mxu0 0
        %1088 = vmatpush1.bf16.xpose.msra.mxu0 0
        %1089 = vmatprep.subr.bf16.mxu0 0
        %1090 = vmatpush1.bf16.xpose.msra.mxu0 0
        %1091 = vmatprep.subr.bf16.mxu0 0
        %1092 = vmatpush1.bf16.xpose.msra.mxu0 0
        %1093 = vmatprep.subr.bf16.mxu0 0
        %1094 = vmatpush1.bf16.xpose.msra.mxu0 0
        %1095 = vmatprep.subr.bf16.mxu0 0
        %1096 = vmatpush1.bf16.xpose.msra.mxu0 0
        %1097 = vmatprep.subr.bf16.mxu0 0
        %1098 = vmatpush1.bf16.xpose.msra.mxu0 0
        %1099 = vmatprep.subr.bf16.mxu0 0
        %1100 = vmatpush1.bf16.xpose.msra.mxu0 0
        %1101 = vmatprep.subr.bf16.mxu0 0
        %1102 = vmatpush1.bf16.xpose.msra.mxu0 0
        %1103 = vmatprep.subr.bf16.mxu0 0
        %1104 = vmatpush1.bf16.xpose.msra.mxu0 0
        %1105 = vmatprep.subr.bf16.mxu0 0
        %1106 = vmatpush1.bf16.xpose.msra.mxu0 0
        %1107 = vmatprep.subr.bf16.mxu0 0
        %1108 = vmatpush1.bf16.xpose.msra.mxu0 0
        %1109 = vmatprep.mubr.bf16.mxu0 0
        %1110 = vmatmul.mubr.bf16.gmra.mrb[0].mxu0 %v1072
        %v1111 = vpop.f32.mrb[0].mxu0
        %v1112 = vadd.f32 0.0, %v1111
        %v1113 = vpop.f32.mrb[0].mxu0
        %v1114 = vpop.f32.mrb[0].mxu0
        %v1115 = vpop.f32.mrb[0].mxu0
        %1116 = vdwg.mxu0
        %v1118 = vsel %vm1070, %v817, 0
        %v1121 = vsel %vm1070, %v943, 0
        %1123 = vmatprep.subr.bf16.mxu0 0
        %1124 = vmatpush1.bf16.xpose.msra.mxu0 %v1121
        %1125 = vmatprep.subr.bf16.mxu0 0
        %1126 = vmatpush1.bf16.xpose.msra.mxu0 0
        %1127 = vmatprep.subr.bf16.mxu0 0
        %1128 = vmatpush1.bf16.xpose.msra.mxu0 0
        %1129 = vmatprep.subr.bf16.mxu0 0
        %1130 = vmatpush1.bf16.xpose.msra.mxu0 0
        %1131 = vmatprep.subr.bf16.mxu0 0
        %1132 = vmatpush1.bf16.xpose.msra.mxu0 0
        %1133 = vmatprep.subr.bf16.mxu0 0
        %1134 = vmatpush1.bf16.xpose.msra.mxu0 0
        %1135 = vmatprep.subr.bf16.mxu0 0
        %1136 = vmatpush1.bf16.xpose.msra.mxu0 0
        %1137 = vmatprep.subr.bf16.mxu0 0
        %1138 = vmatpush1.bf16.xpose.msra.mxu0 0
        %1139 = vmatprep.subr.bf16.mxu0 0
        %1140 = vmatpush1.bf16.xpose.msra.mxu0 0
        %1141 = vmatprep.subr.bf16.mxu0 0
        %1142 = vmatpush1.bf16.xpose.msra.mxu0 0
        %1143 = vmatprep.subr.bf16.mxu0 0
        %1144 = vmatpush1.bf16.xpose.msra.mxu0 0
        %1145 = vmatprep.subr.bf16.mxu0 0
        %1146 = vmatpush1.bf16.xpose.msra.mxu0 0
        %1147 = vmatprep.subr.bf16.mxu0 0
        %1148 = vmatpush1.bf16.xpose.msra.mxu0 0
        %1149 = vmatprep.subr.bf16.mxu0 0
        %1150 = vmatpush1.bf16.xpose.msra.mxu0 0
        %1151 = vmatprep.subr.bf16.mxu0 0
        %1152 = vmatpush1.bf16.xpose.msra.mxu0 0
        %1153 = vmatprep.subr.bf16.mxu0 0
        %1154 = vmatpush1.bf16.xpose.msra.mxu0 0
        %1155 = vmatprep.mubr.bf16.mxu0 0
        %1156 = vmatmul.mubr.bf16.gmra.mrb[0].mxu0 %v1118
        %v1157 = vpop.f32.mrb[0].mxu0
        %v1158 = vadd.f32 0.0, %v1157
        %v1159 = vpop.f32.mrb[0].mxu0
        %v1160 = vpop.f32.mrb[0].mxu0
        %v1161 = vpop.f32.mrb[0].mxu0
        %1162 = vdwg.mxu0
        %v1163 = vlaneseq
        %v1164 = vand.u32 %v1163, 127
        %vm1165 = vcmp.lt.s32.totalorder %v1164, 5
        %v1166 = vsel %vm1165, 1, 0
        %vm1167 = vcmp.eq.s32.totalorder %v1166, 1
        %v1168 = vsel %vm1167, %v1112, -1e+30
        %v1169 = vsel %vm1167, %v1158, -1e+30
        %vm1170 = vcmask 64512
        %v1171 = vsel %vm1170, %v1168, -inf
        %1172 = vmax.xlane.f32.xlu0 %v1171
        %v1173 = vpop.xlane.xlu0 %1172
        %v1174 = vsel %vm1170, %v1169, -inf
        %1175 = vmax.xlane.f32.xlu0 %v1174
        %v1176 = vpop.xlane.xlu0 %1175
        %v1177 = vsub.f32 %v1168, %v1173
        %v1178 = vsub.f32 %v1169, %v1176
        %v1179 = vmul.f32 %v1177, 1.442695
        %v1180 = vpow.pop %v1179
        %v1181 = vmul.f32 %v1178, 1.442695
        %v1182 = vpow.pop %v1181
        %v1183 = vsel %vm1170, %v1180, 0.0
        %1184 = vadd.xlane.f32.xlu0 %v1183
        %v1185 = vpop.xlane.xlu0 %1184
        %v1186 = vsel %vm1170, %v1182, 0.0
        %1187 = vadd.xlane.f32.xlu0 %v1186
        %v1188 = vpop.xlane.xlu0 %1187
        %v1189 = vrcp.pop %v1185
        %v1190 = vrcp.pop %v1188
        %v1191 = vmul.f32 %v1180, %v1189
        %v1192 = vmul.f32 %v1182, %v1190
        %v1193 = vpack.c.bf16 %v1191, %v1191
        %v1194 = vpack.c.bf16 %v1192, %v1192
        %v1196 = vsel %vm1170, %v1193, 0
        %vm1198 = vcmask 1043456
        %v1200 = vsel %vm1198, %v1068, 0
        %1202 = vmatprep.subr.bf16.mxu0 0
        %1203 = vmatpush1.bf16.msra.mxu0 %v1200
        %1204 = vmatprep.subr.bf16.mxu0 0
        %1205 = vmatpush1.bf16.msra.mxu0 0
        %1206 = vmatprep.subr.bf16.mxu0 0
        %1207 = vmatpush1.bf16.msra.mxu0 0
        %1208 = vmatprep.subr.bf16.mxu0 0
        %1209 = vmatpush1.bf16.msra.mxu0 0
        %1210 = vmatprep.subr.bf16.mxu0 0
        %1211 = vmatpush1.bf16.msra.mxu0 0
        %1212 = vmatprep.subr.bf16.mxu0 0
        %1213 = vmatpush1.bf16.msra.mxu0 0
        %1214 = vmatprep.subr.bf16.mxu0 0
        %1215 = vmatpush1.bf16.msra.mxu0 0
        %1216 = vmatprep.subr.bf16.mxu0 0
        %1217 = vmatpush1.bf16.msra.mxu0 0
        %1218 = vmatprep.subr.bf16.mxu0 0
        %1219 = vmatpush1.bf16.msra.mxu0 0
        %1220 = vmatprep.subr.bf16.mxu0 0
        %1221 = vmatpush1.bf16.msra.mxu0 0
        %1222 = vmatprep.subr.bf16.mxu0 0
        %1223 = vmatpush1.bf16.msra.mxu0 0
        %1224 = vmatprep.subr.bf16.mxu0 0
        %1225 = vmatpush1.bf16.msra.mxu0 0
        %1226 = vmatprep.subr.bf16.mxu0 0
        %1227 = vmatpush1.bf16.msra.mxu0 0
        %1228 = vmatprep.subr.bf16.mxu0 0
        %1229 = vmatpush1.bf16.msra.mxu0 0
        %1230 = vmatprep.subr.bf16.mxu0 0
        %1231 = vmatpush1.bf16.msra.mxu0 0
        %1232 = vmatprep.subr.bf16.mxu0 0
        %1233 = vmatpush1.bf16.msra.mxu0 0
        %1234 = vmatprep.mubr.bf16.mxu0 0
        %1235 = vmatmul.mubr.bf16.gmra.mrb[0].mxu0 %v1196
        %v1236 = vpop.f32.mrb[0].mxu0
        %v1237 = vadd.f32 0.0, %v1236
        %v1238 = vpop.f32.mrb[0].mxu0
        %v1239 = vpop.f32.mrb[0].mxu0
        %v1240 = vpop.f32.mrb[0].mxu0
        %1241 = vdwg.mxu0
        %v1243 = vsel %vm1170, %v1194, 0
        %v1246 = vsel %vm1198, %v1069, 0
        %1248 = vmatprep.subr.bf16.mxu0 0
        %1249 = vmatpush1.bf16.msra.mxu0 %v1246
        %1250 = vmatprep.subr.bf16.mxu0 0
        %1251 = vmatpush1.bf16.msra.mxu0 0
        %1252 = vmatprep.subr.bf16.mxu0 0
        %1253 = vmatpush1.bf16.msra.mxu0 0
        %1254 = vmatprep.subr.bf16.mxu0 0
        %1255 = vmatpush1.bf16.msra.mxu0 0
        %1256 = vmatprep.subr.bf16.mxu0 0
        %1257 = vmatpush1.bf16.msra.mxu0 0
        %1258 = vmatprep.subr.bf16.mxu0 0
        %1259 = vmatpush1.bf16.msra.mxu0 0
        %1260 = vmatprep.subr.bf16.mxu0 0
        %1261 = vmatpush1.bf16.msra.mxu0 0
        %1262 = vmatprep.subr.bf16.mxu0 0
        %1263 = vmatpush1.bf16.msra.mxu0 0
        %1264 = vmatprep.subr.bf16.mxu0 0
        %1265 = vmatpush1.bf16.msra.mxu0 0
        %1266 = vmatprep.subr.bf16.mxu0 0
        %1267 = vmatpush1.bf16.msra.mxu0 0
        %1268 = vmatprep.subr.bf16.mxu0 0
        %1269 = vmatpush1.bf16.msra.mxu0 0
        %1270 = vmatprep.subr.bf16.mxu0 0
        %1271 = vmatpush1.bf16.msra.mxu0 0
        %1272 = vmatprep.subr.bf16.mxu0 0
        %1273 = vmatpush1.bf16.msra.mxu0 0
        %1274 = vmatprep.subr.bf16.mxu0 0
        %1275 = vmatpush1.bf16.msra.mxu0 0
        %1276 = vmatprep.subr.bf16.mxu0 0
        %1277 = vmatpush1.bf16.msra.mxu0 0
        %1278 = vmatprep.subr.bf16.mxu0 0
        %1279 = vmatpush1.bf16.msra.mxu0 0
        %1280 = vmatprep.mubr.bf16.mxu0 0
        %1281 = vmatmul.mubr.bf16.gmra.mrb[0].mxu0 %v1243
        %v1282 = vpop.f32.mrb[0].mxu0
        %v1283 = vadd.f32 0.0, %v1282
        %v1284 = vpop.f32.mrb[0].mxu0
        %v1285 = vpop.f32.mrb[0].mxu0
        %v1286 = vpop.f32.mrb[0].mxu0
        %1287 = vdwg.mxu0
        %v1288 = vpack.c.bf16 %v1237, %v1237
        %v1289 = vpack.c.bf16 %v1283, %v1283
        %v1290 = vld [vmem:[%s624] sm:$0xf]
        %v1291 = vld [vmem:[%s624 + $0x4] sm:$0xf]
        %v1292 = vld [vmem:[%s624 + $0x8] sm:$0xf]
        %v1293 = vld [vmem:[%s624 + $0xc] sm:$0xf]
        %v1296 = vunpack.c.l.b16 %v1290
        %v1297 = vunpack.c.l.b16 %v1291
        %v1298 = vpack.c.b16 %v1297, %v1296
        %v1301 = vsel %vm1070, %v1288, 0
        %1303 = vmatprep.subr.bf16.mxu0 0
        %1304 = vmatpush1.bf16.msra.mxu0 %v1298
        %1305 = vmatprep.subr.bf16.mxu0 0
        %1306 = vmatpush1.bf16.msra.mxu0 0
        %1307 = vmatprep.subr.bf16.mxu0 0
        %1308 = vmatpush1.bf16.msra.mxu0 0
        %1309 = vmatprep.subr.bf16.mxu0 0
        %1310 = vmatpush1.bf16.msra.mxu0 0
        %1311 = vmatprep.subr.bf16.mxu0 0
        %1312 = vmatpush1.bf16.msra.mxu0 0
        %1313 = vmatprep.subr.bf16.mxu0 0
        %1314 = vmatpush1.bf16.msra.mxu0 0
        %1315 = vmatprep.subr.bf16.mxu0 0
        %1316 = vmatpush1.bf16.msra.mxu0 0
        %1317 = vmatprep.subr.bf16.mxu0 0
        %1318 = vmatpush1.bf16.msra.mxu0 0
        %1319 = vmatprep.subr.bf16.mxu0 0
        %1320 = vmatpush1.bf16.msra.mxu0 0
        %1321 = vmatprep.subr.bf16.mxu0 0
        %1322 = vmatpush1.bf16.msra.mxu0 0
        %1323 = vmatprep.subr.bf16.mxu0 0
        %1324 = vmatpush1.bf16.msra.mxu0 0
        %1325 = vmatprep.subr.bf16.mxu0 0
        %1326 = vmatpush1.bf16.msra.mxu0 0
        %1327 = vmatprep.subr.bf16.mxu0 0
        %1328 = vmatpush1.bf16.msra.mxu0 0
        %1329 = vmatprep.subr.bf16.mxu0 0
        %1330 = vmatpush1.bf16.msra.mxu0 0
        %1331 = vmatprep.subr.bf16.mxu0 0
        %1332 = vmatpush1.bf16.msra.mxu0 0
        %1333 = vmatprep.subr.bf16.mxu0 0
        %1334 = vmatpush1.bf16.msra.mxu0 0
        %1335 = vmatprep.mubr.bf16.mxu0 0
        %1336 = vmatmul.mubr.bf16.gmra.mrb[0].mxu0 %v1301
        %v1337 = vpop.f32.mrb[0].mxu0
        %v1338 = vadd.f32 0.0, %v1337
        %v1339 = vpop.f32.mrb[0].mxu0
        %v1340 = vpop.f32.mrb[0].mxu0
        %v1341 = vpop.f32.mrb[0].mxu0
        %1342 = vdwg.mxu0
        %v1345 = vunpack.c.l.b16 %v1292
        %v1346 = vunpack.c.l.b16 %v1293
        %v1347 = vpack.c.b16 %v1346, %v1345
        %v1350 = vsel %vm1070, %v1289, 0
        %1352 = vmatprep.subr.bf16.mxu0 0
        %1353 = vmatpush1.bf16.msra.mxu0 %v1347
        %1354 = vmatprep.subr.bf16.mxu0 0
        %1355 = vmatpush1.bf16.msra.mxu0 0
        %1356 = vmatprep.subr.bf16.mxu0 0
        %1357 = vmatpush1.bf16.msra.mxu0 0
        %1358 = vmatprep.subr.bf16.mxu0 0
        %1359 = vmatpush1.bf16.msra.mxu0 0
        %1360 = vmatprep.subr.bf16.mxu0 0
        %1361 = vmatpush1.bf16.msra.mxu0 0
        %1362 = vmatprep.subr.bf16.mxu0 0
        %1363 = vmatpush1.bf16.msra.mxu0 0
        %1364 = vmatprep.subr.bf16.mxu0 0
        %1365 = vmatpush1.bf16.msra.mxu0 0
        %1366 = vmatprep.subr.bf16.mxu0 0
        %1367 = vmatpush1.bf16.msra.mxu0 0
        %1368 = vmatprep.subr.bf16.mxu0 0
        %1369 = vmatpush1.bf16.msra.mxu0 0
        %1370 = vmatprep.subr.bf16.mxu0 0
        %1371 = vmatpush1.bf16.msra.mxu0 0
        %1372 = vmatprep.subr.bf16.mxu0 0
        %1373 = vmatpush1.bf16.msra.mxu0 0
        %1374 = vmatprep.subr.bf16.mxu0 0
        %1375 = vmatpush1.bf16.msra.mxu0 0
        %1376 = vmatprep.subr.bf16.mxu0 0
        %1377 = vmatpush1.bf16.msra.mxu0 0
        %1378 = vmatprep.subr.bf16.mxu0 0
        %1379 = vmatpush1.bf16.msra.mxu0 0
        %1380 = vmatprep.subr.bf16.mxu0 0
        %1381 = vmatpush1.bf16.msra.mxu0 0
        %1382 = vmatprep.subr.bf16.mxu0 0
        %1383 = vmatpush1.bf16.msra.mxu0 0
        %1384 = vmatprep.mubr.bf16.mxu0 0
        %1385 = vmatmul.mubr.bf16.gmra.mrb[0].mxu0 %v1350
        %v1386 = vpop.f32.mrb[0].mxu0
        %v1387 = vadd.f32 0.0, %v1386
        %v1388 = vpop.f32.mrb[0].mxu0
        %v1389 = vpop.f32.mrb[0].mxu0
        %v1390 = vpop.f32.mrb[0].mxu0
        %1391 = vdwg.mxu0
        %v1392 = vsel %vm653, %v1338, 0.0
        %v1393 = vsel %vm653, %v1387, 0.0
        %v1394 = vadd.f32 %v1392, %v1393
        %v1395 = vadd.f32 %v650, %v1394
        %v1396 = vld [vmem:[%s641 + $0x4] sm:$0x1]
        %v1397 = vlaneseq
        %v1398 = vshrl.u32 %v1397, 7
        %v1399 = vsub.s32 0, %v1398
        %v1400 = vrot.slane %v1396, %v1399
        %v1401 = vadd.f32 %v1395, %v1400
        %v1402 = vld [vmem:[%s641 + $0x2] sm:$0x1]
        %v1403 = vld [vmem:[%s641 + $0x3] sm:$0x1]
        %v1404 = vsel %vm653, %v1401, 0.0
        %1405 = vadd.xlane.f32.xlu0 %v1404
        %v1406 = vpop.xlane.xlu0 %1405
        %v1407 = vmul.f32 %v1406, %v657
        %v1408 = vsub.f32 %v1401, %v1407
        %v1409 = vmul.f32 %v1408, %v1408
        %v1410 = vsel %vm653, %v1409, 0.0
        %1411 = vadd.xlane.f32.xlu0 %v1410
        %v1412 = vpop.xlane.xlu0 %1411
        %v1413 = vmul.f32 %v1412, %v657
        %v1414 = vadd.f32 %v1413, 1e-06
        %v1415 = vrsqrt.pop %v1414
        %v1416 = vmul.f32 %v1408, %v1415
        %v1417 = vlaneseq
        %v1418 = vshrl.u32 %v1417, 7
        %v1419 = vsub.s32 0, %v1418
        %v1420 = vrot.slane %v1402, %v1419
        %v1421 = vmul.f32 %v1416, %v1420
        %v1422 = vlaneseq
        %v1423 = vshrl.u32 %v1422, 7
        %v1424 = vsub.s32 0, %v1423
        %v1425 = vrot.slane %v1403, %v1424
        %v1426 = vadd.f32 %v1421, %v1425
        %v1427 = vpack.c.bf16 %v1426, %v1426
        %v1428 = vld [vmem:[%s629] sm:$0xf]
        %v1429 = vld [vmem:[%s629 + $0x4] sm:$0xf]
        %v1430 = vld [vmem:[%s629 + $0x8] sm:$0xf]
        %v1431 = vld [vmem:[%s629 + $0xc] sm:$0xf]
        %v1432 = vld [vmem:[%s632] sm:$0x1]
        %v1434 = vlaneseq
        %v1435 = vshrl.u32 %v1434, 7
        %v1436 = vsub.s32 0, %v1435
        %v1437 = vrot.slane %v1432, %v1436
        %v1443 = vunpack.c.l.b16 %v1428
        %v1444 = vunpack.c.l.b16 %v1429
        %v1445 = vunpack.c.l.b16 %v1430
        %v1446 = vunpack.c.l.b16 %v1431
        %v1447 = vpack.c.b16 %v1444, %v1443
        %v1448 = vpack.c.b16 %v1446, %v1445
        %v1452 = vsel %vm653, %v1427, 0
        %1454 = vmatprep.subr.bf16.mxu0 0
        %1455 = vmatpush1.bf16.msra.mxu0 %v1447
        %1456 = vmatprep.subr.bf16.mxu0 0
        %1457 = vmatpush1.bf16.msra.mxu0 %v1448
        %1458 = vmatprep.subr.bf16.mxu0 0
        %1459 = vmatpush1.bf16.msra.mxu0 0
        %1460 = vmatprep.subr.bf16.mxu0 0
        %1461 = vmatpush1.bf16.msra.mxu0 0
        %1462 = vmatprep.subr.bf16.mxu0 0
        %1463 = vmatpush1.bf16.msra.mxu0 0
        %1464 = vmatprep.subr.bf16.mxu0 0
        %1465 = vmatpush1.bf16.msra.mxu0 0
        %1466 = vmatprep.subr.bf16.mxu0 0
        %1467 = vmatpush1.bf16.msra.mxu0 0
        %1468 = vmatprep.subr.bf16.mxu0 0
        %1469 = vmatpush1.bf16.msra.mxu0 0
        %1470 = vmatprep.subr.bf16.mxu0 0
        %1471 = vmatpush1.bf16.msra.mxu0 0
        %1472 = vmatprep.subr.bf16.mxu0 0
        %1473 = vmatpush1.bf16.msra.mxu0 0
        %1474 = vmatprep.subr.bf16.mxu0 0
        %1475 = vmatpush1.bf16.msra.mxu0 0
        %1476 = vmatprep.subr.bf16.mxu0 0
        %1477 = vmatpush1.bf16.msra.mxu0 0
        %1478 = vmatprep.subr.bf16.mxu0 0
        %1479 = vmatpush1.bf16.msra.mxu0 0
        %1480 = vmatprep.subr.bf16.mxu0 0
        %1481 = vmatpush1.bf16.msra.mxu0 0
        %1482 = vmatprep.subr.bf16.mxu0 0
        %1483 = vmatpush1.bf16.msra.mxu0 0
        %1484 = vmatprep.subr.bf16.mxu0 0
        %1485 = vmatpush1.bf16.msra.mxu0 0
        %1486 = vmatprep.mubr.bf16.mxu0 0
        %1487 = vmatmul.mubr.bf16.gmra.mrb[0].mxu0 %v1452
        %v1488 = vpop.f32.mrb[0].mxu0
        %v1489 = vadd.f32 %v1437, %v1488
        %v1490 = vpop.f32.mrb[0].mxu0
        %v1491 = vpop.f32.mrb[0].mxu0
        %v1492 = vpop.f32.mrb[0].mxu0
        %1493 = vdwg.mxu0
        %v1494 = vmul.f32 %v1489, 0.5
        %v1495 = vmul.f32 %v1489, 0.044715
        %v1496 = vmul.f32 %v1495, %v1489
        %v1497 = vmul.f32 %v1496, %v1489
        %v1498 = vadd.f32 %v1489, %v1497
        %v1499 = vmul.f32 %v1498, 0.7978846
        %v1500 = vtanh.pop %v1499
        %v1501 = vadd.f32 %v1500, 1.0
        %v1502 = vmul.f32 %v1494, %v1501
        %v1503 = vpack.c.bf16 %v1502, %v1502
        %v1504 = vld [vmem:[%s637] sm:$0xf]
        %v1505 = vld [vmem:[%s637 + $0x4] sm:$0xf]
        %v1506 = vld [vmem:[%s637 + $0x8] sm:$0xf]
        %v1507 = vld [vmem:[%s637 + $0xc] sm:$0xf]
        %v1508 = vld [vmem:[%s637 + $0x10] sm:$0xf]
        %v1509 = vld [vmem:[%s637 + $0x14] sm:$0xf]
        %v1510 = vld [vmem:[%s637 + $0x18] sm:$0xf]
        %v1511 = vld [vmem:[%s637 + $0x1c] sm:$0xf]
        %v1512 = vld [vmem:[%s637 + $0x20] sm:$0xf]
        %v1513 = vld [vmem:[%s637 + $0x24] sm:$0xf]
        %v1514 = vld [vmem:[%s637 + $0x28] sm:$0xf]
        %v1515 = vld [vmem:[%s637 + $0x2c] sm:$0xf]
        %v1516 = vld [vmem:[%s637 + $0x30] sm:$0xf]
        %v1517 = vld [vmem:[%s637 + $0x34] sm:$0xf]
        %v1518 = vld [vmem:[%s637 + $0x38] sm:$0xf]
        %v1519 = vld [vmem:[%s637 + $0x3c] sm:$0xf]
        %v1520 = vld [vmem:[%s641 + $0x5] sm:$0x1]
        %v1521 = vlaneseq
        %v1522 = vshrl.u32 %v1521, 7
        %v1523 = vsub.s32 0, %v1522
        %v1524 = vrot.slane %v1520, %v1523
        %v1541 = vunpack.c.l.b16 %v1504
        %v1542 = vunpack.c.l.b16 %v1505
        %v1543 = vunpack.c.l.b16 %v1506
        %v1544 = vunpack.c.l.b16 %v1507
        %v1545 = vunpack.c.l.b16 %v1508
        %v1546 = vunpack.c.l.b16 %v1509
        %v1547 = vunpack.c.l.b16 %v1510
        %v1548 = vunpack.c.l.b16 %v1511
        %v1549 = vunpack.c.l.b16 %v1512
        %v1550 = vunpack.c.l.b16 %v1513
        %v1551 = vunpack.c.l.b16 %v1514
        %v1552 = vunpack.c.l.b16 %v1515
        %v1553 = vunpack.c.l.b16 %v1516
        %v1554 = vunpack.c.l.b16 %v1517
        %v1555 = vunpack.c.l.b16 %v1518
        %v1556 = vunpack.c.l.b16 %v1519
        %v1557 = vpack.c.b16 %v1542, %v1541
        %v1558 = vpack.c.b16 %v1544, %v1543
        %v1559 = vpack.c.b16 %v1546, %v1545
        %v1560 = vpack.c.b16 %v1548, %v1547
        %v1561 = vpack.c.b16 %v1550, %v1549
        %v1562 = vpack.c.b16 %v1552, %v1551
        %v1563 = vpack.c.b16 %v1554, %v1553
        %v1564 = vpack.c.b16 %v1556, %v1555
        %1573 = vmatprep.subr.bf16.mxu0 0
        %1574 = vmatpush1.bf16.msra.mxu0 %v1557
        %1575 = vmatprep.subr.bf16.mxu0 0
        %1576 = vmatpush1.bf16.msra.mxu0 %v1558
        %1577 = vmatprep.subr.bf16.mxu0 0
        %1578 = vmatpush1.bf16.msra.mxu0 %v1559
        %1579 = vmatprep.subr.bf16.mxu0 0
        %1580 = vmatpush1.bf16.msra.mxu0 %v1560
        %1581 = vmatprep.subr.bf16.mxu0 0
        %1582 = vmatpush1.bf16.msra.mxu0 %v1561
        %1583 = vmatprep.subr.bf16.mxu0 0
        %1584 = vmatpush1.bf16.msra.mxu0 %v1562
        %1585 = vmatprep.subr.bf16.mxu0 0
        %1586 = vmatpush1.bf16.msra.mxu0 %v1563
        %1587 = vmatprep.subr.bf16.mxu0 0
        %1588 = vmatpush1.bf16.msra.mxu0 %v1564
        %1589 = vmatprep.subr.bf16.mxu0 0
        %1590 = vmatpush1.bf16.msra.mxu0 0
        %1591 = vmatprep.subr.bf16.mxu0 0
        %1592 = vmatpush1.bf16.msra.mxu0 0
        %1593 = vmatprep.subr.bf16.mxu0 0
        %1594 = vmatpush1.bf16.msra.mxu0 0
        %1595 = vmatprep.subr.bf16.mxu0 0
        %1596 = vmatpush1.bf16.msra.mxu0 0
        %1597 = vmatprep.subr.bf16.mxu0 0
        %1598 = vmatpush1.bf16.msra.mxu0 0
        %1599 = vmatprep.subr.bf16.mxu0 0
        %1600 = vmatpush1.bf16.msra.mxu0 0
        %1601 = vmatprep.subr.bf16.mxu0 0
        %1602 = vmatpush1.bf16.msra.mxu0 0
        %1603 = vmatprep.subr.bf16.mxu0 0
        %1604 = vmatpush1.bf16.msra.mxu0 0
        %1605 = vmatprep.mubr.bf16.mxu0 0
        %1606 = vmatmul.mubr.bf16.gmra.mrb[0].mxu0 %v1503
        %v1607 = vpop.f32.mrb[0].mxu0
        %v1608 = vadd.f32 %v1524, %v1607
        %v1609 = vpop.f32.mrb[0].mxu0
        %v1610 = vpop.f32.mrb[0].mxu0
        %v1611 = vpop.f32.mrb[0].mxu0
        %1612 = vdwg.mxu0
        %v1613 = vadd.f32 %v1401, %v1608
        %1614 = vst.msk [vmem:[#allocation2] sm:$0xff] %vm653, %v1613
        %p1615 = scmp.eq.s32.totalorder %s33, 1
        // Predicated region
        $region81: #{foundationmodel_forward.3} parent=75 // pred_check
          %p1616 = pneg %p1615
        $region82: #{foundationmodel_forward.3} parent=75 // pred_check_branch
          %1618 = sbr.rel (%p1616) target = $region84
        $region83: #{foundationmodel_forward.3} parent=75 // pred_region
          %v1619 = vld [vmem:[#allocation2] sm:$0x1]
          %v1620 = vld [vmem:[%s10] sm:$0x1]
          %v1621 = vld [vmem:[%s11] sm:$0x1]
          %vm1622 = vcmask 253952
          %v1623 = vsel %vm1622, %v1619, 0.0
          %1624 = vadd.xlane.f32.xlu0 %v1623
          %v1625 = vpop.xlane.xlu0 %1624
          %v1626 = vmul.f32 %v1625, %v657
          %v1627 = vsub.f32 %v1619, %v1626
          %v1628 = vmul.f32 %v1627, %v1627
          %v1629 = vsel %vm1622, %v1628, 0.0
          %1630 = vadd.xlane.f32.xlu0 %v1629
          %v1631 = vpop.xlane.xlu0 %1630
          %v1632 = vmul.f32 %v1631, %v657
          %v1633 = vadd.f32 %v1632, 1e-06
          %v1634 = vrsqrt.pop %v1633
          %v1635 = vmul.f32 %v1627, %v1634
          %v1636 = vmul.f32 %v1635, %v1620
          %v1637 = vadd.f32 %v1636, %v1621
          %v1638 = vpack.c.bf16 %v1637, %v1637
          %v1639 = vld [vmem:[%s12] sm:$0xf]
          %v1640 = vld [vmem:[%s12 + $0x4] sm:$0xf]
          %v1641 = vld [vmem:[%s12 + $0x8] sm:$0xf]
          %v1642 = vld [vmem:[%s12 + $0xc] sm:$0xf]
          %v1643 = vld [vmem:[%s13] sm:$0x1]
          %v1648 = vunpack.c.l.b16 %v1639
          %v1649 = vunpack.c.l.b16 %v1640
          %v1650 = vunpack.c.l.b16 %v1641
          %v1651 = vunpack.c.l.b16 %v1642
          %v1652 = vpack.c.b16 %v1649, %v1648
          %v1653 = vpack.c.b16 %v1651, %v1650
          %v1657 = vsel %vm653, %v1638, 0
          %1659 = vmatprep.subr.bf16.mxu0 0
          %1660 = vmatpush1.bf16.msra.mxu0 %v1652
          %1661 = vmatprep.subr.bf16.mxu0 0
          %1662 = vmatpush1.bf16.msra.mxu0 %v1653
          %1663 = vmatprep.subr.bf16.mxu0 0
          %1664 = vmatpush1.bf16.msra.mxu0 0
          %1665 = vmatprep.subr.bf16.mxu0 0
          %1666 = vmatpush1.bf16.msra.mxu0 0
          %1667 = vmatprep.subr.bf16.mxu0 0
          %1668 = vmatpush1.bf16.msra.mxu0 0
          %1669 = vmatprep.subr.bf16.mxu0 0
          %1670 = vmatpush1.bf16.msra.mxu0 0
          %1671 = vmatprep.subr.bf16.mxu0 0
          %1672 = vmatpush1.bf16.msra.mxu0 0
          %1673 = vmatprep.subr.bf16.mxu0 0
          %1674 = vmatpush1.bf16.msra.mxu0 0
          %1675 = vmatprep.subr.bf16.mxu0 0
          %1676 = vmatpush1.bf16.msra.mxu0 0
          %1677 = vmatprep.subr.bf16.mxu0 0
          %1678 = vmatpush1.bf16.msra.mxu0 0
          %1679 = vmatprep.subr.bf16.mxu0 0
          %1680 = vmatpush1.bf16.msra.mxu0 0
          %1681 = vmatprep.subr.bf16.mxu0 0
          %1682 = vmatpush1.bf16.msra.mxu0 0
          %1683 = vmatprep.subr.bf16.mxu0 0
          %1684 = vmatpush1.bf16.msra.mxu0 0
          %1685 = vmatprep.subr.bf16.mxu0 0
          %1686 = vmatpush1.bf16.msra.mxu0 0
          %1687 = vmatprep.subr.bf16.mxu0 0
          %1688 = vmatpush1.bf16.msra.mxu0 0
          %1689 = vmatprep.subr.bf16.mxu0 0
          %1690 = vmatpush1.bf16.msra.mxu0 0
          %1691 = vmatprep.mubr.bf16.mxu0 0
          %1692 = vmatmul.mubr.bf16.gmra.mrb[0].mxu0 %v1657
          %v1693 = vpop.f32.mrb[0].mxu0
          %v1694 = vadd.f32 %v1643, %v1693
          %v1695 = vpop.f32.mrb[0].mxu0
          %v1696 = vpop.f32.mrb[0].mxu0
          %v1697 = vpop.f32.mrb[0].mxu0
          %1698 = vdwg.mxu0
          %vm1699 = vcmask 73728
          %1700 = vst.msk [vmem:[%s596] sm:$0x1] %vm1699, %v1694
        $region84: #{foundationmodel_forward.3} parent=75 // pred_fallthru
          _
        %s1701 = sand.u32 %s392, 1
        %s1702 = scalar_lea.sflag [#allocation4], %s1701
        %s1703 = sand.u32 %s392, 1
        %s1704 = scalar_lea.vmem [#allocation3], %s1703
        // Predicated region
        $region85: #{foundationmodel_forward.3} parent=75 // pred_check
          %p1705 = pneg %p402
        $region86: #{foundationmodel_forward.3} parent=75 // pred_check_branch
          %1707 = sbr.rel (%p1705) target = $region88
        $region87: #{foundationmodel_forward.3} parent=75 // pred_region
          %s1709 = ssub.s32 16, 16
          %1710 = vsyncadd %s1702, %s1709
          %s1711 = smul.addr %s32, 16
          %s1712 = scalar_lea.hbm %s14, %s1711
          %s1714 = sshll.u32 %s1704, 4
          %s1715 = int_to_ptr.vmem [resolvable:$true] %s1714
          %1717 = dma.vmem_to_hbm [thread:$0]  %s1715, 16, %s1712, %s1702
        $region88: #{foundationmodel_forward.3} parent=75 // pred_fallthru
          _
      $region76: #{foundationmodel_forward.3} parent=5 // pred_fallthru
        _
      %p1718 = scmp.le.s32.totalorder 2, %s23
      // Predicated region
      $region89: #{foundationmodel_forward.3} parent=5 // pred_check
        %p1719 = pneg %p1718
      $region90: #{foundationmodel_forward.3} parent=5 // pred_check_branch
        %1721 = sbr.rel (%p1719) target = $region92
      $region91: #{foundationmodel_forward.3} parent=5 // pred_region
        %s1722 = ssub.s32 %s23, 2
        // Predicated region
        $region93: #{foundationmodel_forward.3} parent=91 // pred_check
          %p1723 = pneg %p408
        $region94: #{foundationmodel_forward.3} parent=91 // pred_check_branch
          %1725 = sbr.rel (%p1723) target = $region96
        $region95: #{foundationmodel_forward.3} parent=91 // pred_region
          %s1726 = sand.u32 %s393, 1
          %s1727 = scalar_lea.sflag [#allocation4], %s1726
          %s1728 = sand.u32 %s393, 1
          %s1729 = scalar_lea.vmem [#allocation3], %s1728
          %1730 = dma.done %s1727, 16
        $region96: #{foundationmodel_forward.3} parent=91 // pred_fallthru
          _
      $region92: #{foundationmodel_forward.3} parent=5 // pred_fallthru
        _
    $region6: #{foundationmodel_forward.3} parent=1 // loop_footer
      %s27 = sadd.s32 1, %s23
    $region7: #{foundationmodel_forward.3} parent=1 // loop_footer_branch
      %22 = sbr.rel target = $region3
    $region8: #{foundationmodel_forward.3} parent=1 // loop_exit
      _
    %1731 = vsyncpa [#allocation4], 1
    %s1732 = scalar_lea.sflag [#allocation4], 1
    %1733 = vsyncpa %s1732, 1

</llo_original>
